<compile_context>
chip_gen: v6e
topology: v6e:2x2x1
jax: 0.10.0
libtpu: 0.0.40
codegen_flags: <defaults>
</compile_context>

<pallas_src>
import jax
import jax.numpy as jnp
from jax.experimental import pallas as pl
from jax.experimental.pallas import tpu as pltpu


# ---------------------------------------------------------------------------
# Wrapper: EdgeModel.forward
# ---------------------------------------------------------------------------
def edge_model_forward(src, dest, edge_attr, u, batch, weights, biases, *, tile_e=8192):
    """src, dest, edge_attr: (E, H); u: (num_graphs, g); batch: (E,) int32."""
    E, H = src.shape
    G, g_dim = u.shape
    D0 = 3 * H + g_dim
    assert weights[0].shape[0] == D0 and weights[-1].shape[1] == H

    f32 = jnp.float32
    ea = edge_attr.astype(f32)
    sr = src.astype(f32)
    de = dest.astype(f32)
    bat = batch.astype(jnp.int32)

    # Lane packing factor: P consecutive edges share one 128-lane row.
    P = 128 // H if (H <= 128 and 128 % H == 0) else 1
    PH = P * H

    # Pad at most P-1 edge rows so the free (E,H)->(E/P, P*H) reshape is legal.
    # (Never taken in the common case E % P == 0; the big streams are NOT padded
    #  to the tile size -- Pallas masks the ragged last grid block.)
    E_pad = pl.cdiv(E, P) * P
    if E_pad != E:
        rp = ((0, E_pad - E), (0, 0))
        ea, sr, de = jnp.pad(ea, rp), jnp.pad(sr, rp), jnp.pad(de, rp)
        bat = jnp.pad(bat, (0, E_pad - E))
    E_rows = E_pad // P

    ea_p = ea.reshape(E_rows, PH)          # free row-major reshapes (bitcasts)
    sr_p = sr.reshape(E_rows, PH)
    de_p = de.reshape(E_rows, PH)
    bat_p = bat.reshape(E_rows, P)

    # ---- pack the MLP parameters (trace-time; precompute once in production) ----
    eye_p = jnp.eye(P, dtype=f32)
    w0 = weights[0].astype(f32)
    b0 = jnp.asarray(biases[0], f32).reshape(-1)                      # (H,)
    w0_e, w0_s, w0_d, w0_u = w0[:H], w0[H:2 * H], w0[2 * H:3 * H], w0[3 * H:]

    # Layer 0, [ea|src|dest] part: block-diagonal so the packed layout is preserved.
    w_esd = jnp.concatenate([jnp.kron(eye_p, w0_e),
                             jnp.kron(eye_p, w0_s),
                             jnp.kron(eye_p, w0_d)], axis=0)          # (3*PH, PH)

    # Layer 0, u part: fold u @ W0_u + b0 (so b0 is added exactly once via the
    # one-hot), placed per packed sub-row j into lanes [j*H, (j+1)*H).
    u_proj = u.astype(f32) @ w0_u + b0                                # (G, H)
    w0u = jnp.stack([jnp.pad(u_proj, ((0, 0), (j * H, (P - 1 - j) * H)))
                     for j in range(P)], axis=0)                      # (P, G, PH)

    params = [w_esd, w0u]
    for w, b in zip(weights[1:], biases[1:]):
        params.append(jnp.kron(eye_p, w.astype(f32)))                 # (PH, PH)
        params.append(jnp.tile(jnp.asarray(b, f32).reshape(1, -1), (1, P)))  # (1, PH)
    n_rest = len(weights) - 1

    # ---- tile / grid: big tiles, even #steps so both v7x TensorCores get work ----
    max_rows = max(8, (max(tile_e, P) // P) // 8 * 8)
    n_steps = max(2, pl.cdiv(E_rows, max_rows))
    if n_steps % 2:
        n_steps += 1
    tile_rows = min(max_rows, pl.cdiv(pl.cdiv(E_rows, n_steps), 8) * 8)
    grid = pl.cdiv(E_rows, tile_rows)

    # ---- kernel: fused concat + one-hot(u) + MLP, entirely in packed layout ----
    def kernel(ea_ref, sr_ref, de_ref, bat_ref, w_esd_ref, w0u_ref, *rest_refs):
        o_ref = rest_refs[-1]
        rest = rest_refs[:-1]
        n_hid = len(rest) // 2

        # Layer 0 (edge/src/dest part): lane concat at 128-aligned offsets + one dot.
        x = jnp.concatenate([ea_ref[...], sr_ref[...], de_ref[...]], axis=1)
        h = jnp.dot(x, w_esd_ref[...], preferred_element_type=jnp.float32)

        # Layer 0 (u[batch] part): one-hot(batch) @ (u @ W0_u + b0) per sub-row.
        b = bat_ref[...]                                               # (T, P) int32
        g_iota = jax.lax.broadcasted_iota(jnp.int32, (b.shape[0], G), 1)
        for j in range(P):
            oh = (b[:, j:j + 1] == g_iota).astype(jnp.float32)         # (T, G)
            h = h + jnp.dot(oh, w0u_ref[j], preferred_element_type=jnp.float32)

        if n_hid > 0:                       # SiLU after layer 0 iff it is not the last
            h = h * jax.nn.sigmoid(h)       # exp runs on the EUP slot (cheap)
        for k in range(n_hid):
            h = jnp.dot(h, rest[2 * k][...],
                        preferred_element_type=jnp.float32) + rest[2 * k + 1][...]
            if k != n_hid - 1:              # no SiLU after the final Linear
                h = h * jax.nn.sigmoid(h)

        o_ref[...] = h.astype(o_ref.dtype)  # full 128-lane (unmasked) stores

    # ---- specs ----
    def row_spec(d):
        return pl.BlockSpec((tile_rows, d), lambda i: (i, 0))

    def const_spec(a):
        return pl.BlockSpec(a.shape, lambda i, _n=a.ndim: (0,) * _n)

    in_specs = [row_spec(PH), row_spec(PH), row_spec(PH), row_spec(P)]
    in_specs += [const_spec(p) for p in params]
    out_spec = pl.BlockSpec((tile_rows, PH), lambda i: (i, 0))

    rows_total = grid * tile_rows
    flops_row = 2 * (3 * PH * PH + P * G * PH) + n_rest * 2 * PH * PH
    cost = pl.CostEstimate(
        flops=int(rows_total * flops_row),
        transcendentals=int(rows_total * PH * n_rest),
        bytes_accessed=int(4 * E_pad * 4 * H + 4 * E_pad
                           + 4 * sum(int(p.size) for p in params)),
    )

    out_p = pl.pallas_call(
        kernel,
        out_shape=jax.ShapeDtypeStruct((E_rows, PH), jnp.float32),
        grid_spec=pltpu.PrefetchScalarGridSpec(
            num_scalar_prefetch=0,
            grid=(grid,),
            in_specs=in_specs,
            out_specs=out_spec,
        ),
        compiler_params=pltpu.CompilerParams(
            dimension_semantics=("parallel",)),
        cost_estimate=cost,
    )(ea_p, sr_p, de_p, bat_p, *params)

    out = out_p.reshape(E_pad, H)           # free reshape back to (E, H)
    return out if E_pad == E else out[:E]


# ---------------------------------------------------------------------------
# Pure-JAX reference (mirrors the PyTorch module)
# ---------------------------------------------------------------------------
def edge_model_reference(src, dest, edge_attr, u, batch, weights, biases):
    h = jnp.concatenate([edge_attr, src, dest, u[batch]], axis=1).astype(jnp.float32)
    n_layers = len(weights)
    for k, (w, b) in enumerate(zip(weights, biases)):
        h = h @ w + jnp.asarray(b).reshape(1, -1)
        if k != n_layers - 1:
            h = h * jax.nn.sigmoid(h)
    return h


if __name__ == "__main__":
    # EdgeModel(n_hidden=2, dim_hidden=32, dims={'g': 4})
    n_hidden = 2
    dim_hidden = 32
    dim_g = 4
    num_graphs = 4
    num_edges = 2500          # not a multiple of the tile -> exercises ragged last block

    layer_vec = [3 * dim_hidden + dim_g] + n_hidden * [dim_hidden] + [dim_hidden]

    key = jax.random.PRNGKey(0)
    keys = jax.random.split(key, 8 + 2 * (len(layer_vec) - 1))

    # Deterministic synthetic parameters (fan-in scaled, like nn.Linear init scale).
    weights, biases = [], []
    ki = 0
    for k in range(len(layer_vec) - 1):
        fan_in, fan_out = layer_vec[k], layer_vec[k + 1]
        bound = 1.0 / jnp.sqrt(fan_in)
        w = jax.random.uniform(keys[ki], (fan_in, fan_out),
                               minval=-bound, maxval=bound, dtype=jnp.float32)
        b = jax.random.uniform(keys[ki + 1], (1, fan_out),
                               minval=-bound, maxval=bound, dtype=jnp.float32)
        weights.append(w)
        biases.append(b)
        ki += 2

    # Deterministic inputs.
    src = jax.random.normal(keys[ki + 0], (num_edges, dim_hidden), dtype=jnp.float32)
    dest = jax.random.normal(keys[ki + 1], (num_edges, dim_hidden), dtype=jnp.float32)
    edge_attr = jax.random.normal(keys[ki + 2], (num_edges, dim_hidden), dtype=jnp.float32)
    u = jax.random.normal(keys[ki + 3], (num_graphs, dim_g), dtype=jnp.float32)
    batch = jax.random.randint(keys[ki + 4], (num_edges,), 0, num_graphs, dtype=jnp.int32)

    out = edge_model_forward(src, dest, edge_attr, u, batch, weights, biases)
    out = jax.block_until_ready(out)

    ref = edge_model_reference(src, dest, edge_attr, u, batch, weights, biases)
    assert out.shape == (num_edges, dim_hidden)
    assert jnp.allclose(out, ref, atol=2e-4, rtol=2e-4), "mismatch vs JAX reference"

    print("KERNEL_OK")
</pallas_src>

<mosaic_0001>
module attributes {stable_mosaic.version = 11 : i64} {
  func.func @kernel(%arg0: i32, %arg1: memref<320x128xf32, #tpu.memory_space<vmem>>, %arg2: memref<320x128xf32, #tpu.memory_space<vmem>>, %arg3: memref<320x128xf32, #tpu.memory_space<vmem>>, %arg4: memref<320x4xi32, #tpu.memory_space<vmem>>, %arg5: memref<384x128xf32, #tpu.memory_space<vmem>>, %arg6: memref<4x4x128xf32, #tpu.memory_space<vmem>>, %arg7: memref<128x128xf32, #tpu.memory_space<vmem>>, %arg8: memref<1x128xf32, #tpu.memory_space<vmem>>, %arg9: memref<128x128xf32, #tpu.memory_space<vmem>>, %arg10: memref<1x128xf32, #tpu.memory_space<vmem>>, %arg11: memref<320x128xf32, #tpu.memory_space<vmem>>) attributes {dimension_semantics = [#tpu.dimension_semantics<parallel>], iteration_bounds = array<i64: 2>, scalar_prefetch = 0 : i64, scratch_operands = 0 : i64, tpu.core_type = #tpu.core_type<tc>, window_params = [{transform_indices = @transform_0, window_bounds = array<i64: 320, 128>}, {transform_indices = @transform_1, window_bounds = array<i64: 320, 128>}, {transform_indices = @transform_2, window_bounds = array<i64: 320, 128>}, {transform_indices = @transform_3, window_bounds = array<i64: 320, 4>}, {pipeline_mode = #tpu.pipeline_mode<synchronous>, transform_indices = @transform_4, window_bounds = array<i64: 384, 128>}, {pipeline_mode = #tpu.pipeline_mode<synchronous>, transform_indices = @transform_5, window_bounds = array<i64: 4, 4, 128>}, {pipeline_mode = #tpu.pipeline_mode<synchronous>, transform_indices = @transform_6, window_bounds = array<i64: 128, 128>}, {pipeline_mode = #tpu.pipeline_mode<synchronous>, transform_indices = @transform_7, window_bounds = array<i64: 1, 128>}, {pipeline_mode = #tpu.pipeline_mode<synchronous>, transform_indices = @transform_8, window_bounds = array<i64: 128, 128>}, {pipeline_mode = #tpu.pipeline_mode<synchronous>, transform_indices = @transform_9, window_bounds = array<i64: 1, 128>}, {transform_indices = @transform_10, window_bounds = array<i64: 320, 128>}]} {
    %c0 = arith.constant 0 : index
    %c0_0 = arith.constant 0 : index
    %0 = vector.load %arg1[%c0, %c0_0] : memref<320x128xf32, #tpu.memory_space<vmem>>, vector<320x128xf32>
    %c0_1 = arith.constant 0 : index
    %c0_2 = arith.constant 0 : index
    %1 = vector.load %arg2[%c0_1, %c0_2] : memref<320x128xf32, #tpu.memory_space<vmem>>, vector<320x128xf32>
    %c0_3 = arith.constant 0 : index
    %c0_4 = arith.constant 0 : index
    %2 = vector.load %arg3[%c0_3, %c0_4] : memref<320x128xf32, #tpu.memory_space<vmem>>, vector<320x128xf32>
    %3 = tpu.concatenate %0, %1, %2 in 1 : vector<320x128xf32>, vector<320x128xf32>, vector<320x128xf32> -> vector<320x384xf32>
    %c0_5 = arith.constant 0 : index
    %c0_6 = arith.constant 0 : index
    %4 = vector.load %arg5[%c0_5, %c0_6] : memref<384x128xf32, #tpu.memory_space<vmem>>, vector<384x128xf32>
    %cst = arith.constant dense<0.000000e+00> : vector<320x128xf32>
    %5 = tpu.matmul %3, %4, %cst {dimension_numbers = #tpu.dot_dimension_numbers<[1], [0], [0], [1], [0, 0, 1, 1], [], []>} : vector<320x384xf32>, vector<384x128xf32>, vector<320x128xf32> -> vector<320x128xf32>
    %c0_7 = arith.constant 0 : index
    %c0_8 = arith.constant 0 : index
    %6 = vector.load %arg4[%c0_7, %c0_8] : memref<320x4xi32, #tpu.memory_space<vmem>>, vector<320x4xi32>
    %7 = tpu.iota {dimensions = array<i32: 1>} : vector<320x4xi32>
    %8 = vector.extract_strided_slice %6 {offsets = [0, 0], sizes = [320, 1], strides = [1, 1]} : vector<320x4xi32> to vector<320x1xi32>
    %9 = vector.broadcast %8 : vector<320x1xi32> to vector<320x4xi32>
    %10 = arith.cmpi eq, %9, %7 : vector<320x4xi32>
    %11 = arith.extui %10 : vector<320x4xi1> to vector<320x4xi32>
    %12 = arith.sitofp %11 : vector<320x4xi32> to vector<320x4xf32>
    %c0_9 = arith.constant 0 : index
    %c0_10 = arith.constant 0 : index
    %c0_11 = arith.constant 0 : index
    %13 = vector.load %arg6[%c0_9, %c0_10, %c0_11] : memref<4x4x128xf32, #tpu.memory_space<vmem>>, vector<1x4x128xf32>
    %14 = vector.shape_cast %13 : vector<1x4x128xf32> to vector<4x128xf32>
    %cst_12 = arith.constant dense<0.000000e+00> : vector<320x128xf32>
    %15 = tpu.matmul %12, %14, %cst_12 {dimension_numbers = #tpu.dot_dimension_numbers<[1], [0], [0], [1], [0, 0, 1, 1], [], []>} : vector<320x4xf32>, vector<4x128xf32>, vector<320x128xf32> -> vector<320x128xf32>
    %16 = arith.addf %5, %15 : vector<320x128xf32>
    %17 = vector.extract_strided_slice %6 {offsets = [0, 1], sizes = [320, 1], strides = [1, 1]} : vector<320x4xi32> to vector<320x1xi32>
    %18 = vector.broadcast %17 : vector<320x1xi32> to vector<320x4xi32>
    %19 = arith.cmpi eq, %18, %7 : vector<320x4xi32>
    %20 = arith.extui %19 : vector<320x4xi1> to vector<320x4xi32>
    %21 = arith.sitofp %20 : vector<320x4xi32> to vector<320x4xf32>
    %c1 = arith.constant 1 : index
    %c0_13 = arith.constant 0 : index
    %c0_14 = arith.constant 0 : index
    %22 = vector.load %arg6[%c1, %c0_13, %c0_14] : memref<4x4x128xf32, #tpu.memory_space<vmem>>, vector<1x4x128xf32>
    %23 = vector.shape_cast %22 : vector<1x4x128xf32> to vector<4x128xf32>
    %cst_15 = arith.constant dense<0.000000e+00> : vector<320x128xf32>
    %24 = tpu.matmul %21, %23, %cst_15 {dimension_numbers = #tpu.dot_dimension_numbers<[1], [0], [0], [1], [0, 0, 1, 1], [], []>} : vector<320x4xf32>, vector<4x128xf32>, vector<320x128xf32> -> vector<320x128xf32>
    %25 = arith.addf %16, %24 : vector<320x128xf32>
    %26 = vector.extract_strided_slice %6 {offsets = [0, 2], sizes = [320, 1], strides = [1, 1]} : vector<320x4xi32> to vector<320x1xi32>
    %27 = vector.broadcast %26 : vector<320x1xi32> to vector<320x4xi32>
    %28 = arith.cmpi eq, %27, %7 : vector<320x4xi32>
    %29 = arith.extui %28 : vector<320x4xi1> to vector<320x4xi32>
    %30 = arith.sitofp %29 : vector<320x4xi32> to vector<320x4xf32>
    %c2 = arith.constant 2 : index
    %c0_16 = arith.constant 0 : index
    %c0_17 = arith.constant 0 : index
    %31 = vector.load %arg6[%c2, %c0_16, %c0_17] : memref<4x4x128xf32, #tpu.memory_space<vmem>>, vector<1x4x128xf32>
    %32 = vector.shape_cast %31 : vector<1x4x128xf32> to vector<4x128xf32>
    %cst_18 = arith.constant dense<0.000000e+00> : vector<320x128xf32>
    %33 = tpu.matmul %30, %32, %cst_18 {dimension_numbers = #tpu.dot_dimension_numbers<[1], [0], [0], [1], [0, 0, 1, 1], [], []>} : vector<320x4xf32>, vector<4x128xf32>, vector<320x128xf32> -> vector<320x128xf32>
    %34 = arith.addf %25, %33 : vector<320x128xf32>
    %35 = vector.extract_strided_slice %6 {offsets = [0, 3], sizes = [320, 1], strides = [1, 1]} : vector<320x4xi32> to vector<320x1xi32>
    %36 = vector.broadcast %35 : vector<320x1xi32> to vector<320x4xi32>
    %37 = arith.cmpi eq, %36, %7 : vector<320x4xi32>
    %38 = arith.extui %37 : vector<320x4xi1> to vector<320x4xi32>
    %39 = arith.sitofp %38 : vector<320x4xi32> to vector<320x4xf32>
    %c3 = arith.constant 3 : index
    %c0_19 = arith.constant 0 : index
    %c0_20 = arith.constant 0 : index
    %40 = vector.load %arg6[%c3, %c0_19, %c0_20] : memref<4x4x128xf32, #tpu.memory_space<vmem>>, vector<1x4x128xf32>
    %41 = vector.shape_cast %40 : vector<1x4x128xf32> to vector<4x128xf32>
    %cst_21 = arith.constant dense<0.000000e+00> : vector<320x128xf32>
    %42 = tpu.matmul %39, %41, %cst_21 {dimension_numbers = #tpu.dot_dimension_numbers<[1], [0], [0], [1], [0, 0, 1, 1], [], []>} : vector<320x4xf32>, vector<4x128xf32>, vector<320x128xf32> -> vector<320x128xf32>
    %43 = arith.addf %34, %42 : vector<320x128xf32>
    %44 = arith.negf %43 : vector<320x128xf32>
    %45 = math.exp %44 : vector<320x128xf32>
    %cst_22 = arith.constant 1.000000e+00 : f32
    %46 = vector.broadcast %cst_22 : f32 to vector<320x128xf32>
    %47 = arith.addf %46, %45 : vector<320x128xf32>
    %48 = arith.divf %46, %47 : vector<320x128xf32>
    %49 = arith.mulf %43, %48 : vector<320x128xf32>
    %c0_23 = arith.constant 0 : index
    %c0_24 = arith.constant 0 : index
    %50 = vector.load %arg7[%c0_23, %c0_24] : memref<128x128xf32, #tpu.memory_space<vmem>>, vector<128x128xf32>
    %cst_25 = arith.constant dense<0.000000e+00> : vector<320x128xf32>
    %51 = tpu.matmul %49, %50, %cst_25 {dimension_numbers = #tpu.dot_dimension_numbers<[1], [0], [0], [1], [0, 0, 1, 1], [], []>} : vector<320x128xf32>, vector<128x128xf32>, vector<320x128xf32> -> vector<320x128xf32>
    %c0_26 = arith.constant 0 : index
    %c0_27 = arith.constant 0 : index
    %52 = vector.load %arg8[%c0_26, %c0_27] : memref<1x128xf32, #tpu.memory_space<vmem>>, vector<1x128xf32>
    %53 = vector.broadcast %52 : vector<1x128xf32> to vector<320x128xf32>
    %54 = arith.addf %51, %53 : vector<320x128xf32>
    %55 = arith.negf %54 : vector<320x128xf32>
    %56 = math.exp %55 : vector<320x128xf32>
    %cst_28 = arith.constant 1.000000e+00 : f32
    %57 = vector.broadcast %cst_28 : f32 to vector<320x128xf32>
    %58 = arith.addf %57, %56 : vector<320x128xf32>
    %59 = arith.divf %57, %58 : vector<320x128xf32>
    %60 = arith.mulf %54, %59 : vector<320x128xf32>
    %c0_29 = arith.constant 0 : index
    %c0_30 = arith.constant 0 : index
    %61 = vector.load %arg9[%c0_29, %c0_30] : memref<128x128xf32, #tpu.memory_space<vmem>>, vector<128x128xf32>
    %cst_31 = arith.constant dense<0.000000e+00> : vector<320x128xf32>
    %62 = tpu.matmul %60, %61, %cst_31 {dimension_numbers = #tpu.dot_dimension_numbers<[1], [0], [0], [1], [0, 0, 1, 1], [], []>} : vector<320x128xf32>, vector<128x128xf32>, vector<320x128xf32> -> vector<320x128xf32>
    %c0_32 = arith.constant 0 : index
    %c0_33 = arith.constant 0 : index
    %63 = vector.load %arg10[%c0_32, %c0_33] : memref<1x128xf32, #tpu.memory_space<vmem>>, vector<1x128xf32>
    %64 = vector.broadcast %63 : vector<1x128xf32> to vector<320x128xf32>
    %65 = arith.addf %62, %64 : vector<320x128xf32>
    %c0_34 = arith.constant 0 : index
    %c0_35 = arith.constant 0 : index
    %66 = vector.load %arg11[%c0_34, %c0_35] : memref<320x128xf32, #tpu.memory_space<vmem>>, vector<320x128xf32>
    tpu.vector_store %arg11[%c0_34, %c0_35], %65 {strides = array<i32>} : memref<320x128xf32, #tpu.memory_space<vmem>>, vector<320x128xf32>,
    return
  }
  func.func @transform_0(%arg0: i32) -> (i32, i32) {
    %c0_i32 = arith.constant 0 : i32
    %c0_i32_0 = arith.constant 0 : i32
    return %arg0, %c0_i32 : i32, i32
  }
  func.func @transform_1(%arg0: i32) -> (i32, i32) {
    %c0_i32 = arith.constant 0 : i32
    %c0_i32_0 = arith.constant 0 : i32
    return %arg0, %c0_i32 : i32, i32
  }
  func.func @transform_2(%arg0: i32) -> (i32, i32) {
    %c0_i32 = arith.constant 0 : i32
    %c0_i32_0 = arith.constant 0 : i32
    return %arg0, %c0_i32 : i32, i32
  }
  func.func @transform_3(%arg0: i32) -> (i32, i32) {
    %c0_i32 = arith.constant 0 : i32
    %c0_i32_0 = arith.constant 0 : i32
    return %arg0, %c0_i32 : i32, i32
  }
  func.func @transform_4(%arg0: i32) -> (i32, i32) {
    %c0_i32 = arith.constant 0 : i32
    %c0_i32_0 = arith.constant 0 : i32
    %c0_i32_1 = arith.constant 0 : i32
    return %c0_i32, %c0_i32_0 : i32, i32
  }
  func.func @transform_5(%arg0: i32) -> (i32, i32, i32) {
    %c0_i32 = arith.constant 0 : i32
    %c0_i32_0 = arith.constant 0 : i32
    %c0_i32_1 = arith.constant 0 : i32
    %c0_i32_2 = arith.constant 0 : i32
    return %c0_i32, %c0_i32_0, %c0_i32_1 : i32, i32, i32
  }
  func.func @transform_6(%arg0: i32) -> (i32, i32) {
    %c0_i32 = arith.constant 0 : i32
    %c0_i32_0 = arith.constant 0 : i32
    %c0_i32_1 = arith.constant 0 : i32
    return %c0_i32, %c0_i32_0 : i32, i32
  }
  func.func @transform_7(%arg0: i32) -> (i32, i32) {
    %c0_i32 = arith.constant 0 : i32
    %c0_i32_0 = arith.constant 0 : i32
    %c0_i32_1 = arith.constant 0 : i32
    return %c0_i32, %c0_i32_0 : i32, i32
  }
  func.func @transform_8(%arg0: i32) -> (i32, i32) {
    %c0_i32 = arith.constant 0 : i32
    %c0_i32_0 = arith.constant 0 : i32
    %c0_i32_1 = arith.constant 0 : i32
    return %c0_i32, %c0_i32_0 : i32, i32
  }
  func.func @transform_9(%arg0: i32) -> (i32, i32) {
    %c0_i32 = arith.constant 0 : i32
    %c0_i32_0 = arith.constant 0 : i32
    %c0_i32_1 = arith.constant 0 : i32
    return %c0_i32, %c0_i32_0 : i32, i32
  }
  func.func @transform_10(%arg0: i32) -> (i32, i32) {
    %c0_i32 = arith.constant 0 : i32
    %c0_i32_0 = arith.constant 0 : i32
    return %arg0, %c0_i32 : i32, i32
  }
}

</mosaic_0001>

<llo_original>
// kernel: tpu_custom_call.1
$region0: #{tpu_custom_call.1}
  #allocation0 [shape = 'u32[]', space=smem, size = 0x4, offset = 0x4, fixed_abs, tag = 'smem constant byte address 0x4 - core index']
  #allocation1 [shape = 'u32[144,128]{1,0:T(1,128)}', space=vmem, size = 0x12000, scoped, tag = 'internal scratch']
  %s0 = inlined_call_operand.vmem [shape: f32[625,128], index: 0, kind: input, shape index: {}]
  %s1 = inlined_call_operand.hbm [shape: f32[625,128], index: 1, kind: input, shape index: {}]
  %s2 = inlined_call_operand.hbm [shape: f32[625,128], index: 2, kind: input, shape index: {}]
  %s3 = inlined_call_operand.vmem [shape: s32[625,4], index: 3, kind: input, shape index: {}]
  %s4 = inlined_call_operand.hbm [shape: f32[384,128], index: 4, kind: input, shape index: {}]
  %s5 = inlined_call_operand.vmem [shape: f32[4,4,128], index: 5, kind: input, shape index: {}]
  %s6 = inlined_call_operand.hbm [shape: f32[128,128], index: 6, kind: input, shape index: {}]
  %s7 = inlined_call_operand.vmem [shape: f32[1,128], index: 7, kind: input, shape index: {}]
  %s8 = inlined_call_operand.hbm [shape: f32[128,128], index: 8, kind: input, shape index: {}]
  %s9 = inlined_call_operand.vmem [shape: f32[1,128], index: 9, kind: input, shape index: {}]
  %s10 = inlined_call_operand.hbm [shape: f32[625,128], index: 10, kind: output, shape index: {}]
  %s11 = sld [smem:[#allocation0]]
  $region93: #{tpu_custom_call.1} parent=0
    _
  %s13 = ssub.s32 1, %s11
  %s14 = scalar_select 0, %s13, %s11
  $region1: #{tpu_custom_call.1} parent=0
    #allocation2 [shape = 'u8[327680]{0}', space=vmem, size = 0x50000, scoped, tag = 'input window, operand 1']
    #allocation3 [shape = 's32[2]{0}', space=sflag, size = 0x8, scoped, tag = 'scoped memory for tpu_custom_call.1']
    #allocation4 [shape = 's32[2]{0}', space=sflag, size = 0x8, scoped, tag = 'scoped memory for tpu_custom_call.1']
    #allocation5 [shape = 'u8[327680]{0}', space=vmem, size = 0x50000, scoped, tag = 'input window, operand 2']
    #allocation6 [shape = 's32[2]{0}', space=sflag, size = 0x8, scoped, tag = 'scoped memory for tpu_custom_call.1']
    #allocation7 [shape = 'u8[196608]{0}', space=vmem, size = 0x30000, scoped, tag = 'input window, operand 4, single buffered']
    #allocation8 [shape = 'u8[65536]{0}', space=vmem, size = 0x10000, scoped, tag = 'input window, operand 6, single buffered']
    #allocation9 [shape = 's32[1]{0}', space=sflag, size = 0x4, scoped, tag = 'scoped memory for tpu_custom_call.1']
    #allocation10 [shape = 'u8[65536]{0}', space=vmem, size = 0x10000, scoped, tag = 'input window, operand 8, single buffered']
    #allocation11 [shape = 'u8[327680]{0}', space=vmem, size = 0x50000, scoped, tag = 'output window, operand 0']
    %15 = vsyncpa [#allocation3], 0
    %s16 = scalar_lea.sflag [#allocation3], 1
    %17 = vsyncpa %s16, 0
    %18 = vsyncpa [#allocation6], 0
    %s19 = scalar_lea.sflag [#allocation6], 1
    %20 = vsyncpa %s19, 0
    %21 = vsyncpa [#allocation9], 0
    %22 = vsyncpa [#allocation4], 0
    %s23 = scalar_lea.sflag [#allocation4], 1
    %24 = vsyncpa %s23, 0
    loop: start=0, step=1, limit=4
    $region2: #{tpu_custom_call.1} parent=1 // loop_pre_header
      _
    $region3: #{tpu_custom_call.1} parent=1 // loop_header
      %s26 = sphi 0, %s30
      %p27 = scmp.ge.s32.totalorder %s26, 4
      %s36 = sphi 0, %s38
      %s39 = sphi 0, %s36
      %s40 = sphi 0, %s39
      %s56 = sphi 0, %s40
      %s62 = sphi 0, %s64
      %s65 = sphi 0, %s62
      %s66 = sphi 0, %s65
      %s82 = sphi 0, %s66
      %s88 = sphi 0, %s90
      %s91 = sphi 0, %s88
      %s92 = sphi 0, %s91
      %s108 = sphi 0, %s92
      %s114 = sphi 0, %s116
      %s117 = sphi 0, %s114
      %s118 = sphi 0, %s117
      %s134 = sphi 0, %s118
      %s138 = sphi 0, %s138
      %s140 = sphi 0, %s138
      %s141 = sphi 0, %s140
      %s155 = sphi 0, %s141
      %s159 = sphi 0, %s159
      %s161 = sphi 0, %s159
      %s162 = sphi 0, %s161
      %s176 = sphi 0, %s162
      %s180 = sphi 0, %s180
      %s182 = sphi 0, %s180
      %s183 = sphi 0, %s182
      %s197 = sphi 0, %s183
      %s201 = sphi 0, %s201
      %s203 = sphi 0, %s201
      %s204 = sphi 0, %s203
      %s218 = sphi 0, %s204
      %s222 = sphi 0, %s222
      %s224 = sphi 0, %s222
      %s225 = sphi 0, %s224
      %s239 = sphi 0, %s225
      %s243 = sphi 0, %s243
      %s245 = sphi 0, %s243
      %s246 = sphi 0, %s245
      %s260 = sphi 0, %s246
      %s266 = sphi 0, %s268
      %s269 = sphi 0, %s266
      %s270 = sphi 0, %s269
      %s286 = sphi 0, %s270
    $region4: #{tpu_custom_call.1} parent=1 // loop_header_branch
      %29 = sbr.rel (%p27) target = $region8
    $region5: #{tpu_custom_call.1} parent=1 // loop_body
      %s31 = ssub.s32 %s26, 1
      %s32 = ssub.s32 %s26, 2
      %s33 = sadd.s32 %s26, 1
      %s34 = ssub.s32 %s26, %s33
      %p35 = scmp.eq.s32.totalorder %s34, 0
      %s37 = sadd.s32 %s36, 1
      %s38 = scalar_select %p35, %s36, %s37
      %p41 = pneg %p35
      %p42 = scmp.eq.s32.totalorder %s26, 1
      %p43 = por %p41, %p42
      %p44 = scmp.ne.s32.totalorder %s36, %s39
      %p45 = scmp.eq.s32.totalorder %s26, 0
      %p46 = por %p44, %p45
      %p47 = scmp.ne.s32.totalorder %s36, %s39
      %p48 = scmp.eq.s32.totalorder %s31, 1
      %p49 = por %p47, %p48
      %p50 = scmp.ne.s32.totalorder %s39, %s40
      %p51 = scmp.eq.s32.totalorder %s31, 0
      %p52 = por %p50, %p51
      %p53 = scmp.ne.s32.totalorder %s39, %s40
      %p54 = scmp.eq.s32.totalorder %s32, 1
      %p55 = por %p53, %p54
      %p57 = scmp.ne.s32.totalorder %s40, %s56
      %p58 = scmp.eq.s32.totalorder %s32, 0
      %p59 = por %p57, %p58
      %s60 = ssub.s32 %s26, %s33
      %p61 = scmp.eq.s32.totalorder %s60, 0
      %s63 = sadd.s32 %s62, 1
      %s64 = scalar_select %p61, %s62, %s63
      %p67 = pneg %p61
      %p68 = scmp.eq.s32.totalorder %s26, 1
      %p69 = por %p67, %p68
      %p70 = scmp.ne.s32.totalorder %s62, %s65
      %p71 = scmp.eq.s32.totalorder %s26, 0
      %p72 = por %p70, %p71
      %p73 = scmp.ne.s32.totalorder %s62, %s65
      %p74 = scmp.eq.s32.totalorder %s31, 1
      %p75 = por %p73, %p74
      %p76 = scmp.ne.s32.totalorder %s65, %s66
      %p77 = scmp.eq.s32.totalorder %s31, 0
      %p78 = por %p76, %p77
      %p79 = scmp.ne.s32.totalorder %s65, %s66
      %p80 = scmp.eq.s32.totalorder %s32, 1
      %p81 = por %p79, %p80
      %p83 = scmp.ne.s32.totalorder %s66, %s82
      %p84 = scmp.eq.s32.totalorder %s32, 0
      %p85 = por %p83, %p84
      %s86 = ssub.s32 %s26, %s33
      %p87 = scmp.eq.s32.totalorder %s86, 0
      %s89 = sadd.s32 %s88, 1
      %s90 = scalar_select %p87, %s88, %s89
      %p93 = pneg %p87
      %p94 = scmp.eq.s32.totalorder %s26, 1
      %p95 = por %p93, %p94
      %p96 = scmp.ne.s32.totalorder %s88, %s91
      %p97 = scmp.eq.s32.totalorder %s26, 0
      %p98 = por %p96, %p97
      %p99 = scmp.ne.s32.totalorder %s88, %s91
      %p100 = scmp.eq.s32.totalorder %s31, 1
      %p101 = por %p99, %p100
      %p102 = scmp.ne.s32.totalorder %s91, %s92
      %p103 = scmp.eq.s32.totalorder %s31, 0
      %p104 = por %p102, %p103
      %p105 = scmp.ne.s32.totalorder %s91, %s92
      %p106 = scmp.eq.s32.totalorder %s32, 1
      %p107 = por %p105, %p106
      %p109 = scmp.ne.s32.totalorder %s92, %s108
      %p110 = scmp.eq.s32.totalorder %s32, 0
      %p111 = por %p109, %p110
      %s112 = ssub.s32 %s26, %s33
      %p113 = scmp.eq.s32.totalorder %s112, 0
      %s115 = sadd.s32 %s114, 1
      %s116 = scalar_select %p113, %s114, %s115
      %p119 = pneg %p113
      %p120 = scmp.eq.s32.totalorder %s26, 1
      %p121 = por %p119, %p120
      %p122 = scmp.ne.s32.totalorder %s114, %s117
      %p123 = scmp.eq.s32.totalorder %s26, 0
      %p124 = por %p122, %p123
      %p125 = scmp.ne.s32.totalorder %s114, %s117
      %p126 = scmp.eq.s32.totalorder %s31, 1
      %p127 = por %p125, %p126
      %p128 = scmp.ne.s32.totalorder %s117, %s118
      %p129 = scmp.eq.s32.totalorder %s31, 0
      %p130 = por %p128, %p129
      %p131 = scmp.ne.s32.totalorder %s117, %s118
      %p132 = scmp.eq.s32.totalorder %s32, 1
      %p133 = por %p131, %p132
      %p135 = scmp.ne.s32.totalorder %s118, %s134
      %p136 = scmp.eq.s32.totalorder %s32, 0
      %p137 = por %p135, %p136
      %s139 = sadd.s32 %s138, 1
      %p142 = scmp.eq.s32.totalorder %s26, 1
      %p143 = scmp.ne.s32.totalorder %s138, %s140
      %p144 = scmp.eq.s32.totalorder %s26, 0
      %p145 = por %p143, %p144
      %p146 = scmp.ne.s32.totalorder %s138, %s140
      %p147 = scmp.eq.s32.totalorder %s31, 1
      %p148 = por %p146, %p147
      %p149 = scmp.ne.s32.totalorder %s140, %s141
      %p150 = scmp.eq.s32.totalorder %s31, 0
      %p151 = por %p149, %p150
      %p152 = scmp.ne.s32.totalorder %s140, %s141
      %p153 = scmp.eq.s32.totalorder %s32, 1
      %p154 = por %p152, %p153
      %p156 = scmp.ne.s32.totalorder %s141, %s155
      %p157 = scmp.eq.s32.totalorder %s32, 0
      %p158 = por %p156, %p157
      %s160 = sadd.s32 %s159, 1
      %p163 = scmp.eq.s32.totalorder %s26, 1
      %p164 = scmp.ne.s32.totalorder %s159, %s161
      %p165 = scmp.eq.s32.totalorder %s26, 0
      %p166 = por %p164, %p165
      %p167 = scmp.ne.s32.totalorder %s159, %s161
      %p168 = scmp.eq.s32.totalorder %s31, 1
      %p169 = por %p167, %p168
      %p170 = scmp.ne.s32.totalorder %s161, %s162
      %p171 = scmp.eq.s32.totalorder %s31, 0
      %p172 = por %p170, %p171
      %p173 = scmp.ne.s32.totalorder %s161, %s162
      %p174 = scmp.eq.s32.totalorder %s32, 1
      %p175 = por %p173, %p174
      %p177 = scmp.ne.s32.totalorder %s162, %s176
      %p178 = scmp.eq.s32.totalorder %s32, 0
      %p179 = por %p177, %p178
      %s181 = sadd.s32 %s180, 1
      %p184 = scmp.eq.s32.totalorder %s26, 1
      %p185 = scmp.ne.s32.totalorder %s180, %s182
      %p186 = scmp.eq.s32.totalorder %s26, 0
      %p187 = por %p185, %p186
      %p188 = scmp.ne.s32.totalorder %s180, %s182
      %p189 = scmp.eq.s32.totalorder %s31, 1
      %p190 = por %p188, %p189
      %p191 = scmp.ne.s32.totalorder %s182, %s183
      %p192 = scmp.eq.s32.totalorder %s31, 0
      %p193 = por %p191, %p192
      %p194 = scmp.ne.s32.totalorder %s182, %s183
      %p195 = scmp.eq.s32.totalorder %s32, 1
      %p196 = por %p194, %p195
      %p198 = scmp.ne.s32.totalorder %s183, %s197
      %p199 = scmp.eq.s32.totalorder %s32, 0
      %p200 = por %p198, %p199
      %s202 = sadd.s32 %s201, 1
      %p205 = scmp.eq.s32.totalorder %s26, 1
      %p206 = scmp.ne.s32.totalorder %s201, %s203
      %p207 = scmp.eq.s32.totalorder %s26, 0
      %p208 = por %p206, %p207
      %p209 = scmp.ne.s32.totalorder %s201, %s203
      %p210 = scmp.eq.s32.totalorder %s31, 1
      %p211 = por %p209, %p210
      %p212 = scmp.ne.s32.totalorder %s203, %s204
      %p213 = scmp.eq.s32.totalorder %s31, 0
      %p214 = por %p212, %p213
      %p215 = scmp.ne.s32.totalorder %s203, %s204
      %p216 = scmp.eq.s32.totalorder %s32, 1
      %p217 = por %p215, %p216
      %p219 = scmp.ne.s32.totalorder %s204, %s218
      %p220 = scmp.eq.s32.totalorder %s32, 0
      %p221 = por %p219, %p220
      %s223 = sadd.s32 %s222, 1
      %p226 = scmp.eq.s32.totalorder %s26, 1
      %p227 = scmp.ne.s32.totalorder %s222, %s224
      %p228 = scmp.eq.s32.totalorder %s26, 0
      %p229 = por %p227, %p228
      %p230 = scmp.ne.s32.totalorder %s222, %s224
      %p231 = scmp.eq.s32.totalorder %s31, 1
      %p232 = por %p230, %p231
      %p233 = scmp.ne.s32.totalorder %s224, %s225
      %p234 = scmp.eq.s32.totalorder %s31, 0
      %p235 = por %p233, %p234
      %p236 = scmp.ne.s32.totalorder %s224, %s225
      %p237 = scmp.eq.s32.totalorder %s32, 1
      %p238 = por %p236, %p237
      %p240 = scmp.ne.s32.totalorder %s225, %s239
      %p241 = scmp.eq.s32.totalorder %s32, 0
      %p242 = por %p240, %p241
      %s244 = sadd.s32 %s243, 1
      %p247 = scmp.eq.s32.totalorder %s26, 1
      %p248 = scmp.ne.s32.totalorder %s243, %s245
      %p249 = scmp.eq.s32.totalorder %s26, 0
      %p250 = por %p248, %p249
      %p251 = scmp.ne.s32.totalorder %s243, %s245
      %p252 = scmp.eq.s32.totalorder %s31, 1
      %p253 = por %p251, %p252
      %p254 = scmp.ne.s32.totalorder %s245, %s246
      %p255 = scmp.eq.s32.totalorder %s31, 0
      %p256 = por %p254, %p255
      %p257 = scmp.ne.s32.totalorder %s245, %s246
      %p258 = scmp.eq.s32.totalorder %s32, 1
      %p259 = por %p257, %p258
      %p261 = scmp.ne.s32.totalorder %s246, %s260
      %p262 = scmp.eq.s32.totalorder %s32, 0
      %p263 = por %p261, %p262
      %s264 = ssub.s32 %s26, %s33
      %p265 = scmp.eq.s32.totalorder %s264, 0
      %s267 = sadd.s32 %s266, 1
      %s268 = scalar_select %p265, %s266, %s267
      %p271 = pneg %p265
      %p272 = scmp.eq.s32.totalorder %s26, 1
      %p273 = por %p271, %p272
      %p274 = scmp.ne.s32.totalorder %s266, %s269
      %p275 = scmp.eq.s32.totalorder %s26, 0
      %p276 = por %p274, %p275
      %p277 = scmp.ne.s32.totalorder %s266, %s269
      %p278 = scmp.eq.s32.totalorder %s31, 1
      %p279 = por %p277, %p278
      %p280 = scmp.ne.s32.totalorder %s269, %s270
      %p281 = scmp.eq.s32.totalorder %s31, 0
      %p282 = por %p280, %p281
      %p283 = scmp.ne.s32.totalorder %s269, %s270
      %p284 = scmp.eq.s32.totalorder %s32, 1
      %p285 = por %p283, %p284
      %p287 = scmp.ne.s32.totalorder %s270, %s286
      %p288 = scmp.eq.s32.totalorder %s32, 0
      %p289 = por %p287, %p288
      %p290 = scmp.le.s32.totalorder 1, %s26
      %p291 = scmp.lt.s32.totalorder %s26, 3
      %p292 = pnand %p290, %p291
      %p293 = pneg %p292
      // Predicated region
      $region9: #{tpu_custom_call.1} parent=5 // pred_check
        _
      $region10: #{tpu_custom_call.1} parent=5 // pred_check_branch
        %295 = sbr.rel (%p292) target = $region12
      $region11: #{tpu_custom_call.1} parent=5 // pred_region
        %s296 = ssub.s32 %s26, 1
        // Predicated region
        $region13: #{tpu_custom_call.1} parent=11 // pred_check
          %p297 = pneg %p151
        $region14: #{tpu_custom_call.1} parent=11 // pred_check_branch
          %299 = sbr.rel (%p297) target = $region16
        $region15: #{tpu_custom_call.1} parent=11 // pred_region
          %s301 = ssub.s32 6144, 6144
          %302 = vsyncadd [#allocation6], %s301
          %s303 = sshll.u32 [#allocation7], 4
          %s304 = int_to_ptr.vmem [resolvable:$true] %s303
          %309 = dma.hbm_to_vmem [thread:$0]  %s4, 6144, %s304, [#allocation6], 128, 128, 8
        $region16: #{tpu_custom_call.1} parent=11 // pred_fallthru
          _
        // Predicated region
        $region17: #{tpu_custom_call.1} parent=11 // pred_check
          %p310 = pneg %p172
        $region18: #{tpu_custom_call.1} parent=11 // pred_check_branch
          %312 = sbr.rel (%p310) target = $region20
        $region19: #{tpu_custom_call.1} parent=11 // pred_region
          _
        $region20: #{tpu_custom_call.1} parent=11 // pred_fallthru
          _
        // Predicated region
        $region21: #{tpu_custom_call.1} parent=11 // pred_check
          %p313 = pneg %p193
        $region22: #{tpu_custom_call.1} parent=11 // pred_check_branch
          %315 = sbr.rel (%p313) target = $region24
        $region23: #{tpu_custom_call.1} parent=11 // pred_region
          %s317 = ssub.s32 2048, 2048
          %318 = vsyncadd [#allocation9], %s317
          %s319 = sshll.u32 [#allocation8], 4
          %s320 = int_to_ptr.vmem [resolvable:$true] %s319
          %325 = dma.hbm_to_vmem [thread:$0]  %s6, 2048, %s320, [#allocation9], 128, 128, 8
        $region24: #{tpu_custom_call.1} parent=11 // pred_fallthru
          _
        // Predicated region
        $region25: #{tpu_custom_call.1} parent=11 // pred_check
          %p326 = pneg %p214
        $region26: #{tpu_custom_call.1} parent=11 // pred_check_branch
          %328 = sbr.rel (%p326) target = $region28
        $region27: #{tpu_custom_call.1} parent=11 // pred_region
          _
        $region28: #{tpu_custom_call.1} parent=11 // pred_fallthru
          _
        // Predicated region
        $region29: #{tpu_custom_call.1} parent=11 // pred_check
          %p329 = pneg %p235
        $region30: #{tpu_custom_call.1} parent=11 // pred_check_branch
          %331 = sbr.rel (%p329) target = $region32
        $region31: #{tpu_custom_call.1} parent=11 // pred_region
          %s333 = ssub.s32 2048, 2048
          %334 = vsyncadd [#allocation9], %s333
          %s335 = sshll.u32 [#allocation10], 4
          %s336 = int_to_ptr.vmem [resolvable:$true] %s335
          %341 = dma.hbm_to_vmem [thread:$0]  %s8, 2048, %s336, [#allocation9], 128, 128, 8
        $region32: #{tpu_custom_call.1} parent=11 // pred_fallthru
          _
        // Predicated region
        $region33: #{tpu_custom_call.1} parent=11 // pred_check
          %p342 = pneg %p256
        $region34: #{tpu_custom_call.1} parent=11 // pred_check_branch
          %344 = sbr.rel (%p342) target = $region36
        $region35: #{tpu_custom_call.1} parent=11 // pred_region
          _
        $region36: #{tpu_custom_call.1} parent=11 // pred_fallthru
          _
      $region12: #{tpu_custom_call.1} parent=5 // pred_fallthru
        _
      %p345 = scmp.lt.s32.totalorder %s26, 2
      // Predicated region
      $region37: #{tpu_custom_call.1} parent=5 // pred_check
        %p346 = pneg %p345
      $region38: #{tpu_custom_call.1} parent=5 // pred_check_branch
        %348 = sbr.rel (%p346) target = $region40
      $region39: #{tpu_custom_call.1} parent=5 // pred_region
        // Predicated region
        $region41: #{tpu_custom_call.1} parent=39 // pred_check
          %p349 = pneg %p46
        $region42: #{tpu_custom_call.1} parent=39 // pred_check_branch
          %351 = sbr.rel (%p349) target = $region44
        $region43: #{tpu_custom_call.1} parent=39 // pred_region
          %s352 = smul.u32 40, %s26
          %s353 = ssub.s32 79, %s352
          %p354 = scmp.lt.s32.totalorder %s353, 40
          %s355 = scalar_select %p354, %s353, 40
          %s356 = smul.u32 128, %s355
          %p357 = scmp.lt.s32.totalorder %s352, 78
          %s358 = scalar_select %p357, %s352, 78
          %s359 = smul.addr %s358, 8
          %s360 = scalar_lea.vmem %s0, %s359
          %s361 = smul.u32 40, %s26
          %s362 = ssub.s32 79, %s361
          %p363 = scmp.lt.s32.totalorder %s362, 40
          %s364 = scalar_select %p363, %s362, 40
          %s365 = smul.u32 128, %s364
        $region44: #{tpu_custom_call.1} parent=39 // pred_fallthru
          _
        // Predicated region
        $region45: #{tpu_custom_call.1} parent=39 // pred_check
          %p366 = pneg %p72
        $region46: #{tpu_custom_call.1} parent=39 // pred_check_branch
          %368 = sbr.rel (%p366) target = $region48
        $region47: #{tpu_custom_call.1} parent=39 // pred_region
          %s369 = sand.u32 %s62, 1
          %s370 = scalar_lea.sflag [#allocation3], %s369
          %s371 = sand.u32 %s62, 1
          %s372 = smul.addr %s371, 320
          %s373 = scalar_lea.vmem [#allocation2], %s372
          %s374 = smul.u32 40, %s26
          %s375 = ssub.s32 79, %s374
          %p376 = scmp.lt.s32.totalorder %s375, 40
          %s377 = scalar_select %p376, %s375, 40
          %s378 = smul.u32 128, %s377
          %s380 = ssub.s32 5120, %s378
          %381 = vsyncadd %s370, %s380
          %p382 = scmp.ne.s32.totalorder 0, %s378
          %s383 = smul.addr %s374, 128
          %s384 = scalar_lea.hbm %s1, %s383
          %s385 = smul.u32 8, %s377
          %s386 = sshll.u32 %s373, 4
          %s387 = int_to_ptr.vmem [resolvable:$true] %s386
          %s388 = sshll.u32 %s385, 4
          %392 = dma.hbm_to_vmem [thread:$0]  (%p382), %s384, %s388, %s387, %s370, 128, 128, 8
        $region48: #{tpu_custom_call.1} parent=39 // pred_fallthru
          _
        // Predicated region
        $region49: #{tpu_custom_call.1} parent=39 // pred_check
          %p393 = pneg %p98
        $region50: #{tpu_custom_call.1} parent=39 // pred_check_branch
          %395 = sbr.rel (%p393) target = $region52
        $region51: #{tpu_custom_call.1} parent=39 // pred_region
          %s396 = sand.u32 %s26, 1
          %s397 = scalar_lea.sflag [#allocation6], %s396
          %s398 = sand.u32 %s88, 1
          %s399 = smul.addr %s398, 320
          %s400 = scalar_lea.vmem [#allocation5], %s399
          %s401 = smul.u32 40, %s26
          %s402 = ssub.s32 79, %s401
          %p403 = scmp.lt.s32.totalorder %s402, 40
          %s404 = scalar_select %p403, %s402, 40
          %s405 = smul.u32 128, %s404
          %s407 = ssub.s32 5120, %s405
          %408 = vsyncadd %s397, %s407
          %p409 = scmp.ne.s32.totalorder 0, %s405
          %s410 = smul.addr %s401, 128
          %s411 = scalar_lea.hbm %s2, %s410
          %s412 = smul.u32 8, %s404
          %s413 = sshll.u32 %s400, 4
          %s414 = int_to_ptr.vmem [resolvable:$true] %s413
          %s415 = sshll.u32 %s412, 4
          %419 = dma.hbm_to_vmem [thread:$0]  (%p409), %s411, %s415, %s414, %s397, 128, 128, 8
        $region52: #{tpu_custom_call.1} parent=39 // pred_fallthru
          _
        // Predicated region
        $region53: #{tpu_custom_call.1} parent=39 // pred_check
          %p420 = pneg %p124
        $region54: #{tpu_custom_call.1} parent=39 // pred_check_branch
          %422 = sbr.rel (%p420) target = $region56
        $region55: #{tpu_custom_call.1} parent=39 // pred_region
          %s423 = smul.u32 40, %s26
          %s424 = ssub.s32 79, %s423
          %p425 = scmp.lt.s32.totalorder %s424, 40
          %s426 = scalar_select %p425, %s424, 40
          %s427 = smul.u32 128, %s426
          %p428 = scmp.lt.s32.totalorder %s423, 78
          %s429 = scalar_select %p428, %s423, 78
          %s430 = smul.addr %s429, 8
          %s431 = scalar_lea.vmem %s3, %s430
          %s432 = smul.u32 40, %s26
          %s433 = ssub.s32 79, %s432
          %p434 = scmp.lt.s32.totalorder %s433, 40
          %s435 = scalar_select %p434, %s433, 40
          %s436 = smul.u32 128, %s435
        $region56: #{tpu_custom_call.1} parent=39 // pred_fallthru
          _
      $region40: #{tpu_custom_call.1} parent=5 // pred_fallthru
        _
      %p437 = scmp.le.s32.totalorder 1, %s26
      %p438 = scmp.lt.s32.totalorder %s26, 3
      %p439 = pnand %p437, %p438
      %p440 = pneg %p439
      // Predicated region
      $region57: #{tpu_custom_call.1} parent=5 // pred_check
        _
      $region58: #{tpu_custom_call.1} parent=5 // pred_check_branch
        %442 = sbr.rel (%p439) target = $region60
      $region59: #{tpu_custom_call.1} parent=5 // pred_region
        %s443 = ssub.s32 %s26, 1
        %s444 = sand.u32 %s65, 1
        %s445 = scalar_lea.sflag [#allocation3], %s444
        %s446 = sand.u32 %s65, 1
        %s447 = smul.addr %s446, 320
        %s448 = scalar_lea.vmem [#allocation2], %s447
        // Predicated region
        $region61: #{tpu_custom_call.1} parent=59 // pred_check
          %p449 = pneg %p78
        $region62: #{tpu_custom_call.1} parent=59 // pred_check_branch
          %451 = sbr.rel (%p449) target = $region64
        $region63: #{tpu_custom_call.1} parent=59 // pred_region
          %452 = dma.done %s445, 5120
        $region64: #{tpu_custom_call.1} parent=59 // pred_fallthru
          _
        %s453 = sand.u32 %s31, 1
        %s454 = scalar_lea.sflag [#allocation6], %s453
        %s455 = sand.u32 %s91, 1
        %s456 = smul.addr %s455, 320
        %s457 = scalar_lea.vmem [#allocation5], %s456
        // Predicated region
        $region65: #{tpu_custom_call.1} parent=59 // pred_check
          %p458 = pneg %p104
        $region66: #{tpu_custom_call.1} parent=59 // pred_check_branch
          %460 = sbr.rel (%p458) target = $region68
        $region67: #{tpu_custom_call.1} parent=59 // pred_region
          %461 = dma.done %s454, 5120
        $region68: #{tpu_custom_call.1} parent=59 // pred_fallthru
          _
        // Predicated region
        $region69: #{tpu_custom_call.1} parent=59 // pred_check
          %p462 = pneg %p151
        $region70: #{tpu_custom_call.1} parent=59 // pred_check_branch
          %464 = sbr.rel (%p462) target = $region72
        $region71: #{tpu_custom_call.1} parent=59 // pred_region
          %465 = dma.done [#allocation6], 6144
        $region72: #{tpu_custom_call.1} parent=59 // pred_fallthru
          _
        // Predicated region
        $region73: #{tpu_custom_call.1} parent=59 // pred_check
          %p466 = pneg %p193
        $region74: #{tpu_custom_call.1} parent=59 // pred_check_branch
          %468 = sbr.rel (%p466) target = $region76
        $region75: #{tpu_custom_call.1} parent=59 // pred_region
          %469 = dma.done [#allocation9], 2048
        $region76: #{tpu_custom_call.1} parent=59 // pred_fallthru
          _
        // Predicated region
        $region77: #{tpu_custom_call.1} parent=59 // pred_check
          %p470 = pneg %p235
        $region78: #{tpu_custom_call.1} parent=59 // pred_check_branch
          %472 = sbr.rel (%p470) target = $region80
        $region79: #{tpu_custom_call.1} parent=59 // pred_region
          %473 = dma.done [#allocation9], 2048
        $region80: #{tpu_custom_call.1} parent=59 // pred_fallthru
          _
        %s474 = smul.u32 40, %s31
        %s475 = ssub.s32 79, %s474
        %p476 = scmp.lt.s32.totalorder %s475, 40
        %s477 = scalar_select %p476, %s475, 40
        %s478 = smul.u32 128, %s477
        %p479 = scmp.lt.s32.totalorder %s474, 78
        %s480 = scalar_select %p479, %s474, 78
        %s481 = smul.addr %s480, 8
        %s482 = scalar_lea.vmem %s0, %s481
        %p483 = pneg %p52
        %p484 = pneg %p49
        %s485 = sand.u32 %s65, 1
        %s486 = scalar_lea.sflag [#allocation3], %s485
        %s487 = sand.u32 %s65, 1
        %s488 = smul.addr %s487, 320
        %s489 = scalar_lea.vmem [#allocation2], %s488
        %p490 = pneg %p78
        %p491 = pneg %p75
        %s492 = sand.u32 %s31, 1
        %s493 = scalar_lea.sflag [#allocation6], %s492
        %s494 = sand.u32 %s91, 1
        %s495 = smul.addr %s494, 320
        %s496 = scalar_lea.vmem [#allocation5], %s495
        %p497 = pneg %p104
        %p498 = pneg %p101
        %s499 = smul.u32 40, %s31
        %s500 = ssub.s32 79, %s499
        %p501 = scmp.lt.s32.totalorder %s500, 40
        %s502 = scalar_select %p501, %s500, 40
        %s503 = smul.u32 128, %s502
        %p504 = scmp.lt.s32.totalorder %s499, 78
        %s505 = scalar_select %p504, %s499, 78
        %s506 = smul.addr %s505, 8
        %s507 = scalar_lea.vmem %s3, %s506
        %p508 = pneg %p130
        %p509 = pneg %p127
        %p510 = pneg %p151
        %p511 = pneg %p148
        %p512 = pneg %p172
        %p513 = pneg %p169
        %p514 = pneg %p193
        %p515 = pneg %p190
        %p516 = pneg %p214
        %p517 = pneg %p211
        %p518 = pneg %p235
        %p519 = pneg %p232
        %p520 = pneg %p256
        %p521 = pneg %p253
        %p522 = pneg %p282
        %p523 = pneg %p279
        %s524 = sand.u32 %s269, 1
        %s525 = scalar_lea.sflag [#allocation4], %s524
        %s526 = sand.u32 %s269, 1
        %s527 = smul.addr %s526, 320
        %s528 = scalar_lea.vmem [#allocation11], %s527
        %s529 = smul.u32 40, %s31
        %s530 = ssub.s32 79, %s529
        %p531 = scmp.lt.s32.totalorder %s530, 40
        %s532 = scalar_select %p531, %s530, 40
        %s533 = smul.u32 128, %s532
        %p534 = scmp.lt.s32.totalorder %s529, 78
        %s535 = scalar_select %p534, %s529, 78
        %s536 = smul.addr %s535, 8
        %s537 = scalar_lea.vmem %s0, %s536
        %s538 = smul.u32 40, %s31
        %s539 = ssub.s32 79, %s538
        %p540 = scmp.lt.s32.totalorder %s539, 40
        %s541 = scalar_select %p540, %s539, 40
        %s542 = smul.u32 128, %s541
        %s543 = smul.u32 40, %s31
        %s544 = ssub.s32 79, %s543
        %p545 = scmp.lt.s32.totalorder %s544, 40
        %s546 = scalar_select %p545, %s544, 40
        %s547 = smul.u32 128, %s546
        %s548 = smul.u32 40, %s31
        %s549 = ssub.s32 79, %s548
        %p550 = scmp.lt.s32.totalorder %s549, 40
        %s551 = scalar_select %p550, %s549, 40
        %s552 = smul.u32 128, %s551
        %s553 = smul.u32 40, %s31
        %s554 = ssub.s32 79, %s553
        %p555 = scmp.lt.s32.totalorder %s554, 40
        %s556 = scalar_select %p555, %s554, 40
        %s557 = smul.u32 128, %s556
        %p558 = scmp.lt.s32.totalorder %s553, 78
        %s559 = scalar_select %p558, %s553, 78
        %s560 = smul.addr %s559, 8
        %s561 = scalar_lea.vmem %s3, %s560
        %s562 = smul.u32 40, %s31
        %s563 = ssub.s32 79, %s562
        %p564 = scmp.lt.s32.totalorder %s563, 40
        %s565 = scalar_select %p564, %s563, 40
        %s566 = smul.u32 128, %s565
        %s567 = smul.u32 40, %s31
        %s568 = ssub.s32 79, %s567
        %p569 = scmp.lt.s32.totalorder %s568, 40
        %s570 = scalar_select %p569, %s568, 40
        %s571 = smul.u32 128, %s570
        %v572 = vld [vmem:[%s537] sm:$0xff]
        %v573 = vld [vmem:[%s537 + $0x8] sm:$0xff]
        %v574 = vld [vmem:[%s537 + $0x10] sm:$0xff]
        %v575 = vld [vmem:[%s537 + $0x18] sm:$0xff]
        %v576 = vld [vmem:[%s537 + $0x20] sm:$0xff]
        %v577 = vld [vmem:[%s537 + $0x28] sm:$0xff]
        %v578 = vld [vmem:[%s537 + $0x30] sm:$0xff]
        %v579 = vld [vmem:[%s537 + $0x38] sm:$0xff]
        %v580 = vld [vmem:[%s537 + $0x40] sm:$0xff]
        %v581 = vld [vmem:[%s537 + $0x48] sm:$0xff]
        %v582 = vld [vmem:[%s537 + $0x50] sm:$0xff]
        %v583 = vld [vmem:[%s537 + $0x58] sm:$0xff]
        %v584 = vld [vmem:[%s537 + $0x60] sm:$0xff]
        %v585 = vld [vmem:[%s537 + $0x68] sm:$0xff]
        %v586 = vld [vmem:[%s537 + $0x70] sm:$0xff]
        %v587 = vld [vmem:[%s537 + $0x78] sm:$0xff]
        %v588 = vld [vmem:[%s537 + $0x80] sm:$0xff]
        %v589 = vld [vmem:[%s537 + $0x88] sm:$0xff]
        %v590 = vld [vmem:[%s537 + $0x90] sm:$0xff]
        %v591 = vld [vmem:[%s537 + $0x98] sm:$0xff]
        %v592 = vld [vmem:[%s537 + $0xa0] sm:$0xff]
        %v593 = vld [vmem:[%s537 + $0xa8] sm:$0xff]
        %v594 = vld [vmem:[%s537 + $0xb0] sm:$0xff]
        %v595 = vld [vmem:[%s537 + $0xb8] sm:$0xff]
        %v596 = vld [vmem:[%s537 + $0xc0] sm:$0xff]
        %v597 = vld [vmem:[%s537 + $0xc8] sm:$0xff]
        %v598 = vld [vmem:[%s537 + $0xd0] sm:$0xff]
        %v599 = vld [vmem:[%s537 + $0xd8] sm:$0xff]
        %v600 = vld [vmem:[%s537 + $0xe0] sm:$0xff]
        %v601 = vld [vmem:[%s537 + $0xe8] sm:$0xff]
        %v602 = vld [vmem:[%s537 + $0xf0] sm:$0xff]
        %v603 = vld [vmem:[%s537 + $0xf8] sm:$0xff]
        %v604 = vld [vmem:[%s537 + $0x100] sm:$0xff]
        %v605 = vld [vmem:[%s537 + $0x108] sm:$0xff]
        %v606 = vld [vmem:[%s537 + $0x110] sm:$0xff]
        %v607 = vld [vmem:[%s537 + $0x118] sm:$0xff]
        %v608 = vld [vmem:[%s537 + $0x120] sm:$0xff]
        %v609 = vld [vmem:[%s537 + $0x128] sm:$0xff]
        %v610 = vld [vmem:[%s537 + $0x130] sm:$0xff]
        %v611 = vld [vmem:[%s537 + $0x138] sm:$0xff]
        %v612 = vld [vmem:[%s448] sm:$0xff]
        %v613 = vld [vmem:[%s448 + $0x8] sm:$0xff]
        %v614 = vld [vmem:[%s448 + $0x10] sm:$0xff]
        %v615 = vld [vmem:[%s448 + $0x18] sm:$0xff]
        %v616 = vld [vmem:[%s448 + $0x20] sm:$0xff]
        %v617 = vld [vmem:[%s448 + $0x28] sm:$0xff]
        %v618 = vld [vmem:[%s448 + $0x30] sm:$0xff]
        %v619 = vld [vmem:[%s448 + $0x38] sm:$0xff]
        %v620 = vld [vmem:[%s448 + $0x40] sm:$0xff]
        %v621 = vld [vmem:[%s448 + $0x48] sm:$0xff]
        %v622 = vld [vmem:[%s448 + $0x50] sm:$0xff]
        %v623 = vld [vmem:[%s448 + $0x58] sm:$0xff]
        %v624 = vld [vmem:[%s448 + $0x60] sm:$0xff]
        %v625 = vld [vmem:[%s448 + $0x68] sm:$0xff]
        %v626 = vld [vmem:[%s448 + $0x70] sm:$0xff]
        %v627 = vld [vmem:[%s448 + $0x78] sm:$0xff]
        %v628 = vld [vmem:[%s448 + $0x80] sm:$0xff]
        %v629 = vld [vmem:[%s448 + $0x88] sm:$0xff]
        %v630 = vld [vmem:[%s448 + $0x90] sm:$0xff]
        %v631 = vld [vmem:[%s448 + $0x98] sm:$0xff]
        %v632 = vld [vmem:[%s448 + $0xa0] sm:$0xff]
        %v633 = vld [vmem:[%s448 + $0xa8] sm:$0xff]
        %v634 = vld [vmem:[%s448 + $0xb0] sm:$0xff]
        %v635 = vld [vmem:[%s448 + $0xb8] sm:$0xff]
        %v636 = vld [vmem:[%s448 + $0xc0] sm:$0xff]
        %v637 = vld [vmem:[%s448 + $0xc8] sm:$0xff]
        %v638 = vld [vmem:[%s448 + $0xd0] sm:$0xff]
        %v639 = vld [vmem:[%s448 + $0xd8] sm:$0xff]
        %v640 = vld [vmem:[%s448 + $0xe0] sm:$0xff]
        %v641 = vld [vmem:[%s448 + $0xe8] sm:$0xff]
        %v642 = vld [vmem:[%s448 + $0xf0] sm:$0xff]
        %v643 = vld [vmem:[%s448 + $0xf8] sm:$0xff]
        %v644 = vld [vmem:[%s448 + $0x100] sm:$0xff]
        %v645 = vld [vmem:[%s448 + $0x108] sm:$0xff]
        %v646 = vld [vmem:[%s448 + $0x110] sm:$0xff]
        %v647 = vld [vmem:[%s448 + $0x118] sm:$0xff]
        %v648 = vld [vmem:[%s448 + $0x120] sm:$0xff]
        %v649 = vld [vmem:[%s448 + $0x128] sm:$0xff]
        %v650 = vld [vmem:[%s448 + $0x130] sm:$0xff]
        %v651 = vld [vmem:[%s448 + $0x138] sm:$0xff]
        %v652 = vld [vmem:[%s457] sm:$0xff]
        %v653 = vld [vmem:[%s457 + $0x8] sm:$0xff]
        %v654 = vld [vmem:[%s457 + $0x10] sm:$0xff]
        %v655 = vld [vmem:[%s457 + $0x18] sm:$0xff]
        %v656 = vld [vmem:[%s457 + $0x20] sm:$0xff]
        %v657 = vld [vmem:[%s457 + $0x28] sm:$0xff]
        %v658 = vld [vmem:[%s457 + $0x30] sm:$0xff]
        %v659 = vld [vmem:[%s457 + $0x38] sm:$0xff]
        %v660 = vld [vmem:[%s457 + $0x40] sm:$0xff]
        %v661 = vld [vmem:[%s457 + $0x48] sm:$0xff]
        %v662 = vld [vmem:[%s457 + $0x50] sm:$0xff]
        %v663 = vld [vmem:[%s457 + $0x58] sm:$0xff]
        %v664 = vld [vmem:[%s457 + $0x60] sm:$0xff]
        %v665 = vld [vmem:[%s457 + $0x68] sm:$0xff]
        %v666 = vld [vmem:[%s457 + $0x70] sm:$0xff]
        %v667 = vld [vmem:[%s457 + $0x78] sm:$0xff]
        %v668 = vld [vmem:[%s457 + $0x80] sm:$0xff]
        %v669 = vld [vmem:[%s457 + $0x88] sm:$0xff]
        %v670 = vld [vmem:[%s457 + $0x90] sm:$0xff]
        %v671 = vld [vmem:[%s457 + $0x98] sm:$0xff]
        %v672 = vld [vmem:[%s457 + $0xa0] sm:$0xff]
        %v673 = vld [vmem:[%s457 + $0xa8] sm:$0xff]
        %v674 = vld [vmem:[%s457 + $0xb0] sm:$0xff]
        %v675 = vld [vmem:[%s457 + $0xb8] sm:$0xff]
        %v676 = vld [vmem:[%s457 + $0xc0] sm:$0xff]
        %v677 = vld [vmem:[%s457 + $0xc8] sm:$0xff]
        %v678 = vld [vmem:[%s457 + $0xd0] sm:$0xff]
        %v679 = vld [vmem:[%s457 + $0xd8] sm:$0xff]
        %v680 = vld [vmem:[%s457 + $0xe0] sm:$0xff]
        %v681 = vld [vmem:[%s457 + $0xe8] sm:$0xff]
        %v682 = vld [vmem:[%s457 + $0xf0] sm:$0xff]
        %v683 = vld [vmem:[%s457 + $0xf8] sm:$0xff]
        %v684 = vld [vmem:[%s457 + $0x100] sm:$0xff]
        %v685 = vld [vmem:[%s457 + $0x108] sm:$0xff]
        %v686 = vld [vmem:[%s457 + $0x110] sm:$0xff]
        %v687 = vld [vmem:[%s457 + $0x118] sm:$0xff]
        %v688 = vld [vmem:[%s457 + $0x120] sm:$0xff]
        %v689 = vld [vmem:[%s457 + $0x128] sm:$0xff]
        %v690 = vld [vmem:[%s457 + $0x130] sm:$0xff]
        %v691 = vld [vmem:[%s457 + $0x138] sm:$0xff]
        %v692 = vld [vmem:[#allocation7] sm:$0xff]
        %v693 = vld [vmem:[#allocation7 + $0x8] sm:$0xff]
        %v694 = vld [vmem:[#allocation7 + $0x10] sm:$0xff]
        %v695 = vld [vmem:[#allocation7 + $0x18] sm:$0xff]
        %v696 = vld [vmem:[#allocation7 + $0x20] sm:$0xff]
        %v697 = vld [vmem:[#allocation7 + $0x28] sm:$0xff]
        %v698 = vld [vmem:[#allocation7 + $0x30] sm:$0xff]
        %v699 = vld [vmem:[#allocation7 + $0x38] sm:$0xff]
        %v700 = vld [vmem:[#allocation7 + $0x40] sm:$0xff]
        %v701 = vld [vmem:[#allocation7 + $0x48] sm:$0xff]
        %v702 = vld [vmem:[#allocation7 + $0x50] sm:$0xff]
        %v703 = vld [vmem:[#allocation7 + $0x58] sm:$0xff]
        %v704 = vld [vmem:[#allocation7 + $0x60] sm:$0xff]
        %v705 = vld [vmem:[#allocation7 + $0x68] sm:$0xff]
        %v706 = vld [vmem:[#allocation7 + $0x70] sm:$0xff]
        %v707 = vld [vmem:[#allocation7 + $0x78] sm:$0xff]
        %v708 = vld [vmem:[#allocation7 + $0x80] sm:$0xff]
        %v709 = vld [vmem:[#allocation7 + $0x88] sm:$0xff]
        %v710 = vld [vmem:[#allocation7 + $0x90] sm:$0xff]
        %v711 = vld [vmem:[#allocation7 + $0x98] sm:$0xff]
        %v712 = vld [vmem:[#allocation7 + $0xa0] sm:$0xff]
        %v713 = vld [vmem:[#allocation7 + $0xa8] sm:$0xff]
        %v714 = vld [vmem:[#allocation7 + $0xb0] sm:$0xff]
        %v715 = vld [vmem:[#allocation7 + $0xb8] sm:$0xff]
        %v716 = vld [vmem:[#allocation7 + $0xc0] sm:$0xff]
        %v717 = vld [vmem:[#allocation7 + $0xc8] sm:$0xff]
        %v718 = vld [vmem:[#allocation7 + $0xd0] sm:$0xff]
        %v719 = vld [vmem:[#allocation7 + $0xd8] sm:$0xff]
        %v720 = vld [vmem:[#allocation7 + $0xe0] sm:$0xff]
        %v721 = vld [vmem:[#allocation7 + $0xe8] sm:$0xff]
        %v722 = vld [vmem:[#allocation7 + $0xf0] sm:$0xff]
        %v723 = vld [vmem:[#allocation7 + $0xf8] sm:$0xff]
        %v724 = vld [vmem:[#allocation7 + $0x100] sm:$0xff]
        %v725 = vld [vmem:[#allocation7 + $0x108] sm:$0xff]
        %v726 = vld [vmem:[#allocation7 + $0x110] sm:$0xff]
        %v727 = vld [vmem:[#allocation7 + $0x118] sm:$0xff]
        %v728 = vld [vmem:[#allocation7 + $0x120] sm:$0xff]
        %v729 = vld [vmem:[#allocation7 + $0x128] sm:$0xff]
        %v730 = vld [vmem:[#allocation7 + $0x130] sm:$0xff]
        %v731 = vld [vmem:[#allocation7 + $0x138] sm:$0xff]
        %v732 = vld [vmem:[#allocation7 + $0x140] sm:$0xff]
        %v733 = vld [vmem:[#allocation7 + $0x148] sm:$0xff]
        %v734 = vld [vmem:[#allocation7 + $0x150] sm:$0xff]
        %v735 = vld [vmem:[#allocation7 + $0x158] sm:$0xff]
        %v736 = vld [vmem:[#allocation7 + $0x160] sm:$0xff]
        %v737 = vld [vmem:[#allocation7 + $0x168] sm:$0xff]
        %v738 = vld [vmem:[#allocation7 + $0x170] sm:$0xff]
        %v739 = vld [vmem:[#allocation7 + $0x178] sm:$0xff]
        %v740 = vld [vmem:[%s561] sm:$0xff]
        %v741 = vld [vmem:[%s561 + $0x8] sm:$0xff]
        %v742 = vld [vmem:[%s561 + $0x10] sm:$0xff]
        %v743 = vld [vmem:[%s561 + $0x18] sm:$0xff]
        %v744 = vld [vmem:[%s561 + $0x20] sm:$0xff]
        %v745 = vld [vmem:[%s561 + $0x28] sm:$0xff]
        %v746 = vld [vmem:[%s561 + $0x30] sm:$0xff]
        %v747 = vld [vmem:[%s561 + $0x38] sm:$0xff]
        %v748 = vld [vmem:[%s561 + $0x40] sm:$0xff]
        %v749 = vld [vmem:[%s561 + $0x48] sm:$0xff]
        %v750 = vld [vmem:[%s561 + $0x50] sm:$0xff]
        %v751 = vld [vmem:[%s561 + $0x58] sm:$0xff]
        %v752 = vld [vmem:[%s561 + $0x60] sm:$0xff]
        %v753 = vld [vmem:[%s561 + $0x68] sm:$0xff]
        %v754 = vld [vmem:[%s561 + $0x70] sm:$0xff]
        %v755 = vld [vmem:[%s561 + $0x78] sm:$0xff]
        %v756 = vld [vmem:[%s561 + $0x80] sm:$0xff]
        %v757 = vld [vmem:[%s561 + $0x88] sm:$0xff]
        %v758 = vld [vmem:[%s561 + $0x90] sm:$0xff]
        %v759 = vld [vmem:[%s561 + $0x98] sm:$0xff]
        %v760 = vld [vmem:[%s561 + $0xa0] sm:$0xff]
        %v761 = vld [vmem:[%s561 + $0xa8] sm:$0xff]
        %v762 = vld [vmem:[%s561 + $0xb0] sm:$0xff]
        %v763 = vld [vmem:[%s561 + $0xb8] sm:$0xff]
        %v764 = vld [vmem:[%s561 + $0xc0] sm:$0xff]
        %v765 = vld [vmem:[%s561 + $0xc8] sm:$0xff]
        %v766 = vld [vmem:[%s561 + $0xd0] sm:$0xff]
        %v767 = vld [vmem:[%s561 + $0xd8] sm:$0xff]
        %v768 = vld [vmem:[%s561 + $0xe0] sm:$0xff]
        %v769 = vld [vmem:[%s561 + $0xe8] sm:$0xff]
        %v770 = vld [vmem:[%s561 + $0xf0] sm:$0xff]
        %v771 = vld [vmem:[%s561 + $0xf8] sm:$0xff]
        %v772 = vld [vmem:[%s561 + $0x100] sm:$0xff]
        %v773 = vld [vmem:[%s561 + $0x108] sm:$0xff]
        %v774 = vld [vmem:[%s561 + $0x110] sm:$0xff]
        %v775 = vld [vmem:[%s561 + $0x118] sm:$0xff]
        %v776 = vld [vmem:[%s561 + $0x120] sm:$0xff]
        %v777 = vld [vmem:[%s561 + $0x128] sm:$0xff]
        %v778 = vld [vmem:[%s561 + $0x130] sm:$0xff]
        %v779 = vld [vmem:[%s561 + $0x138] sm:$0xff]
        %v780 = vlaneseq
        %v781 = vand.u32 %v780, 127
        %782 = vset.pattern.permute.xlu0 0
        %783 = vperm.xlu0 %782, %v740
        %v784 = vpop.permute.xlu0 %783
        %785 = vset.pattern.permute.xlu0 0
        %786 = vperm.xlu0 %785, %v741
        %v787 = vpop.permute.xlu0 %786
        %788 = vset.pattern.permute.xlu0 0
        %789 = vperm.xlu0 %788, %v742
        %v790 = vpop.permute.xlu0 %789
        %791 = vset.pattern.permute.xlu0 0
        %792 = vperm.xlu0 %791, %v743
        %v793 = vpop.permute.xlu0 %792
        %794 = vset.pattern.permute.xlu0 0
        %795 = vperm.xlu0 %794, %v744
        %v796 = vpop.permute.xlu0 %795
        %797 = vset.pattern.permute.xlu0 0
        %798 = vperm.xlu0 %797, %v745
        %v799 = vpop.permute.xlu0 %798
        %800 = vset.pattern.permute.xlu0 0
        %801 = vperm.xlu0 %800, %v746
        %v802 = vpop.permute.xlu0 %801
        %803 = vset.pattern.permute.xlu0 0
        %804 = vperm.xlu0 %803, %v747
        %v805 = vpop.permute.xlu0 %804
        %806 = vset.pattern.permute.xlu0 0
        %807 = vperm.xlu0 %806, %v748
        %v808 = vpop.permute.xlu0 %807
        %809 = vset.pattern.permute.xlu0 0
        %810 = vperm.xlu0 %809, %v749
        %v811 = vpop.permute.xlu0 %810
        %812 = vset.pattern.permute.xlu0 0
        %813 = vperm.xlu0 %812, %v750
        %v814 = vpop.permute.xlu0 %813
        %815 = vset.pattern.permute.xlu0 0
        %816 = vperm.xlu0 %815, %v751
        %v817 = vpop.permute.xlu0 %816
        %818 = vset.pattern.permute.xlu0 0
        %819 = vperm.xlu0 %818, %v752
        %v820 = vpop.permute.xlu0 %819
        %821 = vset.pattern.permute.xlu0 0
        %822 = vperm.xlu0 %821, %v753
        %v823 = vpop.permute.xlu0 %822
        %824 = vset.pattern.permute.xlu0 0
        %825 = vperm.xlu0 %824, %v754
        %v826 = vpop.permute.xlu0 %825
        %827 = vset.pattern.permute.xlu0 0
        %828 = vperm.xlu0 %827, %v755
        %v829 = vpop.permute.xlu0 %828
        %830 = vset.pattern.permute.xlu0 0
        %831 = vperm.xlu0 %830, %v756
        %v832 = vpop.permute.xlu0 %831
        %833 = vset.pattern.permute.xlu0 0
        %834 = vperm.xlu0 %833, %v757
        %v835 = vpop.permute.xlu0 %834
        %836 = vset.pattern.permute.xlu0 0
        %837 = vperm.xlu0 %836, %v758
        %v838 = vpop.permute.xlu0 %837
        %839 = vset.pattern.permute.xlu0 0
        %840 = vperm.xlu0 %839, %v759
        %v841 = vpop.permute.xlu0 %840
        %842 = vset.pattern.permute.xlu0 0
        %843 = vperm.xlu0 %842, %v760
        %v844 = vpop.permute.xlu0 %843
        %845 = vset.pattern.permute.xlu0 0
        %846 = vperm.xlu0 %845, %v761
        %v847 = vpop.permute.xlu0 %846
        %848 = vset.pattern.permute.xlu0 0
        %849 = vperm.xlu0 %848, %v762
        %v850 = vpop.permute.xlu0 %849
        %851 = vset.pattern.permute.xlu0 0
        %852 = vperm.xlu0 %851, %v763
        %v853 = vpop.permute.xlu0 %852
        %854 = vset.pattern.permute.xlu0 0
        %855 = vperm.xlu0 %854, %v764
        %v856 = vpop.permute.xlu0 %855
        %857 = vset.pattern.permute.xlu0 0
        %858 = vperm.xlu0 %857, %v765
        %v859 = vpop.permute.xlu0 %858
        %860 = vset.pattern.permute.xlu0 0
        %861 = vperm.xlu0 %860, %v766
        %v862 = vpop.permute.xlu0 %861
        %863 = vset.pattern.permute.xlu0 0
        %864 = vperm.xlu0 %863, %v767
        %v865 = vpop.permute.xlu0 %864
        %866 = vset.pattern.permute.xlu0 0
        %867 = vperm.xlu0 %866, %v768
        %v868 = vpop.permute.xlu0 %867
        %869 = vset.pattern.permute.xlu0 0
        %870 = vperm.xlu0 %869, %v769
        %v871 = vpop.permute.xlu0 %870
        %872 = vset.pattern.permute.xlu0 0
        %873 = vperm.xlu0 %872, %v770
        %v874 = vpop.permute.xlu0 %873
        %875 = vset.pattern.permute.xlu0 0
        %876 = vperm.xlu0 %875, %v771
        %v877 = vpop.permute.xlu0 %876
        %878 = vset.pattern.permute.xlu0 0
        %879 = vperm.xlu0 %878, %v772
        %v880 = vpop.permute.xlu0 %879
        %881 = vset.pattern.permute.xlu0 0
        %882 = vperm.xlu0 %881, %v773
        %v883 = vpop.permute.xlu0 %882
        %884 = vset.pattern.permute.xlu0 0
        %885 = vperm.xlu0 %884, %v774
        %v886 = vpop.permute.xlu0 %885
        %887 = vset.pattern.permute.xlu0 0
        %888 = vperm.xlu0 %887, %v775
        %v889 = vpop.permute.xlu0 %888
        %890 = vset.pattern.permute.xlu0 0
        %891 = vperm.xlu0 %890, %v776
        %v892 = vpop.permute.xlu0 %891
        %893 = vset.pattern.permute.xlu0 0
        %894 = vperm.xlu0 %893, %v777
        %v895 = vpop.permute.xlu0 %894
        %896 = vset.pattern.permute.xlu0 0
        %897 = vperm.xlu0 %896, %v778
        %v898 = vpop.permute.xlu0 %897
        %899 = vset.pattern.permute.xlu0 0
        %900 = vperm.xlu0 %899, %v779
        %v901 = vpop.permute.xlu0 %900
        %vm902 = vcmp.eq.s32.totalorder %v784, %v781
        %vm903 = vcmp.eq.s32.totalorder %v787, %v781
        %vm904 = vcmp.eq.s32.totalorder %v790, %v781
        %vm905 = vcmp.eq.s32.totalorder %v793, %v781
        %vm906 = vcmp.eq.s32.totalorder %v796, %v781
        %vm907 = vcmp.eq.s32.totalorder %v799, %v781
        %vm908 = vcmp.eq.s32.totalorder %v802, %v781
        %vm909 = vcmp.eq.s32.totalorder %v805, %v781
        %vm910 = vcmp.eq.s32.totalorder %v808, %v781
        %vm911 = vcmp.eq.s32.totalorder %v811, %v781
        %vm912 = vcmp.eq.s32.totalorder %v814, %v781
        %vm913 = vcmp.eq.s32.totalorder %v817, %v781
        %vm914 = vcmp.eq.s32.totalorder %v820, %v781
        %vm915 = vcmp.eq.s32.totalorder %v823, %v781
        %vm916 = vcmp.eq.s32.totalorder %v826, %v781
        %vm917 = vcmp.eq.s32.totalorder %v829, %v781
        %vm918 = vcmp.eq.s32.totalorder %v832, %v781
        %vm919 = vcmp.eq.s32.totalorder %v835, %v781
        %vm920 = vcmp.eq.s32.totalorder %v838, %v781
        %vm921 = vcmp.eq.s32.totalorder %v841, %v781
        %vm922 = vcmp.eq.s32.totalorder %v844, %v781
        %vm923 = vcmp.eq.s32.totalorder %v847, %v781
        %vm924 = vcmp.eq.s32.totalorder %v850, %v781
        %vm925 = vcmp.eq.s32.totalorder %v853, %v781
        %vm926 = vcmp.eq.s32.totalorder %v856, %v781
        %vm927 = vcmp.eq.s32.totalorder %v859, %v781
        %vm928 = vcmp.eq.s32.totalorder %v862, %v781
        %vm929 = vcmp.eq.s32.totalorder %v865, %v781
        %vm930 = vcmp.eq.s32.totalorder %v868, %v781
        %vm931 = vcmp.eq.s32.totalorder %v871, %v781
        %vm932 = vcmp.eq.s32.totalorder %v874, %v781
        %vm933 = vcmp.eq.s32.totalorder %v877, %v781
        %vm934 = vcmp.eq.s32.totalorder %v880, %v781
        %vm935 = vcmp.eq.s32.totalorder %v883, %v781
        %vm936 = vcmp.eq.s32.totalorder %v886, %v781
        %vm937 = vcmp.eq.s32.totalorder %v889, %v781
        %vm938 = vcmp.eq.s32.totalorder %v892, %v781
        %vm939 = vcmp.eq.s32.totalorder %v895, %v781
        %vm940 = vcmp.eq.s32.totalorder %v898, %v781
        %vm941 = vcmp.eq.s32.totalorder %v901, %v781
        %v942 = vsel %vm902, 1, 0
        %v943 = vsel %vm903, 1, 0
        %v944 = vsel %vm904, 1, 0
        %v945 = vsel %vm905, 1, 0
        %v946 = vsel %vm906, 1, 0
        %v947 = vsel %vm907, 1, 0
        %v948 = vsel %vm908, 1, 0
        %v949 = vsel %vm909, 1, 0
        %v950 = vsel %vm910, 1, 0
        %v951 = vsel %vm911, 1, 0
        %v952 = vsel %vm912, 1, 0
        %v953 = vsel %vm913, 1, 0
        %v954 = vsel %vm914, 1, 0
        %v955 = vsel %vm915, 1, 0
        %v956 = vsel %vm916, 1, 0
        %v957 = vsel %vm917, 1, 0
        %v958 = vsel %vm918, 1, 0
        %v959 = vsel %vm919, 1, 0
        %v960 = vsel %vm920, 1, 0
        %v961 = vsel %vm921, 1, 0
        %v962 = vsel %vm922, 1, 0
        %v963 = vsel %vm923, 1, 0
        %v964 = vsel %vm924, 1, 0
        %v965 = vsel %vm925, 1, 0
        %v966 = vsel %vm926, 1, 0
        %v967 = vsel %vm927, 1, 0
        %v968 = vsel %vm928, 1, 0
        %v969 = vsel %vm929, 1, 0
        %v970 = vsel %vm930, 1, 0
        %v971 = vsel %vm931, 1, 0
        %v972 = vsel %vm932, 1, 0
        %v973 = vsel %vm933, 1, 0
        %v974 = vsel %vm934, 1, 0
        %v975 = vsel %vm935, 1, 0
        %v976 = vsel %vm936, 1, 0
        %v977 = vsel %vm937, 1, 0
        %v978 = vsel %vm938, 1, 0
        %v979 = vsel %vm939, 1, 0
        %v980 = vsel %vm940, 1, 0
        %v981 = vsel %vm941, 1, 0
        %v982 = vcvt.s32.f32 %v942
        %v983 = vcvt.s32.f32 %v943
        %v984 = vcvt.s32.f32 %v944
        %v985 = vcvt.s32.f32 %v945
        %v986 = vcvt.s32.f32 %v946
        %v987 = vcvt.s32.f32 %v947
        %v988 = vcvt.s32.f32 %v948
        %v989 = vcvt.s32.f32 %v949
        %v990 = vcvt.s32.f32 %v950
        %v991 = vcvt.s32.f32 %v951
        %v992 = vcvt.s32.f32 %v952
        %v993 = vcvt.s32.f32 %v953
        %v994 = vcvt.s32.f32 %v954
        %v995 = vcvt.s32.f32 %v955
        %v996 = vcvt.s32.f32 %v956
        %v997 = vcvt.s32.f32 %v957
        %v998 = vcvt.s32.f32 %v958
        %v999 = vcvt.s32.f32 %v959
        %v1000 = vcvt.s32.f32 %v960
        %v1001 = vcvt.s32.f32 %v961
        %v1002 = vcvt.s32.f32 %v962
        %v1003 = vcvt.s32.f32 %v963
        %v1004 = vcvt.s32.f32 %v964
        %v1005 = vcvt.s32.f32 %v965
        %v1006 = vcvt.s32.f32 %v966
        %v1007 = vcvt.s32.f32 %v967
        %v1008 = vcvt.s32.f32 %v968
        %v1009 = vcvt.s32.f32 %v969
        %v1010 = vcvt.s32.f32 %v970
        %v1011 = vcvt.s32.f32 %v971
        %v1012 = vcvt.s32.f32 %v972
        %v1013 = vcvt.s32.f32 %v973
        %v1014 = vcvt.s32.f32 %v974
        %v1015 = vcvt.s32.f32 %v975
        %v1016 = vcvt.s32.f32 %v976
        %v1017 = vcvt.s32.f32 %v977
        %v1018 = vcvt.s32.f32 %v978
        %v1019 = vcvt.s32.f32 %v979
        %v1020 = vcvt.s32.f32 %v980
        %v1021 = vcvt.s32.f32 %v981
        %v1022 = vld [vmem:[%s5] sm:$0xf]
        %vm1023 = vcmask 31744
        %v1025 = vsel %vm1023, %v982, 0
        %v1028 = vsel %vm1023, %v983, 0
        %v1031 = vsel %vm1023, %v984, 0
        %v1034 = vsel %vm1023, %v985, 0
        %v1037 = vsel %vm1023, %v986, 0
        %v1040 = vsel %vm1023, %v987, 0
        %v1043 = vsel %vm1023, %v988, 0
        %v1046 = vsel %vm1023, %v989, 0
        %v1049 = vsel %vm1023, %v990, 0
        %v1052 = vsel %vm1023, %v991, 0
        %v1055 = vsel %vm1023, %v992, 0
        %v1058 = vsel %vm1023, %v993, 0
        %v1061 = vsel %vm1023, %v994, 0
        %v1064 = vsel %vm1023, %v995, 0
        %v1067 = vsel %vm1023, %v996, 0
        %v1070 = vsel %vm1023, %v997, 0
        %v1073 = vsel %vm1023, %v998, 0
        %v1076 = vsel %vm1023, %v999, 0
        %v1079 = vsel %vm1023, %v1000, 0
        %v1082 = vsel %vm1023, %v1001, 0
        %v1085 = vsel %vm1023, %v1002, 0
        %v1088 = vsel %vm1023, %v1003, 0
        %v1091 = vsel %vm1023, %v1004, 0
        %v1094 = vsel %vm1023, %v1005, 0
        %v1097 = vsel %vm1023, %v1006, 0
        %v1100 = vsel %vm1023, %v1007, 0
        %v1103 = vsel %vm1023, %v1008, 0
        %v1106 = vsel %vm1023, %v1009, 0
        %v1109 = vsel %vm1023, %v1010, 0
        %v1112 = vsel %vm1023, %v1011, 0
        %v1115 = vsel %vm1023, %v1012, 0
        %v1118 = vsel %vm1023, %v1013, 0
        %v1121 = vsel %vm1023, %v1014, 0
        %v1124 = vsel %vm1023, %v1015, 0
        %v1127 = vsel %vm1023, %v1016, 0
        %v1130 = vsel %vm1023, %v1017, 0
        %v1133 = vsel %vm1023, %v1018, 0
        %v1136 = vsel %vm1023, %v1019, 0
        %v1139 = vsel %vm1023, %v1020, 0
        %v1142 = vsel %vm1023, %v1021, 0
        %vm1144 = vcmask 1043456
        %v1146 = vsel %vm1144, %v1022, 0
        %1148 = vmatprep.subr.mxu0 0.0
        %1149 = vmatpush1.msra.mxu0 0.0
        %1150 = vmatprep.subr.mxu0 0.0
        %1151 = vmatpush1.msra.mxu0 0.0
        %1152 = vmatprep.subr.mxu0 0.0
        %1153 = vmatpush1.msra.mxu0 0.0
        %1154 = vmatprep.subr.mxu0 0.0
        %1155 = vmatpush1.msra.mxu0 0.0
        %1156 = vmatprep.subr.mxu0 0.0
        %1157 = vmatpush1.msra.mxu0 0.0
        %1158 = vmatprep.subr.mxu0 0.0
        %1159 = vmatpush1.msra.mxu0 0.0
        %1160 = vmatprep.subr.mxu0 0.0
        %1161 = vmatpush1.msra.mxu0 0.0
        %1162 = vmatprep.subr.mxu0 0.0
        %1163 = vmatpush1.msra.mxu0 0.0
        %1164 = vmatprep.subr.mxu0 0.0
        %1165 = vmatpush1.msra.mxu0 0.0
        %1166 = vmatprep.subr.mxu0 0.0
        %1167 = vmatpush1.msra.mxu0 0.0
        %1168 = vmatprep.subr.mxu0 0.0
        %1169 = vmatpush1.msra.mxu0 0.0
        %1170 = vmatprep.subr.mxu0 0.0
        %1171 = vmatpush1.msra.mxu0 0.0
        %1172 = vmatprep.subr.mxu0 0.0
        %1173 = vmatpush1.msra.mxu0 0.0
        %1174 = vmatprep.subr.mxu0 0.0
        %1175 = vmatpush1.msra.mxu0 0.0
        %1176 = vmatprep.subr.mxu0 0.0
        %1177 = vmatpush1.msra.mxu0 0.0
        %1178 = vmatprep.subr.mxu0 0.0
        %1179 = vmatpush1.msra.mxu0 %v1146
        %1180 = vmatprep.subr.mxu0 0.0
        %1181 = vmatpush2.msra.mxu0 0.0
        %1182 = vmatprep.subr.mxu0 0.0
        %1183 = vmatpush2.msra.mxu0 0.0
        %1184 = vmatprep.subr.mxu0 0.0
        %1185 = vmatpush2.msra.mxu0 0.0
        %1186 = vmatprep.subr.mxu0 0.0
        %1187 = vmatpush2.msra.mxu0 0.0
        %1188 = vmatprep.subr.mxu0 0.0
        %1189 = vmatpush2.msra.mxu0 0.0
        %1190 = vmatprep.subr.mxu0 0.0
        %1191 = vmatpush2.msra.mxu0 0.0
        %1192 = vmatprep.subr.mxu0 0.0
        %1193 = vmatpush2.msra.mxu0 0.0
        %1194 = vmatprep.subr.mxu0 0.0
        %1195 = vmatpush2.msra.mxu0 0.0
        %1196 = vmatprep.subr.mxu0 0.0
        %1197 = vmatpush2.msra.mxu0 0.0
        %1198 = vmatprep.subr.mxu0 0.0
        %1199 = vmatpush2.msra.mxu0 0.0
        %1200 = vmatprep.subr.mxu0 0.0
        %1201 = vmatpush2.msra.mxu0 0.0
        %1202 = vmatprep.subr.mxu0 0.0
        %1203 = vmatpush2.msra.mxu0 0.0
        %1204 = vmatprep.subr.mxu0 0.0
        %1205 = vmatpush2.msra.mxu0 0.0
        %1206 = vmatprep.subr.mxu0 0.0
        %1207 = vmatpush2.msra.mxu0 0.0
        %1208 = vmatprep.subr.mxu0 0.0
        %1209 = vmatpush2.msra.mxu0 0.0
        %1210 = vmatprep.subr.mxu0 0.0
        %1211 = vmatpush2.msra.mxu0 0.0
        %1212 = vmatprep.mubr.f32.mxu0 0.0
        %1213 = vmatmul.mubr.f32.gmra.mxu0 %v1025
        %v1214 = vpop.f32.mrf.mxu0
        %v1215 = vadd.f32 0.0, %v1214
        %v1216 = vpop.f32.mrf.mxu0
        %1217 = vmatprep.mubr.f32.mxu0 0.0
        %1218 = vmatmul.mubr.f32.gmra.mxu0 %v1028
        %v1219 = vpop.f32.mrf.mxu0
        %v1220 = vadd.f32 0.0, %v1219
        %v1221 = vpop.f32.mrf.mxu0
        %1222 = vmatprep.mubr.f32.mxu0 0.0
        %1223 = vmatmul.mubr.f32.gmra.mxu0 %v1031
        %v1224 = vpop.f32.mrf.mxu0
        %v1225 = vadd.f32 0.0, %v1224
        %v1226 = vpop.f32.mrf.mxu0
        %1227 = vmatprep.mubr.f32.mxu0 0.0
        %1228 = vmatmul.mubr.f32.gmra.mxu0 %v1034
        %v1229 = vpop.f32.mrf.mxu0
        %v1230 = vadd.f32 0.0, %v1229
        %v1231 = vpop.f32.mrf.mxu0
        %1232 = vmatprep.mubr.f32.mxu0 0.0
        %1233 = vmatmul.mubr.f32.gmra.mxu0 %v1037
        %v1234 = vpop.f32.mrf.mxu0
        %v1235 = vadd.f32 0.0, %v1234
        %v1236 = vpop.f32.mrf.mxu0
        %1237 = vmatprep.mubr.f32.mxu0 0.0
        %1238 = vmatmul.mubr.f32.gmra.mxu0 %v1040
        %v1239 = vpop.f32.mrf.mxu0
        %v1240 = vadd.f32 0.0, %v1239
        %v1241 = vpop.f32.mrf.mxu0
        %1242 = vmatprep.mubr.f32.mxu0 0.0
        %1243 = vmatmul.mubr.f32.gmra.mxu0 %v1043
        %v1244 = vpop.f32.mrf.mxu0
        %v1245 = vadd.f32 0.0, %v1244
        %v1246 = vpop.f32.mrf.mxu0
        %1247 = vmatprep.mubr.f32.mxu0 0.0
        %1248 = vmatmul.mubr.f32.gmra.mxu0 %v1046
        %v1249 = vpop.f32.mrf.mxu0
        %v1250 = vadd.f32 0.0, %v1249
        %v1251 = vpop.f32.mrf.mxu0
        %1252 = vmatprep.mubr.f32.mxu0 0.0
        %1253 = vmatmul.mubr.f32.gmra.mxu0 %v1049
        %v1254 = vpop.f32.mrf.mxu0
        %v1255 = vadd.f32 0.0, %v1254
        %v1256 = vpop.f32.mrf.mxu0
        %1257 = vmatprep.mubr.f32.mxu0 0.0
        %1258 = vmatmul.mubr.f32.gmra.mxu0 %v1052
        %v1259 = vpop.f32.mrf.mxu0
        %v1260 = vadd.f32 0.0, %v1259
        %v1261 = vpop.f32.mrf.mxu0
        %1262 = vmatprep.mubr.f32.mxu0 0.0
        %1263 = vmatmul.mubr.f32.gmra.mxu0 %v1055
        %v1264 = vpop.f32.mrf.mxu0
        %v1265 = vadd.f32 0.0, %v1264
        %v1266 = vpop.f32.mrf.mxu0
        %1267 = vmatprep.mubr.f32.mxu0 0.0
        %1268 = vmatmul.mubr.f32.gmra.mxu0 %v1058
        %v1269 = vpop.f32.mrf.mxu0
        %v1270 = vadd.f32 0.0, %v1269
        %v1271 = vpop.f32.mrf.mxu0
        %1272 = vmatprep.mubr.f32.mxu0 0.0
        %1273 = vmatmul.mubr.f32.gmra.mxu0 %v1061
        %v1274 = vpop.f32.mrf.mxu0
        %v1275 = vadd.f32 0.0, %v1274
        %v1276 = vpop.f32.mrf.mxu0
        %1277 = vmatprep.mubr.f32.mxu0 0.0
        %1278 = vmatmul.mubr.f32.gmra.mxu0 %v1064
        %v1279 = vpop.f32.mrf.mxu0
        %v1280 = vadd.f32 0.0, %v1279
        %v1281 = vpop.f32.mrf.mxu0
        %1282 = vmatprep.mubr.f32.mxu0 0.0
        %1283 = vmatmul.mubr.f32.gmra.mxu0 %v1067
        %v1284 = vpop.f32.mrf.mxu0
        %v1285 = vadd.f32 0.0, %v1284
        %v1286 = vpop.f32.mrf.mxu0
        %1287 = vmatprep.mubr.f32.mxu0 0.0
        %1288 = vmatmul.mubr.f32.gmra.mxu0 %v1070
        %v1289 = vpop.f32.mrf.mxu0
        %v1290 = vadd.f32 0.0, %v1289
        %v1291 = vpop.f32.mrf.mxu0
        %1292 = vmatprep.mubr.f32.mxu0 0.0
        %1293 = vmatmul.mubr.f32.gmra.mxu0 %v1073
        %v1294 = vpop.f32.mrf.mxu0
        %v1295 = vadd.f32 0.0, %v1294
        %v1296 = vpop.f32.mrf.mxu0
        %1297 = vmatprep.mubr.f32.mxu0 0.0
        %1298 = vmatmul.mubr.f32.gmra.mxu0 %v1076
        %v1299 = vpop.f32.mrf.mxu0
        %v1300 = vadd.f32 0.0, %v1299
        %v1301 = vpop.f32.mrf.mxu0
        %1302 = vmatprep.mubr.f32.mxu0 0.0
        %1303 = vmatmul.mubr.f32.gmra.mxu0 %v1079
        %v1304 = vpop.f32.mrf.mxu0
        %v1305 = vadd.f32 0.0, %v1304
        %v1306 = vpop.f32.mrf.mxu0
        %1307 = vmatprep.mubr.f32.mxu0 0.0
        %1308 = vmatmul.mubr.f32.gmra.mxu0 %v1082
        %v1309 = vpop.f32.mrf.mxu0
        %v1310 = vadd.f32 0.0, %v1309
        %v1311 = vpop.f32.mrf.mxu0
        %1312 = vmatprep.mubr.f32.mxu0 0.0
        %1313 = vmatmul.mubr.f32.gmra.mxu0 %v1085
        %v1314 = vpop.f32.mrf.mxu0
        %v1315 = vadd.f32 0.0, %v1314
        %v1316 = vpop.f32.mrf.mxu0
        %1317 = vmatprep.mubr.f32.mxu0 0.0
        %1318 = vmatmul.mubr.f32.gmra.mxu0 %v1088
        %v1319 = vpop.f32.mrf.mxu0
        %v1320 = vadd.f32 0.0, %v1319
        %v1321 = vpop.f32.mrf.mxu0
        %1322 = vmatprep.mubr.f32.mxu0 0.0
        %1323 = vmatmul.mubr.f32.gmra.mxu0 %v1091
        %v1324 = vpop.f32.mrf.mxu0
        %v1325 = vadd.f32 0.0, %v1324
        %v1326 = vpop.f32.mrf.mxu0
        %1327 = vmatprep.mubr.f32.mxu0 0.0
        %1328 = vmatmul.mubr.f32.gmra.mxu0 %v1094
        %v1329 = vpop.f32.mrf.mxu0
        %v1330 = vadd.f32 0.0, %v1329
        %v1331 = vpop.f32.mrf.mxu0
        %1332 = vmatprep.mubr.f32.mxu0 0.0
        %1333 = vmatmul.mubr.f32.gmra.mxu0 %v1097
        %v1334 = vpop.f32.mrf.mxu0
        %v1335 = vadd.f32 0.0, %v1334
        %v1336 = vpop.f32.mrf.mxu0
        %1337 = vmatprep.mubr.f32.mxu0 0.0
        %1338 = vmatmul.mubr.f32.gmra.mxu0 %v1100
        %v1339 = vpop.f32.mrf.mxu0
        %v1340 = vadd.f32 0.0, %v1339
        %v1341 = vpop.f32.mrf.mxu0
        %1342 = vmatprep.mubr.f32.mxu0 0.0
        %1343 = vmatmul.mubr.f32.gmra.mxu0 %v1103
        %v1344 = vpop.f32.mrf.mxu0
        %v1345 = vadd.f32 0.0, %v1344
        %v1346 = vpop.f32.mrf.mxu0
        %1347 = vmatprep.mubr.f32.mxu0 0.0
        %1348 = vmatmul.mubr.f32.gmra.mxu0 %v1106
        %v1349 = vpop.f32.mrf.mxu0
        %v1350 = vadd.f32 0.0, %v1349
        %v1351 = vpop.f32.mrf.mxu0
        %1352 = vmatprep.mubr.f32.mxu0 0.0
        %1353 = vmatmul.mubr.f32.gmra.mxu0 %v1109
        %v1354 = vpop.f32.mrf.mxu0
        %v1355 = vadd.f32 0.0, %v1354
        %v1356 = vpop.f32.mrf.mxu0
        %1357 = vmatprep.mubr.f32.mxu0 0.0
        %1358 = vmatmul.mubr.f32.gmra.mxu0 %v1112
        %v1359 = vpop.f32.mrf.mxu0
        %v1360 = vadd.f32 0.0, %v1359
        %v1361 = vpop.f32.mrf.mxu0
        %1362 = vmatprep.mubr.f32.mxu0 0.0
        %1363 = vmatmul.mubr.f32.gmra.mxu0 %v1115
        %v1364 = vpop.f32.mrf.mxu0
        %v1365 = vadd.f32 0.0, %v1364
        %v1366 = vpop.f32.mrf.mxu0
        %1367 = vmatprep.mubr.f32.mxu0 0.0
        %1368 = vmatmul.mubr.f32.gmra.mxu0 %v1118
        %v1369 = vpop.f32.mrf.mxu0
        %v1370 = vadd.f32 0.0, %v1369
        %v1371 = vpop.f32.mrf.mxu0
        %1372 = vmatprep.mubr.f32.mxu0 0.0
        %1373 = vmatmul.mubr.f32.gmra.mxu0 %v1121
        %v1374 = vpop.f32.mrf.mxu0
        %v1375 = vadd.f32 0.0, %v1374
        %v1376 = vpop.f32.mrf.mxu0
        %1377 = vmatprep.mubr.f32.mxu0 0.0
        %1378 = vmatmul.mubr.f32.gmra.mxu0 %v1124
        %v1379 = vpop.f32.mrf.mxu0
        %v1380 = vadd.f32 0.0, %v1379
        %v1381 = vpop.f32.mrf.mxu0
        %1382 = vmatprep.mubr.f32.mxu0 0.0
        %1383 = vmatmul.mubr.f32.gmra.mxu0 %v1127
        %v1384 = vpop.f32.mrf.mxu0
        %v1385 = vadd.f32 0.0, %v1384
        %v1386 = vpop.f32.mrf.mxu0
        %1387 = vmatprep.mubr.f32.mxu0 0.0
        %1388 = vmatmul.mubr.f32.gmra.mxu0 %v1130
        %v1389 = vpop.f32.mrf.mxu0
        %v1390 = vadd.f32 0.0, %v1389
        %v1391 = vpop.f32.mrf.mxu0
        %1392 = vmatprep.mubr.f32.mxu0 0.0
        %1393 = vmatmul.mubr.f32.gmra.mxu0 %v1133
        %v1394 = vpop.f32.mrf.mxu0
        %v1395 = vadd.f32 0.0, %v1394
        %v1396 = vpop.f32.mrf.mxu0
        %1397 = vmatprep.mubr.f32.mxu0 0.0
        %1398 = vmatmul.mubr.f32.gmra.mxu0 %v1136
        %v1399 = vpop.f32.mrf.mxu0
        %v1400 = vadd.f32 0.0, %v1399
        %v1401 = vpop.f32.mrf.mxu0
        %1402 = vmatprep.mubr.f32.mxu0 0.0
        %1403 = vmatmul.mubr.f32.gmra.mxu0 %v1139
        %v1404 = vpop.f32.mrf.mxu0
        %v1405 = vadd.f32 0.0, %v1404
        %v1406 = vpop.f32.mrf.mxu0
        %1407 = vmatprep.mubr.f32.mxu0 0.0
        %1408 = vmatmul.mubr.f32.gmra.mxu0 %v1142
        %v1409 = vpop.f32.mrf.mxu0
        %v1410 = vadd.f32 0.0, %v1409
        %v1411 = vpop.f32.mrf.mxu0
        %1412 = vdwg.mxu0
        %1413 = vmatprep.subr.mxu0 0.0
        %1414 = vmatpush1.msra.mxu0 %v707
        %1415 = vmatprep.subr.mxu0 0.0
        %1416 = vmatpush1.msra.mxu0 %v706
        %1417 = vmatprep.subr.mxu0 0.0
        %1418 = vmatpush1.msra.mxu0 %v705
        %1419 = vmatprep.subr.mxu0 0.0
        %1420 = vmatpush1.msra.mxu0 %v704
        %1421 = vmatprep.subr.mxu0 0.0
        %1422 = vmatpush1.msra.mxu0 %v703
        %1423 = vmatprep.subr.mxu0 0.0
        %1424 = vmatpush1.msra.mxu0 %v702
        %1425 = vmatprep.subr.mxu0 0.0
        %1426 = vmatpush1.msra.mxu0 %v701
        %1427 = vmatprep.subr.mxu0 0.0
        %1428 = vmatpush1.msra.mxu0 %v700
        %1429 = vmatprep.subr.mxu0 0.0
        %1430 = vmatpush1.msra.mxu0 %v699
        %1431 = vmatprep.subr.mxu0 0.0
        %1432 = vmatpush1.msra.mxu0 %v698
        %1433 = vmatprep.subr.mxu0 0.0
        %1434 = vmatpush1.msra.mxu0 %v697
        %1435 = vmatprep.subr.mxu0 0.0
        %1436 = vmatpush1.msra.mxu0 %v696
        %1437 = vmatprep.subr.mxu0 0.0
        %1438 = vmatpush1.msra.mxu0 %v695
        %1439 = vmatprep.subr.mxu0 0.0
        %1440 = vmatpush1.msra.mxu0 %v694
        %1441 = vmatprep.subr.mxu0 0.0
        %1442 = vmatpush1.msra.mxu0 %v693
        %1443 = vmatprep.subr.mxu0 0.0
        %1444 = vmatpush1.msra.mxu0 %v692
        %1445 = vmatprep.subr.mxu0 0.0
        %1446 = vmatpush2.msra.mxu0 %v723
        %1447 = vmatprep.subr.mxu0 0.0
        %1448 = vmatpush2.msra.mxu0 %v722
        %1449 = vmatprep.subr.mxu0 0.0
        %1450 = vmatpush2.msra.mxu0 %v721
        %1451 = vmatprep.subr.mxu0 0.0
        %1452 = vmatpush2.msra.mxu0 %v720
        %1453 = vmatprep.subr.mxu0 0.0
        %1454 = vmatpush2.msra.mxu0 %v719
        %1455 = vmatprep.subr.mxu0 0.0
        %1456 = vmatpush2.msra.mxu0 %v718
        %1457 = vmatprep.subr.mxu0 0.0
        %1458 = vmatpush2.msra.mxu0 %v717
        %1459 = vmatprep.subr.mxu0 0.0
        %1460 = vmatpush2.msra.mxu0 %v716
        %1461 = vmatprep.subr.mxu0 0.0
        %1462 = vmatpush2.msra.mxu0 %v715
        %1463 = vmatprep.subr.mxu0 0.0
        %1464 = vmatpush2.msra.mxu0 %v714
        %1465 = vmatprep.subr.mxu0 0.0
        %1466 = vmatpush2.msra.mxu0 %v713
        %1467 = vmatprep.subr.mxu0 0.0
        %1468 = vmatpush2.msra.mxu0 %v712
        %1469 = vmatprep.subr.mxu0 0.0
        %1470 = vmatpush2.msra.mxu0 %v711
        %1471 = vmatprep.subr.mxu0 0.0
        %1472 = vmatpush2.msra.mxu0 %v710
        %1473 = vmatprep.subr.mxu0 0.0
        %1474 = vmatpush2.msra.mxu0 %v709
        %1475 = vmatprep.subr.mxu0 0.0
        %1476 = vmatpush2.msra.mxu0 %v708
        %1477 = vmatprep.mubr.f32.mxu0 %v612
        %1478 = vmatmul.mubr.f32.gmra.mxu0 %v572
        %v1479 = vpop.f32.mrf.mxu0
        %v1480 = vadd.f32 %v1215, %v1479
        %v1481 = vpop.f32.mrf.mxu0
        %1482 = vmatprep.mubr.f32.mxu0 %v613
        %1483 = vmatmul.mubr.f32.gmra.mxu0 %v573
        %v1484 = vpop.f32.mrf.mxu0
        %v1485 = vadd.f32 %v1220, %v1484
        %v1486 = vpop.f32.mrf.mxu0
        %1487 = vmatprep.mubr.f32.mxu0 %v614
        %1488 = vmatmul.mubr.f32.gmra.mxu0 %v574
        %v1489 = vpop.f32.mrf.mxu0
        %v1490 = vadd.f32 %v1225, %v1489
        %v1491 = vpop.f32.mrf.mxu0
        %1492 = vmatprep.mubr.f32.mxu0 %v615
        %1493 = vmatmul.mubr.f32.gmra.mxu0 %v575
        %v1494 = vpop.f32.mrf.mxu0
        %v1495 = vadd.f32 %v1230, %v1494
        %v1496 = vpop.f32.mrf.mxu0
        %1497 = vmatprep.mubr.f32.mxu0 %v616
        %1498 = vmatmul.mubr.f32.gmra.mxu0 %v576
        %v1499 = vpop.f32.mrf.mxu0
        %v1500 = vadd.f32 %v1235, %v1499
        %v1501 = vpop.f32.mrf.mxu0
        %1502 = vmatprep.mubr.f32.mxu0 %v617
        %1503 = vmatmul.mubr.f32.gmra.mxu0 %v577
        %v1504 = vpop.f32.mrf.mxu0
        %v1505 = vadd.f32 %v1240, %v1504
        %v1506 = vpop.f32.mrf.mxu0
        %1507 = vmatprep.mubr.f32.mxu0 %v618
        %1508 = vmatmul.mubr.f32.gmra.mxu0 %v578
        %v1509 = vpop.f32.mrf.mxu0
        %v1510 = vadd.f32 %v1245, %v1509
        %v1511 = vpop.f32.mrf.mxu0
        %1512 = vmatprep.mubr.f32.mxu0 %v619
        %1513 = vmatmul.mubr.f32.gmra.mxu0 %v579
        %v1514 = vpop.f32.mrf.mxu0
        %v1515 = vadd.f32 %v1250, %v1514
        %v1516 = vpop.f32.mrf.mxu0
        %1517 = vmatprep.mubr.f32.mxu0 %v620
        %1518 = vmatmul.mubr.f32.gmra.mxu0 %v580
        %v1519 = vpop.f32.mrf.mxu0
        %v1520 = vadd.f32 %v1255, %v1519
        %v1521 = vpop.f32.mrf.mxu0
        %1522 = vmatprep.mubr.f32.mxu0 %v621
        %1523 = vmatmul.mubr.f32.gmra.mxu0 %v581
        %v1524 = vpop.f32.mrf.mxu0
        %v1525 = vadd.f32 %v1260, %v1524
        %v1526 = vpop.f32.mrf.mxu0
        %1527 = vmatprep.mubr.f32.mxu0 %v622
        %1528 = vmatmul.mubr.f32.gmra.mxu0 %v582
        %v1529 = vpop.f32.mrf.mxu0
        %v1530 = vadd.f32 %v1265, %v1529
        %v1531 = vpop.f32.mrf.mxu0
        %1532 = vmatprep.mubr.f32.mxu0 %v623
        %1533 = vmatmul.mubr.f32.gmra.mxu0 %v583
        %v1534 = vpop.f32.mrf.mxu0
        %v1535 = vadd.f32 %v1270, %v1534
        %v1536 = vpop.f32.mrf.mxu0
        %1537 = vmatprep.mubr.f32.mxu0 %v624
        %1538 = vmatmul.mubr.f32.gmra.mxu0 %v584
        %v1539 = vpop.f32.mrf.mxu0
        %v1540 = vadd.f32 %v1275, %v1539
        %v1541 = vpop.f32.mrf.mxu0
        %1542 = vmatprep.mubr.f32.mxu0 %v625
        %1543 = vmatmul.mubr.f32.gmra.mxu0 %v585
        %v1544 = vpop.f32.mrf.mxu0
        %v1545 = vadd.f32 %v1280, %v1544
        %v1546 = vpop.f32.mrf.mxu0
        %1547 = vmatprep.mubr.f32.mxu0 %v626
        %1548 = vmatmul.mubr.f32.gmra.mxu0 %v586
        %v1549 = vpop.f32.mrf.mxu0
        %v1550 = vadd.f32 %v1285, %v1549
        %v1551 = vpop.f32.mrf.mxu0
        %1552 = vmatprep.mubr.f32.mxu0 %v627
        %1553 = vmatmul.mubr.f32.gmra.mxu0 %v587
        %v1554 = vpop.f32.mrf.mxu0
        %v1555 = vadd.f32 %v1290, %v1554
        %v1556 = vpop.f32.mrf.mxu0
        %1557 = vmatprep.mubr.f32.mxu0 %v628
        %1558 = vmatmul.mubr.f32.gmra.mxu0 %v588
        %v1559 = vpop.f32.mrf.mxu0
        %v1560 = vadd.f32 %v1295, %v1559
        %v1561 = vpop.f32.mrf.mxu0
        %1562 = vmatprep.mubr.f32.mxu0 %v629
        %1563 = vmatmul.mubr.f32.gmra.mxu0 %v589
        %v1564 = vpop.f32.mrf.mxu0
        %v1565 = vadd.f32 %v1300, %v1564
        %v1566 = vpop.f32.mrf.mxu0
        %1567 = vmatprep.mubr.f32.mxu0 %v630
        %1568 = vmatmul.mubr.f32.gmra.mxu0 %v590
        %v1569 = vpop.f32.mrf.mxu0
        %v1570 = vadd.f32 %v1305, %v1569
        %v1571 = vpop.f32.mrf.mxu0
        %1572 = vmatprep.mubr.f32.mxu0 %v631
        %1573 = vmatmul.mubr.f32.gmra.mxu0 %v591
        %v1574 = vpop.f32.mrf.mxu0
        %v1575 = vadd.f32 %v1310, %v1574
        %v1576 = vpop.f32.mrf.mxu0
        %1577 = vmatprep.mubr.f32.mxu0 %v632
        %1578 = vmatmul.mubr.f32.gmra.mxu0 %v592
        %v1579 = vpop.f32.mrf.mxu0
        %v1580 = vadd.f32 %v1315, %v1579
        %v1581 = vpop.f32.mrf.mxu0
        %1582 = vmatprep.mubr.f32.mxu0 %v633
        %1583 = vmatmul.mubr.f32.gmra.mxu0 %v593
        %v1584 = vpop.f32.mrf.mxu0
        %v1585 = vadd.f32 %v1320, %v1584
        %v1586 = vpop.f32.mrf.mxu0
        %1587 = vmatprep.mubr.f32.mxu0 %v634
        %1588 = vmatmul.mubr.f32.gmra.mxu0 %v594
        %v1589 = vpop.f32.mrf.mxu0
        %v1590 = vadd.f32 %v1325, %v1589
        %v1591 = vpop.f32.mrf.mxu0
        %1592 = vmatprep.mubr.f32.mxu0 %v635
        %1593 = vmatmul.mubr.f32.gmra.mxu0 %v595
        %v1594 = vpop.f32.mrf.mxu0
        %v1595 = vadd.f32 %v1330, %v1594
        %v1596 = vpop.f32.mrf.mxu0
        %1597 = vmatprep.mubr.f32.mxu0 %v636
        %1598 = vmatmul.mubr.f32.gmra.mxu0 %v596
        %v1599 = vpop.f32.mrf.mxu0
        %v1600 = vadd.f32 %v1335, %v1599
        %v1601 = vpop.f32.mrf.mxu0
        %1602 = vmatprep.mubr.f32.mxu0 %v637
        %1603 = vmatmul.mubr.f32.gmra.mxu0 %v597
        %v1604 = vpop.f32.mrf.mxu0
        %v1605 = vadd.f32 %v1340, %v1604
        %v1606 = vpop.f32.mrf.mxu0
        %1607 = vmatprep.mubr.f32.mxu0 %v638
        %1608 = vmatmul.mubr.f32.gmra.mxu0 %v598
        %v1609 = vpop.f32.mrf.mxu0
        %v1610 = vadd.f32 %v1345, %v1609
        %v1611 = vpop.f32.mrf.mxu0
        %1612 = vmatprep.mubr.f32.mxu0 %v639
        %1613 = vmatmul.mubr.f32.gmra.mxu0 %v599
        %v1614 = vpop.f32.mrf.mxu0
        %v1615 = vadd.f32 %v1350, %v1614
        %v1616 = vpop.f32.mrf.mxu0
        %1617 = vmatprep.mubr.f32.mxu0 %v640
        %1618 = vmatmul.mubr.f32.gmra.mxu0 %v600
        %v1619 = vpop.f32.mrf.mxu0
        %v1620 = vadd.f32 %v1355, %v1619
        %v1621 = vpop.f32.mrf.mxu0
        %1622 = vmatprep.mubr.f32.mxu0 %v641
        %1623 = vmatmul.mubr.f32.gmra.mxu0 %v601
        %v1624 = vpop.f32.mrf.mxu0
        %v1625 = vadd.f32 %v1360, %v1624
        %v1626 = vpop.f32.mrf.mxu0
        %1627 = vmatprep.mubr.f32.mxu0 %v642
        %1628 = vmatmul.mubr.f32.gmra.mxu0 %v602
        %v1629 = vpop.f32.mrf.mxu0
        %v1630 = vadd.f32 %v1365, %v1629
        %v1631 = vpop.f32.mrf.mxu0
        %1632 = vmatprep.mubr.f32.mxu0 %v643
        %1633 = vmatmul.mubr.f32.gmra.mxu0 %v603
        %v1634 = vpop.f32.mrf.mxu0
        %v1635 = vadd.f32 %v1370, %v1634
        %v1636 = vpop.f32.mrf.mxu0
        %1637 = vmatprep.mubr.f32.mxu0 %v644
        %1638 = vmatmul.mubr.f32.gmra.mxu0 %v604
        %v1639 = vpop.f32.mrf.mxu0
        %v1640 = vadd.f32 %v1375, %v1639
        %v1641 = vpop.f32.mrf.mxu0
        %1642 = vmatprep.mubr.f32.mxu0 %v645
        %1643 = vmatmul.mubr.f32.gmra.mxu0 %v605
        %v1644 = vpop.f32.mrf.mxu0
        %v1645 = vadd.f32 %v1380, %v1644
        %v1646 = vpop.f32.mrf.mxu0
        %1647 = vmatprep.mubr.f32.mxu0 %v646
        %1648 = vmatmul.mubr.f32.gmra.mxu0 %v606
        %v1649 = vpop.f32.mrf.mxu0
        %v1650 = vadd.f32 %v1385, %v1649
        %v1651 = vpop.f32.mrf.mxu0
        %1652 = vmatprep.mubr.f32.mxu0 %v647
        %1653 = vmatmul.mubr.f32.gmra.mxu0 %v607
        %v1654 = vpop.f32.mrf.mxu0
        %v1655 = vadd.f32 %v1390, %v1654
        %v1656 = vpop.f32.mrf.mxu0
        %1657 = vmatprep.mubr.f32.mxu0 %v648
        %1658 = vmatmul.mubr.f32.gmra.mxu0 %v608
        %v1659 = vpop.f32.mrf.mxu0
        %v1660 = vadd.f32 %v1395, %v1659
        %v1661 = vpop.f32.mrf.mxu0
        %1662 = vmatprep.mubr.f32.mxu0 %v649
        %1663 = vmatmul.mubr.f32.gmra.mxu0 %v609
        %v1664 = vpop.f32.mrf.mxu0
        %v1665 = vadd.f32 %v1400, %v1664
        %v1666 = vpop.f32.mrf.mxu0
        %1667 = vmatprep.mubr.f32.mxu0 %v650
        %1668 = vmatmul.mubr.f32.gmra.mxu0 %v610
        %v1669 = vpop.f32.mrf.mxu0
        %v1670 = vadd.f32 %v1405, %v1669
        %v1671 = vpop.f32.mrf.mxu0
        %1672 = vmatprep.mubr.f32.mxu0 %v651
        %1673 = vmatmul.mubr.f32.gmra.mxu0 %v611
        %v1674 = vpop.f32.mrf.mxu0
        %v1675 = vadd.f32 %v1410, %v1674
        %v1676 = vpop.f32.mrf.mxu0
        %1677 = vdwg.mxu0
        %1678 = vmatprep.subr.mxu0 0.0
        %1679 = vmatpush1.msra.mxu0 %v739
        %1680 = vmatprep.subr.mxu0 0.0
        %1681 = vmatpush1.msra.mxu0 %v738
        %1682 = vmatprep.subr.mxu0 0.0
        %1683 = vmatpush1.msra.mxu0 %v737
        %1684 = vmatprep.subr.mxu0 0.0
        %1685 = vmatpush1.msra.mxu0 %v736
        %1686 = vmatprep.subr.mxu0 0.0
        %1687 = vmatpush1.msra.mxu0 %v735
        %1688 = vmatprep.subr.mxu0 0.0
        %1689 = vmatpush1.msra.mxu0 %v734
        %1690 = vmatprep.subr.mxu0 0.0
        %1691 = vmatpush1.msra.mxu0 %v733
        %1692 = vmatprep.subr.mxu0 0.0
        %1693 = vmatpush1.msra.mxu0 %v732
        %1694 = vmatprep.subr.mxu0 0.0
        %1695 = vmatpush1.msra.mxu0 %v731
        %1696 = vmatprep.subr.mxu0 0.0
        %1697 = vmatpush1.msra.mxu0 %v730
        %1698 = vmatprep.subr.mxu0 0.0
        %1699 = vmatpush1.msra.mxu0 %v729
        %1700 = vmatprep.subr.mxu0 0.0
        %1701 = vmatpush1.msra.mxu0 %v728
        %1702 = vmatprep.subr.mxu0 0.0
        %1703 = vmatpush1.msra.mxu0 %v727
        %1704 = vmatprep.subr.mxu0 0.0
        %1705 = vmatpush1.msra.mxu0 %v726
        %1706 = vmatprep.subr.mxu0 0.0
        %1707 = vmatpush1.msra.mxu0 %v725
        %1708 = vmatprep.subr.mxu0 0.0
        %1709 = vmatpush1.msra.mxu0 %v724
        %1710 = vmatprep.subr.mxu0 0.0
        %1711 = vmatpush2.msra.mxu0 0.0
        %1712 = vmatprep.subr.mxu0 0.0
        %1713 = vmatpush2.msra.mxu0 0.0
        %1714 = vmatprep.subr.mxu0 0.0
        %1715 = vmatpush2.msra.mxu0 0.0
        %1716 = vmatprep.subr.mxu0 0.0
        %1717 = vmatpush2.msra.mxu0 0.0
        %1718 = vmatprep.subr.mxu0 0.0
        %1719 = vmatpush2.msra.mxu0 0.0
        %1720 = vmatprep.subr.mxu0 0.0
        %1721 = vmatpush2.msra.mxu0 0.0
        %1722 = vmatprep.subr.mxu0 0.0
        %1723 = vmatpush2.msra.mxu0 0.0
        %1724 = vmatprep.subr.mxu0 0.0
        %1725 = vmatpush2.msra.mxu0 0.0
        %1726 = vmatprep.subr.mxu0 0.0
        %1727 = vmatpush2.msra.mxu0 0.0
        %1728 = vmatprep.subr.mxu0 0.0
        %1729 = vmatpush2.msra.mxu0 0.0
        %1730 = vmatprep.subr.mxu0 0.0
        %1731 = vmatpush2.msra.mxu0 0.0
        %1732 = vmatprep.subr.mxu0 0.0
        %1733 = vmatpush2.msra.mxu0 0.0
        %1734 = vmatprep.subr.mxu0 0.0
        %1735 = vmatpush2.msra.mxu0 0.0
        %1736 = vmatprep.subr.mxu0 0.0
        %1737 = vmatpush2.msra.mxu0 0.0
        %1738 = vmatprep.subr.mxu0 0.0
        %1739 = vmatpush2.msra.mxu0 0.0
        %1740 = vmatprep.subr.mxu0 0.0
        %1741 = vmatpush2.msra.mxu0 0.0
        %1742 = vmatprep.mubr.f32.mxu0 0.0
        %1743 = vmatmul.mubr.f32.gmra.mxu0 %v652
        %v1744 = vpop.f32.mrf.mxu0
        %v1745 = vadd.f32 %v1480, %v1744
        %v1746 = vpop.f32.mrf.mxu0
        %1747 = vmatprep.mubr.f32.mxu0 0.0
        %1748 = vmatmul.mubr.f32.gmra.mxu0 %v653
        %v1749 = vpop.f32.mrf.mxu0
        %v1750 = vadd.f32 %v1485, %v1749
        %v1751 = vpop.f32.mrf.mxu0
        %1752 = vmatprep.mubr.f32.mxu0 0.0
        %1753 = vmatmul.mubr.f32.gmra.mxu0 %v654
        %v1754 = vpop.f32.mrf.mxu0
        %v1755 = vadd.f32 %v1490, %v1754
        %v1756 = vpop.f32.mrf.mxu0
        %1757 = vmatprep.mubr.f32.mxu0 0.0
        %1758 = vmatmul.mubr.f32.gmra.mxu0 %v655
        %v1759 = vpop.f32.mrf.mxu0
        %v1760 = vadd.f32 %v1495, %v1759
        %v1761 = vpop.f32.mrf.mxu0
        %1762 = vmatprep.mubr.f32.mxu0 0.0
        %1763 = vmatmul.mubr.f32.gmra.mxu0 %v656
        %v1764 = vpop.f32.mrf.mxu0
        %v1765 = vadd.f32 %v1500, %v1764
        %v1766 = vpop.f32.mrf.mxu0
        %1767 = vmatprep.mubr.f32.mxu0 0.0
        %1768 = vmatmul.mubr.f32.gmra.mxu0 %v657
        %v1769 = vpop.f32.mrf.mxu0
        %v1770 = vadd.f32 %v1505, %v1769
        %v1771 = vpop.f32.mrf.mxu0
        %1772 = vmatprep.mubr.f32.mxu0 0.0
        %1773 = vmatmul.mubr.f32.gmra.mxu0 %v658
        %v1774 = vpop.f32.mrf.mxu0
        %v1775 = vadd.f32 %v1510, %v1774
        %v1776 = vpop.f32.mrf.mxu0
        %1777 = vmatprep.mubr.f32.mxu0 0.0
        %1778 = vmatmul.mubr.f32.gmra.mxu0 %v659
        %v1779 = vpop.f32.mrf.mxu0
        %v1780 = vadd.f32 %v1515, %v1779
        %v1781 = vpop.f32.mrf.mxu0
        %1782 = vmatprep.mubr.f32.mxu0 0.0
        %1783 = vmatmul.mubr.f32.gmra.mxu0 %v660
        %v1784 = vpop.f32.mrf.mxu0
        %v1785 = vadd.f32 %v1520, %v1784
        %v1786 = vpop.f32.mrf.mxu0
        %1787 = vmatprep.mubr.f32.mxu0 0.0
        %1788 = vmatmul.mubr.f32.gmra.mxu0 %v661
        %v1789 = vpop.f32.mrf.mxu0
        %v1790 = vadd.f32 %v1525, %v1789
        %v1791 = vpop.f32.mrf.mxu0
        %1792 = vmatprep.mubr.f32.mxu0 0.0
        %1793 = vmatmul.mubr.f32.gmra.mxu0 %v662
        %v1794 = vpop.f32.mrf.mxu0
        %v1795 = vadd.f32 %v1530, %v1794
        %v1796 = vpop.f32.mrf.mxu0
        %1797 = vmatprep.mubr.f32.mxu0 0.0
        %1798 = vmatmul.mubr.f32.gmra.mxu0 %v663
        %v1799 = vpop.f32.mrf.mxu0
        %v1800 = vadd.f32 %v1535, %v1799
        %v1801 = vpop.f32.mrf.mxu0
        %1802 = vmatprep.mubr.f32.mxu0 0.0
        %1803 = vmatmul.mubr.f32.gmra.mxu0 %v664
        %v1804 = vpop.f32.mrf.mxu0
        %v1805 = vadd.f32 %v1540, %v1804
        %v1806 = vpop.f32.mrf.mxu0
        %1807 = vmatprep.mubr.f32.mxu0 0.0
        %1808 = vmatmul.mubr.f32.gmra.mxu0 %v665
        %v1809 = vpop.f32.mrf.mxu0
        %v1810 = vadd.f32 %v1545, %v1809
        %v1811 = vpop.f32.mrf.mxu0
        %1812 = vmatprep.mubr.f32.mxu0 0.0
        %1813 = vmatmul.mubr.f32.gmra.mxu0 %v666
        %v1814 = vpop.f32.mrf.mxu0
        %v1815 = vadd.f32 %v1550, %v1814
        %v1816 = vpop.f32.mrf.mxu0
        %1817 = vmatprep.mubr.f32.mxu0 0.0
        %1818 = vmatmul.mubr.f32.gmra.mxu0 %v667
        %v1819 = vpop.f32.mrf.mxu0
        %v1820 = vadd.f32 %v1555, %v1819
        %v1821 = vpop.f32.mrf.mxu0
        %1822 = vmatprep.mubr.f32.mxu0 0.0
        %1823 = vmatmul.mubr.f32.gmra.mxu0 %v668
        %v1824 = vpop.f32.mrf.mxu0
        %v1825 = vadd.f32 %v1560, %v1824
        %v1826 = vpop.f32.mrf.mxu0
        %1827 = vmatprep.mubr.f32.mxu0 0.0
        %1828 = vmatmul.mubr.f32.gmra.mxu0 %v669
        %v1829 = vpop.f32.mrf.mxu0
        %v1830 = vadd.f32 %v1565, %v1829
        %v1831 = vpop.f32.mrf.mxu0
        %1832 = vmatprep.mubr.f32.mxu0 0.0
        %1833 = vmatmul.mubr.f32.gmra.mxu0 %v670
        %v1834 = vpop.f32.mrf.mxu0
        %v1835 = vadd.f32 %v1570, %v1834
        %v1836 = vpop.f32.mrf.mxu0
        %1837 = vmatprep.mubr.f32.mxu0 0.0
        %1838 = vmatmul.mubr.f32.gmra.mxu0 %v671
        %v1839 = vpop.f32.mrf.mxu0
        %v1840 = vadd.f32 %v1575, %v1839
        %v1841 = vpop.f32.mrf.mxu0
        %1842 = vmatprep.mubr.f32.mxu0 0.0
        %1843 = vmatmul.mubr.f32.gmra.mxu0 %v672
        %v1844 = vpop.f32.mrf.mxu0
        %v1845 = vadd.f32 %v1580, %v1844
        %v1846 = vpop.f32.mrf.mxu0
        %1847 = vmatprep.mubr.f32.mxu0 0.0
        %1848 = vmatmul.mubr.f32.gmra.mxu0 %v673
        %v1849 = vpop.f32.mrf.mxu0
        %v1850 = vadd.f32 %v1585, %v1849
        %v1851 = vpop.f32.mrf.mxu0
        %1852 = vmatprep.mubr.f32.mxu0 0.0
        %1853 = vmatmul.mubr.f32.gmra.mxu0 %v674
        %v1854 = vpop.f32.mrf.mxu0
        %v1855 = vadd.f32 %v1590, %v1854
        %v1856 = vpop.f32.mrf.mxu0
        %1857 = vmatprep.mubr.f32.mxu0 0.0
        %1858 = vmatmul.mubr.f32.gmra.mxu0 %v675
        %v1859 = vpop.f32.mrf.mxu0
        %v1860 = vadd.f32 %v1595, %v1859
        %v1861 = vpop.f32.mrf.mxu0
        %1862 = vmatprep.mubr.f32.mxu0 0.0
        %1863 = vmatmul.mubr.f32.gmra.mxu0 %v676
        %v1864 = vpop.f32.mrf.mxu0
        %v1865 = vadd.f32 %v1600, %v1864
        %v1866 = vpop.f32.mrf.mxu0
        %1867 = vmatprep.mubr.f32.mxu0 0.0
        %1868 = vmatmul.mubr.f32.gmra.mxu0 %v677
        %v1869 = vpop.f32.mrf.mxu0
        %v1870 = vadd.f32 %v1605, %v1869
        %v1871 = vpop.f32.mrf.mxu0
        %1872 = vmatprep.mubr.f32.mxu0 0.0
        %1873 = vmatmul.mubr.f32.gmra.mxu0 %v678
        %v1874 = vpop.f32.mrf.mxu0
        %v1875 = vadd.f32 %v1610, %v1874
        %v1876 = vpop.f32.mrf.mxu0
        %1877 = vmatprep.mubr.f32.mxu0 0.0
        %1878 = vmatmul.mubr.f32.gmra.mxu0 %v679
        %v1879 = vpop.f32.mrf.mxu0
        %v1880 = vadd.f32 %v1615, %v1879
        %v1881 = vpop.f32.mrf.mxu0
        %1882 = vmatprep.mubr.f32.mxu0 0.0
        %1883 = vmatmul.mubr.f32.gmra.mxu0 %v680
        %v1884 = vpop.f32.mrf.mxu0
        %v1885 = vadd.f32 %v1620, %v1884
        %v1886 = vpop.f32.mrf.mxu0
        %1887 = vmatprep.mubr.f32.mxu0 0.0
        %1888 = vmatmul.mubr.f32.gmra.mxu0 %v681
        %v1889 = vpop.f32.mrf.mxu0
        %v1890 = vadd.f32 %v1625, %v1889
        %v1891 = vpop.f32.mrf.mxu0
        %1892 = vmatprep.mubr.f32.mxu0 0.0
        %1893 = vmatmul.mubr.f32.gmra.mxu0 %v682
        %v1894 = vpop.f32.mrf.mxu0
        %v1895 = vadd.f32 %v1630, %v1894
        %v1896 = vpop.f32.mrf.mxu0
        %1897 = vmatprep.mubr.f32.mxu0 0.0
        %1898 = vmatmul.mubr.f32.gmra.mxu0 %v683
        %v1899 = vpop.f32.mrf.mxu0
        %v1900 = vadd.f32 %v1635, %v1899
        %v1901 = vpop.f32.mrf.mxu0
        %1902 = vmatprep.mubr.f32.mxu0 0.0
        %1903 = vmatmul.mubr.f32.gmra.mxu0 %v684
        %v1904 = vpop.f32.mrf.mxu0
        %v1905 = vadd.f32 %v1640, %v1904
        %v1906 = vpop.f32.mrf.mxu0
        %1907 = vmatprep.mubr.f32.mxu0 0.0
        %1908 = vmatmul.mubr.f32.gmra.mxu0 %v685
        %v1909 = vpop.f32.mrf.mxu0
        %v1910 = vadd.f32 %v1645, %v1909
        %v1911 = vpop.f32.mrf.mxu0
        %1912 = vmatprep.mubr.f32.mxu0 0.0
        %1913 = vmatmul.mubr.f32.gmra.mxu0 %v686
        %v1914 = vpop.f32.mrf.mxu0
        %v1915 = vadd.f32 %v1650, %v1914
        %v1916 = vpop.f32.mrf.mxu0
        %1917 = vmatprep.mubr.f32.mxu0 0.0
        %1918 = vmatmul.mubr.f32.gmra.mxu0 %v687
        %v1919 = vpop.f32.mrf.mxu0
        %v1920 = vadd.f32 %v1655, %v1919
        %v1921 = vpop.f32.mrf.mxu0
        %1922 = vmatprep.mubr.f32.mxu0 0.0
        %1923 = vmatmul.mubr.f32.gmra.mxu0 %v688
        %v1924 = vpop.f32.mrf.mxu0
        %v1925 = vadd.f32 %v1660, %v1924
        %v1926 = vpop.f32.mrf.mxu0
        %1927 = vmatprep.mubr.f32.mxu0 0.0
        %1928 = vmatmul.mubr.f32.gmra.mxu0 %v689
        %v1929 = vpop.f32.mrf.mxu0
        %v1930 = vadd.f32 %v1665, %v1929
        %v1931 = vpop.f32.mrf.mxu0
        %1932 = vmatprep.mubr.f32.mxu0 0.0
        %1933 = vmatmul.mubr.f32.gmra.mxu0 %v690
        %v1934 = vpop.f32.mrf.mxu0
        %v1935 = vadd.f32 %v1670, %v1934
        %v1936 = vpop.f32.mrf.mxu0
        %1937 = vmatprep.mubr.f32.mxu0 0.0
        %1938 = vmatmul.mubr.f32.gmra.mxu0 %v691
        %v1939 = vpop.f32.mrf.mxu0
        %v1940 = vadd.f32 %v1675, %v1939
        %v1941 = vpop.f32.mrf.mxu0
        %1942 = vdwg.mxu0
        %1943 = vset.pattern.permute.xlu0 1
        %1944 = vperm.xlu0 %1943, %v740
        %v1945 = vpop.permute.xlu0 %1944
        %1946 = vset.pattern.permute.xlu0 1
        %1947 = vperm.xlu0 %1946, %v741
        %v1948 = vpop.permute.xlu0 %1947
        %1949 = vset.pattern.permute.xlu0 1
        %1950 = vperm.xlu0 %1949, %v742
        %v1951 = vpop.permute.xlu0 %1950
        %1952 = vset.pattern.permute.xlu0 1
        %1953 = vperm.xlu0 %1952, %v743
        %v1954 = vpop.permute.xlu0 %1953
        %1955 = vset.pattern.permute.xlu0 1
        %1956 = vperm.xlu0 %1955, %v744
        %v1957 = vpop.permute.xlu0 %1956
        %1958 = vset.pattern.permute.xlu0 1
        %1959 = vperm.xlu0 %1958, %v745
        %v1960 = vpop.permute.xlu0 %1959
        %1961 = vset.pattern.permute.xlu0 1
        %1962 = vperm.xlu0 %1961, %v746
        %v1963 = vpop.permute.xlu0 %1962
        %1964 = vset.pattern.permute.xlu0 1
        %1965 = vperm.xlu0 %1964, %v747
        %v1966 = vpop.permute.xlu0 %1965
        %1967 = vset.pattern.permute.xlu0 1
        %1968 = vperm.xlu0 %1967, %v748
        %v1969 = vpop.permute.xlu0 %1968
        %1970 = vset.pattern.permute.xlu0 1
        %1971 = vperm.xlu0 %1970, %v749
        %v1972 = vpop.permute.xlu0 %1971
        %1973 = vset.pattern.permute.xlu0 1
        %1974 = vperm.xlu0 %1973, %v750
        %v1975 = vpop.permute.xlu0 %1974
        %1976 = vset.pattern.permute.xlu0 1
        %1977 = vperm.xlu0 %1976, %v751
        %v1978 = vpop.permute.xlu0 %1977
        %1979 = vset.pattern.permute.xlu0 1
        %1980 = vperm.xlu0 %1979, %v752
        %v1981 = vpop.permute.xlu0 %1980
        %1982 = vset.pattern.permute.xlu0 1
        %1983 = vperm.xlu0 %1982, %v753
        %v1984 = vpop.permute.xlu0 %1983
        %1985 = vset.pattern.permute.xlu0 1
        %1986 = vperm.xlu0 %1985, %v754
        %v1987 = vpop.permute.xlu0 %1986
        %1988 = vset.pattern.permute.xlu0 1
        %1989 = vperm.xlu0 %1988, %v755
        %v1990 = vpop.permute.xlu0 %1989
        %1991 = vset.pattern.permute.xlu0 1
        %1992 = vperm.xlu0 %1991, %v756
        %v1993 = vpop.permute.xlu0 %1992
        %1994 = vset.pattern.permute.xlu0 1
        %1995 = vperm.xlu0 %1994, %v757
        %v1996 = vpop.permute.xlu0 %1995
        %1997 = vset.pattern.permute.xlu0 1
        %1998 = vperm.xlu0 %1997, %v758
        %v1999 = vpop.permute.xlu0 %1998
        %2000 = vset.pattern.permute.xlu0 1
        %2001 = vperm.xlu0 %2000, %v759
        %v2002 = vpop.permute.xlu0 %2001
        %2003 = vset.pattern.permute.xlu0 1
        %2004 = vperm.xlu0 %2003, %v760
        %v2005 = vpop.permute.xlu0 %2004
        %2006 = vset.pattern.permute.xlu0 1
        %2007 = vperm.xlu0 %2006, %v761
        %v2008 = vpop.permute.xlu0 %2007
        %2009 = vset.pattern.permute.xlu0 1
        %2010 = vperm.xlu0 %2009, %v762
        %v2011 = vpop.permute.xlu0 %2010
        %2012 = vset.pattern.permute.xlu0 1
        %2013 = vperm.xlu0 %2012, %v763
        %v2014 = vpop.permute.xlu0 %2013
        %2015 = vset.pattern.permute.xlu0 1
        %2016 = vperm.xlu0 %2015, %v764
        %v2017 = vpop.permute.xlu0 %2016
        %2018 = vset.pattern.permute.xlu0 1
        %2019 = vperm.xlu0 %2018, %v765
        %v2020 = vpop.permute.xlu0 %2019
        %2021 = vset.pattern.permute.xlu0 1
        %2022 = vperm.xlu0 %2021, %v766
        %v2023 = vpop.permute.xlu0 %2022
        %2024 = vset.pattern.permute.xlu0 1
        %2025 = vperm.xlu0 %2024, %v767
        %v2026 = vpop.permute.xlu0 %2025
        %2027 = vset.pattern.permute.xlu0 1
        %2028 = vperm.xlu0 %2027, %v768
        %v2029 = vpop.permute.xlu0 %2028
        %2030 = vset.pattern.permute.xlu0 1
        %2031 = vperm.xlu0 %2030, %v769
        %v2032 = vpop.permute.xlu0 %2031
        %2033 = vset.pattern.permute.xlu0 1
        %2034 = vperm.xlu0 %2033, %v770
        %v2035 = vpop.permute.xlu0 %2034
        %2036 = vset.pattern.permute.xlu0 1
        %2037 = vperm.xlu0 %2036, %v771
        %v2038 = vpop.permute.xlu0 %2037
        %2039 = vset.pattern.permute.xlu0 1
        %2040 = vperm.xlu0 %2039, %v772
        %v2041 = vpop.permute.xlu0 %2040
        %2042 = vset.pattern.permute.xlu0 1
        %2043 = vperm.xlu0 %2042, %v773
        %v2044 = vpop.permute.xlu0 %2043
        %2045 = vset.pattern.permute.xlu0 1
        %2046 = vperm.xlu0 %2045, %v774
        %v2047 = vpop.permute.xlu0 %2046
        %2048 = vset.pattern.permute.xlu0 1
        %2049 = vperm.xlu0 %2048, %v775
        %v2050 = vpop.permute.xlu0 %2049
        %2051 = vset.pattern.permute.xlu0 1
        %2052 = vperm.xlu0 %2051, %v776
        %v2053 = vpop.permute.xlu0 %2052
        %2054 = vset.pattern.permute.xlu0 1
        %2055 = vperm.xlu0 %2054, %v777
        %v2056 = vpop.permute.xlu0 %2055
        %2057 = vset.pattern.permute.xlu0 1
        %2058 = vperm.xlu0 %2057, %v778
        %v2059 = vpop.permute.xlu0 %2058
        %2060 = vset.pattern.permute.xlu0 1
        %2061 = vperm.xlu0 %2060, %v779
        %v2062 = vpop.permute.xlu0 %2061
        %vm2063 = vcmp.eq.s32.totalorder %v1945, %v781
        %vm2064 = vcmp.eq.s32.totalorder %v1948, %v781
        %vm2065 = vcmp.eq.s32.totalorder %v1951, %v781
        %vm2066 = vcmp.eq.s32.totalorder %v1954, %v781
        %vm2067 = vcmp.eq.s32.totalorder %v1957, %v781
        %vm2068 = vcmp.eq.s32.totalorder %v1960, %v781
        %vm2069 = vcmp.eq.s32.totalorder %v1963, %v781
        %vm2070 = vcmp.eq.s32.totalorder %v1966, %v781
        %vm2071 = vcmp.eq.s32.totalorder %v1969, %v781
        %vm2072 = vcmp.eq.s32.totalorder %v1972, %v781
        %vm2073 = vcmp.eq.s32.totalorder %v1975, %v781
        %vm2074 = vcmp.eq.s32.totalorder %v1978, %v781
        %vm2075 = vcmp.eq.s32.totalorder %v1981, %v781
        %vm2076 = vcmp.eq.s32.totalorder %v1984, %v781
        %vm2077 = vcmp.eq.s32.totalorder %v1987, %v781
        %vm2078 = vcmp.eq.s32.totalorder %v1990, %v781
        %vm2079 = vcmp.eq.s32.totalorder %v1993, %v781
        %vm2080 = vcmp.eq.s32.totalorder %v1996, %v781
        %vm2081 = vcmp.eq.s32.totalorder %v1999, %v781
        %vm2082 = vcmp.eq.s32.totalorder %v2002, %v781
        %vm2083 = vcmp.eq.s32.totalorder %v2005, %v781
        %vm2084 = vcmp.eq.s32.totalorder %v2008, %v781
        %vm2085 = vcmp.eq.s32.totalorder %v2011, %v781
        %vm2086 = vcmp.eq.s32.totalorder %v2014, %v781
        %vm2087 = vcmp.eq.s32.totalorder %v2017, %v781
        %vm2088 = vcmp.eq.s32.totalorder %v2020, %v781
        %vm2089 = vcmp.eq.s32.totalorder %v2023, %v781
        %vm2090 = vcmp.eq.s32.totalorder %v2026, %v781
        %vm2091 = vcmp.eq.s32.totalorder %v2029, %v781
        %vm2092 = vcmp.eq.s32.totalorder %v2032, %v781
        %vm2093 = vcmp.eq.s32.totalorder %v2035, %v781
        %vm2094 = vcmp.eq.s32.totalorder %v2038, %v781
        %vm2095 = vcmp.eq.s32.totalorder %v2041, %v781
        %vm2096 = vcmp.eq.s32.totalorder %v2044, %v781
        %vm2097 = vcmp.eq.s32.totalorder %v2047, %v781
        %vm2098 = vcmp.eq.s32.totalorder %v2050, %v781
        %vm2099 = vcmp.eq.s32.totalorder %v2053, %v781
        %vm2100 = vcmp.eq.s32.totalorder %v2056, %v781
        %vm2101 = vcmp.eq.s32.totalorder %v2059, %v781
        %vm2102 = vcmp.eq.s32.totalorder %v2062, %v781
        %v2103 = vsel %vm2063, 1, 0
        %v2104 = vsel %vm2064, 1, 0
        %v2105 = vsel %vm2065, 1, 0
        %v2106 = vsel %vm2066, 1, 0
        %v2107 = vsel %vm2067, 1, 0
        %v2108 = vsel %vm2068, 1, 0
        %v2109 = vsel %vm2069, 1, 0
        %v2110 = vsel %vm2070, 1, 0
        %v2111 = vsel %vm2071, 1, 0
        %v2112 = vsel %vm2072, 1, 0
        %v2113 = vsel %vm2073, 1, 0
        %v2114 = vsel %vm2074, 1, 0
        %v2115 = vsel %vm2075, 1, 0
        %v2116 = vsel %vm2076, 1, 0
        %v2117 = vsel %vm2077, 1, 0
        %v2118 = vsel %vm2078, 1, 0
        %v2119 = vsel %vm2079, 1, 0
        %v2120 = vsel %vm2080, 1, 0
        %v2121 = vsel %vm2081, 1, 0
        %v2122 = vsel %vm2082, 1, 0
        %v2123 = vsel %vm2083, 1, 0
        %v2124 = vsel %vm2084, 1, 0
        %v2125 = vsel %vm2085, 1, 0
        %v2126 = vsel %vm2086, 1, 0
        %v2127 = vsel %vm2087, 1, 0
        %v2128 = vsel %vm2088, 1, 0
        %v2129 = vsel %vm2089, 1, 0
        %v2130 = vsel %vm2090, 1, 0
        %v2131 = vsel %vm2091, 1, 0
        %v2132 = vsel %vm2092, 1, 0
        %v2133 = vsel %vm2093, 1, 0
        %v2134 = vsel %vm2094, 1, 0
        %v2135 = vsel %vm2095, 1, 0
        %v2136 = vsel %vm2096, 1, 0
        %v2137 = vsel %vm2097, 1, 0
        %v2138 = vsel %vm2098, 1, 0
        %v2139 = vsel %vm2099, 1, 0
        %v2140 = vsel %vm2100, 1, 0
        %v2141 = vsel %vm2101, 1, 0
        %v2142 = vsel %vm2102, 1, 0
        %v2143 = vcvt.s32.f32 %v2103
        %v2144 = vcvt.s32.f32 %v2104
        %v2145 = vcvt.s32.f32 %v2105
        %v2146 = vcvt.s32.f32 %v2106
        %v2147 = vcvt.s32.f32 %v2107
        %v2148 = vcvt.s32.f32 %v2108
        %v2149 = vcvt.s32.f32 %v2109
        %v2150 = vcvt.s32.f32 %v2110
        %v2151 = vcvt.s32.f32 %v2111
        %v2152 = vcvt.s32.f32 %v2112
        %v2153 = vcvt.s32.f32 %v2113
        %v2154 = vcvt.s32.f32 %v2114
        %v2155 = vcvt.s32.f32 %v2115
        %v2156 = vcvt.s32.f32 %v2116
        %v2157 = vcvt.s32.f32 %v2117
        %v2158 = vcvt.s32.f32 %v2118
        %v2159 = vcvt.s32.f32 %v2119
        %v2160 = vcvt.s32.f32 %v2120
        %v2161 = vcvt.s32.f32 %v2121
        %v2162 = vcvt.s32.f32 %v2122
        %v2163 = vcvt.s32.f32 %v2123
        %v2164 = vcvt.s32.f32 %v2124
        %v2165 = vcvt.s32.f32 %v2125
        %v2166 = vcvt.s32.f32 %v2126
        %v2167 = vcvt.s32.f32 %v2127
        %v2168 = vcvt.s32.f32 %v2128
        %v2169 = vcvt.s32.f32 %v2129
        %v2170 = vcvt.s32.f32 %v2130
        %v2171 = vcvt.s32.f32 %v2131
        %v2172 = vcvt.s32.f32 %v2132
        %v2173 = vcvt.s32.f32 %v2133
        %v2174 = vcvt.s32.f32 %v2134
        %v2175 = vcvt.s32.f32 %v2135
        %v2176 = vcvt.s32.f32 %v2136
        %v2177 = vcvt.s32.f32 %v2137
        %v2178 = vcvt.s32.f32 %v2138
        %v2179 = vcvt.s32.f32 %v2139
        %v2180 = vcvt.s32.f32 %v2140
        %v2181 = vcvt.s32.f32 %v2141
        %v2182 = vcvt.s32.f32 %v2142
        %s2183 = scalar_lea.vmem %s5, 4
        %v2184 = vld [vmem:[%s2183] sm:$0xf]
        %v2186 = vsel %vm1023, %v2143, 0
        %v2189 = vsel %vm1023, %v2144, 0
        %v2192 = vsel %vm1023, %v2145, 0
        %v2195 = vsel %vm1023, %v2146, 0
        %v2198 = vsel %vm1023, %v2147, 0
        %v2201 = vsel %vm1023, %v2148, 0
        %v2204 = vsel %vm1023, %v2149, 0
        %v2207 = vsel %vm1023, %v2150, 0
        %v2210 = vsel %vm1023, %v2151, 0
        %v2213 = vsel %vm1023, %v2152, 0
        %v2216 = vsel %vm1023, %v2153, 0
        %v2219 = vsel %vm1023, %v2154, 0
        %v2222 = vsel %vm1023, %v2155, 0
        %v2225 = vsel %vm1023, %v2156, 0
        %v2228 = vsel %vm1023, %v2157, 0
        %v2231 = vsel %vm1023, %v2158, 0
        %v2234 = vsel %vm1023, %v2159, 0
        %v2237 = vsel %vm1023, %v2160, 0
        %v2240 = vsel %vm1023, %v2161, 0
        %v2243 = vsel %vm1023, %v2162, 0
        %v2246 = vsel %vm1023, %v2163, 0
        %v2249 = vsel %vm1023, %v2164, 0
        %v2252 = vsel %vm1023, %v2165, 0
        %v2255 = vsel %vm1023, %v2166, 0
        %v2258 = vsel %vm1023, %v2167, 0
        %v2261 = vsel %vm1023, %v2168, 0
        %v2264 = vsel %vm1023, %v2169, 0
        %v2267 = vsel %vm1023, %v2170, 0
        %v2270 = vsel %vm1023, %v2171, 0
        %v2273 = vsel %vm1023, %v2172, 0
        %v2276 = vsel %vm1023, %v2173, 0
        %v2279 = vsel %vm1023, %v2174, 0
        %v2282 = vsel %vm1023, %v2175, 0
        %v2285 = vsel %vm1023, %v2176, 0
        %v2288 = vsel %vm1023, %v2177, 0
        %v2291 = vsel %vm1023, %v2178, 0
        %v2294 = vsel %vm1023, %v2179, 0
        %v2297 = vsel %vm1023, %v2180, 0
        %v2300 = vsel %vm1023, %v2181, 0
        %v2303 = vsel %vm1023, %v2182, 0
        %v2306 = vsel %vm1144, %v2184, 0
        %2308 = vmatprep.subr.mxu0 0.0
        %2309 = vmatpush1.msra.mxu0 0.0
        %2310 = vmatprep.subr.mxu0 0.0
        %2311 = vmatpush1.msra.mxu0 0.0
        %2312 = vmatprep.subr.mxu0 0.0
        %2313 = vmatpush1.msra.mxu0 0.0
        %2314 = vmatprep.subr.mxu0 0.0
        %2315 = vmatpush1.msra.mxu0 0.0
        %2316 = vmatprep.subr.mxu0 0.0
        %2317 = vmatpush1.msra.mxu0 0.0
        %2318 = vmatprep.subr.mxu0 0.0
        %2319 = vmatpush1.msra.mxu0 0.0
        %2320 = vmatprep.subr.mxu0 0.0
        %2321 = vmatpush1.msra.mxu0 0.0
        %2322 = vmatprep.subr.mxu0 0.0
        %2323 = vmatpush1.msra.mxu0 0.0
        %2324 = vmatprep.subr.mxu0 0.0
        %2325 = vmatpush1.msra.mxu0 0.0
        %2326 = vmatprep.subr.mxu0 0.0
        %2327 = vmatpush1.msra.mxu0 0.0
        %2328 = vmatprep.subr.mxu0 0.0
        %2329 = vmatpush1.msra.mxu0 0.0
        %2330 = vmatprep.subr.mxu0 0.0
        %2331 = vmatpush1.msra.mxu0 0.0
        %2332 = vmatprep.subr.mxu0 0.0
        %2333 = vmatpush1.msra.mxu0 0.0
        %2334 = vmatprep.subr.mxu0 0.0
        %2335 = vmatpush1.msra.mxu0 0.0
        %2336 = vmatprep.subr.mxu0 0.0
        %2337 = vmatpush1.msra.mxu0 0.0
        %2338 = vmatprep.subr.mxu0 0.0
        %2339 = vmatpush1.msra.mxu0 %v2306
        %2340 = vmatprep.subr.mxu0 0.0
        %2341 = vmatpush2.msra.mxu0 0.0
        %2342 = vmatprep.subr.mxu0 0.0
        %2343 = vmatpush2.msra.mxu0 0.0
        %2344 = vmatprep.subr.mxu0 0.0
        %2345 = vmatpush2.msra.mxu0 0.0
        %2346 = vmatprep.subr.mxu0 0.0
        %2347 = vmatpush2.msra.mxu0 0.0
        %2348 = vmatprep.subr.mxu0 0.0
        %2349 = vmatpush2.msra.mxu0 0.0
        %2350 = vmatprep.subr.mxu0 0.0
        %2351 = vmatpush2.msra.mxu0 0.0
        %2352 = vmatprep.subr.mxu0 0.0
        %2353 = vmatpush2.msra.mxu0 0.0
        %2354 = vmatprep.subr.mxu0 0.0
        %2355 = vmatpush2.msra.mxu0 0.0
        %2356 = vmatprep.subr.mxu0 0.0
        %2357 = vmatpush2.msra.mxu0 0.0
        %2358 = vmatprep.subr.mxu0 0.0
        %2359 = vmatpush2.msra.mxu0 0.0
        %2360 = vmatprep.subr.mxu0 0.0
        %2361 = vmatpush2.msra.mxu0 0.0
        %2362 = vmatprep.subr.mxu0 0.0
        %2363 = vmatpush2.msra.mxu0 0.0
        %2364 = vmatprep.subr.mxu0 0.0
        %2365 = vmatpush2.msra.mxu0 0.0
        %2366 = vmatprep.subr.mxu0 0.0
        %2367 = vmatpush2.msra.mxu0 0.0
        %2368 = vmatprep.subr.mxu0 0.0
        %2369 = vmatpush2.msra.mxu0 0.0
        %2370 = vmatprep.subr.mxu0 0.0
        %2371 = vmatpush2.msra.mxu0 0.0
        %2372 = vmatprep.mubr.f32.mxu0 0.0
        %2373 = vmatmul.mubr.f32.gmra.mxu0 %v2186
        %v2374 = vpop.f32.mrf.mxu0
        %v2375 = vadd.f32 0.0, %v2374
        %v2376 = vpop.f32.mrf.mxu0
        %2377 = vmatprep.mubr.f32.mxu0 0.0
        %2378 = vmatmul.mubr.f32.gmra.mxu0 %v2189
        %v2379 = vpop.f32.mrf.mxu0
        %v2380 = vadd.f32 0.0, %v2379
        %v2381 = vpop.f32.mrf.mxu0
        %2382 = vmatprep.mubr.f32.mxu0 0.0
        %2383 = vmatmul.mubr.f32.gmra.mxu0 %v2192
        %v2384 = vpop.f32.mrf.mxu0
        %v2385 = vadd.f32 0.0, %v2384
        %v2386 = vpop.f32.mrf.mxu0
        %2387 = vmatprep.mubr.f32.mxu0 0.0
        %2388 = vmatmul.mubr.f32.gmra.mxu0 %v2195
        %v2389 = vpop.f32.mrf.mxu0
        %v2390 = vadd.f32 0.0, %v2389
        %v2391 = vpop.f32.mrf.mxu0
        %2392 = vmatprep.mubr.f32.mxu0 0.0
        %2393 = vmatmul.mubr.f32.gmra.mxu0 %v2198
        %v2394 = vpop.f32.mrf.mxu0
        %v2395 = vadd.f32 0.0, %v2394
        %v2396 = vpop.f32.mrf.mxu0
        %2397 = vmatprep.mubr.f32.mxu0 0.0
        %2398 = vmatmul.mubr.f32.gmra.mxu0 %v2201
        %v2399 = vpop.f32.mrf.mxu0
        %v2400 = vadd.f32 0.0, %v2399
        %v2401 = vpop.f32.mrf.mxu0
        %2402 = vmatprep.mubr.f32.mxu0 0.0
        %2403 = vmatmul.mubr.f32.gmra.mxu0 %v2204
        %v2404 = vpop.f32.mrf.mxu0
        %v2405 = vadd.f32 0.0, %v2404
        %v2406 = vpop.f32.mrf.mxu0
        %2407 = vmatprep.mubr.f32.mxu0 0.0
        %2408 = vmatmul.mubr.f32.gmra.mxu0 %v2207
        %v2409 = vpop.f32.mrf.mxu0
        %v2410 = vadd.f32 0.0, %v2409
        %v2411 = vpop.f32.mrf.mxu0
        %2412 = vmatprep.mubr.f32.mxu0 0.0
        %2413 = vmatmul.mubr.f32.gmra.mxu0 %v2210
        %v2414 = vpop.f32.mrf.mxu0
        %v2415 = vadd.f32 0.0, %v2414
        %v2416 = vpop.f32.mrf.mxu0
        %2417 = vmatprep.mubr.f32.mxu0 0.0
        %2418 = vmatmul.mubr.f32.gmra.mxu0 %v2213
        %v2419 = vpop.f32.mrf.mxu0
        %v2420 = vadd.f32 0.0, %v2419
        %v2421 = vpop.f32.mrf.mxu0
        %2422 = vmatprep.mubr.f32.mxu0 0.0
        %2423 = vmatmul.mubr.f32.gmra.mxu0 %v2216
        %v2424 = vpop.f32.mrf.mxu0
        %v2425 = vadd.f32 0.0, %v2424
        %v2426 = vpop.f32.mrf.mxu0
        %2427 = vmatprep.mubr.f32.mxu0 0.0
        %2428 = vmatmul.mubr.f32.gmra.mxu0 %v2219
        %v2429 = vpop.f32.mrf.mxu0
        %v2430 = vadd.f32 0.0, %v2429
        %v2431 = vpop.f32.mrf.mxu0
        %2432 = vmatprep.mubr.f32.mxu0 0.0
        %2433 = vmatmul.mubr.f32.gmra.mxu0 %v2222
        %v2434 = vpop.f32.mrf.mxu0
        %v2435 = vadd.f32 0.0, %v2434
        %v2436 = vpop.f32.mrf.mxu0
        %2437 = vmatprep.mubr.f32.mxu0 0.0
        %2438 = vmatmul.mubr.f32.gmra.mxu0 %v2225
        %v2439 = vpop.f32.mrf.mxu0
        %v2440 = vadd.f32 0.0, %v2439
        %v2441 = vpop.f32.mrf.mxu0
        %2442 = vmatprep.mubr.f32.mxu0 0.0
        %2443 = vmatmul.mubr.f32.gmra.mxu0 %v2228
        %v2444 = vpop.f32.mrf.mxu0
        %v2445 = vadd.f32 0.0, %v2444
        %v2446 = vpop.f32.mrf.mxu0
        %2447 = vmatprep.mubr.f32.mxu0 0.0
        %2448 = vmatmul.mubr.f32.gmra.mxu0 %v2231
        %v2449 = vpop.f32.mrf.mxu0
        %v2450 = vadd.f32 0.0, %v2449
        %v2451 = vpop.f32.mrf.mxu0
        %2452 = vmatprep.mubr.f32.mxu0 0.0
        %2453 = vmatmul.mubr.f32.gmra.mxu0 %v2234
        %v2454 = vpop.f32.mrf.mxu0
        %v2455 = vadd.f32 0.0, %v2454
        %v2456 = vpop.f32.mrf.mxu0
        %2457 = vmatprep.mubr.f32.mxu0 0.0
        %2458 = vmatmul.mubr.f32.gmra.mxu0 %v2237
        %v2459 = vpop.f32.mrf.mxu0
        %v2460 = vadd.f32 0.0, %v2459
        %v2461 = vpop.f32.mrf.mxu0
        %2462 = vmatprep.mubr.f32.mxu0 0.0
        %2463 = vmatmul.mubr.f32.gmra.mxu0 %v2240
        %v2464 = vpop.f32.mrf.mxu0
        %v2465 = vadd.f32 0.0, %v2464
        %v2466 = vpop.f32.mrf.mxu0
        %2467 = vmatprep.mubr.f32.mxu0 0.0
        %2468 = vmatmul.mubr.f32.gmra.mxu0 %v2243
        %v2469 = vpop.f32.mrf.mxu0
        %v2470 = vadd.f32 0.0, %v2469
        %v2471 = vpop.f32.mrf.mxu0
        %2472 = vmatprep.mubr.f32.mxu0 0.0
        %2473 = vmatmul.mubr.f32.gmra.mxu0 %v2246
        %v2474 = vpop.f32.mrf.mxu0
        %v2475 = vadd.f32 0.0, %v2474
        %v2476 = vpop.f32.mrf.mxu0
        %2477 = vmatprep.mubr.f32.mxu0 0.0
        %2478 = vmatmul.mubr.f32.gmra.mxu0 %v2249
        %v2479 = vpop.f32.mrf.mxu0
        %v2480 = vadd.f32 0.0, %v2479
        %v2481 = vpop.f32.mrf.mxu0
        %2482 = vmatprep.mubr.f32.mxu0 0.0
        %2483 = vmatmul.mubr.f32.gmra.mxu0 %v2252
        %v2484 = vpop.f32.mrf.mxu0
        %v2485 = vadd.f32 0.0, %v2484
        %v2486 = vpop.f32.mrf.mxu0
        %2487 = vmatprep.mubr.f32.mxu0 0.0
        %2488 = vmatmul.mubr.f32.gmra.mxu0 %v2255
        %v2489 = vpop.f32.mrf.mxu0
        %v2490 = vadd.f32 0.0, %v2489
        %v2491 = vpop.f32.mrf.mxu0
        %2492 = vmatprep.mubr.f32.mxu0 0.0
        %2493 = vmatmul.mubr.f32.gmra.mxu0 %v2258
        %v2494 = vpop.f32.mrf.mxu0
        %v2495 = vadd.f32 0.0, %v2494
        %v2496 = vpop.f32.mrf.mxu0
        %2497 = vmatprep.mubr.f32.mxu0 0.0
        %2498 = vmatmul.mubr.f32.gmra.mxu0 %v2261
        %v2499 = vpop.f32.mrf.mxu0
        %v2500 = vadd.f32 0.0, %v2499
        %v2501 = vpop.f32.mrf.mxu0
        %2502 = vmatprep.mubr.f32.mxu0 0.0
        %2503 = vmatmul.mubr.f32.gmra.mxu0 %v2264
        %v2504 = vpop.f32.mrf.mxu0
        %v2505 = vadd.f32 0.0, %v2504
        %v2506 = vpop.f32.mrf.mxu0
        %2507 = vmatprep.mubr.f32.mxu0 0.0
        %2508 = vmatmul.mubr.f32.gmra.mxu0 %v2267
        %v2509 = vpop.f32.mrf.mxu0
        %v2510 = vadd.f32 0.0, %v2509
        %v2511 = vpop.f32.mrf.mxu0
        %2512 = vmatprep.mubr.f32.mxu0 0.0
        %2513 = vmatmul.mubr.f32.gmra.mxu0 %v2270
        %v2514 = vpop.f32.mrf.mxu0
        %v2515 = vadd.f32 0.0, %v2514
        %v2516 = vpop.f32.mrf.mxu0
        %2517 = vmatprep.mubr.f32.mxu0 0.0
        %2518 = vmatmul.mubr.f32.gmra.mxu0 %v2273
        %v2519 = vpop.f32.mrf.mxu0
        %v2520 = vadd.f32 0.0, %v2519
        %v2521 = vpop.f32.mrf.mxu0
        %2522 = vmatprep.mubr.f32.mxu0 0.0
        %2523 = vmatmul.mubr.f32.gmra.mxu0 %v2276
        %v2524 = vpop.f32.mrf.mxu0
        %v2525 = vadd.f32 0.0, %v2524
        %v2526 = vpop.f32.mrf.mxu0
        %2527 = vmatprep.mubr.f32.mxu0 0.0
        %2528 = vmatmul.mubr.f32.gmra.mxu0 %v2279
        %v2529 = vpop.f32.mrf.mxu0
        %v2530 = vadd.f32 0.0, %v2529
        %v2531 = vpop.f32.mrf.mxu0
        %2532 = vmatprep.mubr.f32.mxu0 0.0
        %2533 = vmatmul.mubr.f32.gmra.mxu0 %v2282
        %v2534 = vpop.f32.mrf.mxu0
        %v2535 = vadd.f32 0.0, %v2534
        %v2536 = vpop.f32.mrf.mxu0
        %2537 = vmatprep.mubr.f32.mxu0 0.0
        %2538 = vmatmul.mubr.f32.gmra.mxu0 %v2285
        %v2539 = vpop.f32.mrf.mxu0
        %v2540 = vadd.f32 0.0, %v2539
        %v2541 = vpop.f32.mrf.mxu0
        %2542 = vmatprep.mubr.f32.mxu0 0.0
        %2543 = vmatmul.mubr.f32.gmra.mxu0 %v2288
        %v2544 = vpop.f32.mrf.mxu0
        %v2545 = vadd.f32 0.0, %v2544
        %v2546 = vpop.f32.mrf.mxu0
        %2547 = vmatprep.mubr.f32.mxu0 0.0
        %2548 = vmatmul.mubr.f32.gmra.mxu0 %v2291
        %v2549 = vpop.f32.mrf.mxu0
        %v2550 = vadd.f32 0.0, %v2549
        %v2551 = vpop.f32.mrf.mxu0
        %2552 = vmatprep.mubr.f32.mxu0 0.0
        %2553 = vmatmul.mubr.f32.gmra.mxu0 %v2294
        %v2554 = vpop.f32.mrf.mxu0
        %v2555 = vadd.f32 0.0, %v2554
        %v2556 = vpop.f32.mrf.mxu0
        %2557 = vmatprep.mubr.f32.mxu0 0.0
        %2558 = vmatmul.mubr.f32.gmra.mxu0 %v2297
        %v2559 = vpop.f32.mrf.mxu0
        %v2560 = vadd.f32 0.0, %v2559
        %v2561 = vpop.f32.mrf.mxu0
        %2562 = vmatprep.mubr.f32.mxu0 0.0
        %2563 = vmatmul.mubr.f32.gmra.mxu0 %v2300
        %v2564 = vpop.f32.mrf.mxu0
        %v2565 = vadd.f32 0.0, %v2564
        %v2566 = vpop.f32.mrf.mxu0
        %2567 = vmatprep.mubr.f32.mxu0 0.0
        %2568 = vmatmul.mubr.f32.gmra.mxu0 %v2303
        %v2569 = vpop.f32.mrf.mxu0
        %v2570 = vadd.f32 0.0, %v2569
        %v2571 = vpop.f32.mrf.mxu0
        %2572 = vdwg.mxu0
        %v2573 = vadd.f32 %v1745, %v2375
        %v2574 = vadd.f32 %v1750, %v2380
        %v2575 = vadd.f32 %v1755, %v2385
        %v2576 = vadd.f32 %v1760, %v2390
        %v2577 = vadd.f32 %v1765, %v2395
        %v2578 = vadd.f32 %v1770, %v2400
        %v2579 = vadd.f32 %v1775, %v2405
        %v2580 = vadd.f32 %v1780, %v2410
        %v2581 = vadd.f32 %v1785, %v2415
        %v2582 = vadd.f32 %v1790, %v2420
        %v2583 = vadd.f32 %v1795, %v2425
        %v2584 = vadd.f32 %v1800, %v2430
        %v2585 = vadd.f32 %v1805, %v2435
        %v2586 = vadd.f32 %v1810, %v2440
        %v2587 = vadd.f32 %v1815, %v2445
        %v2588 = vadd.f32 %v1820, %v2450
        %v2589 = vadd.f32 %v1825, %v2455
        %v2590 = vadd.f32 %v1830, %v2460
        %v2591 = vadd.f32 %v1835, %v2465
        %v2592 = vadd.f32 %v1840, %v2470
        %v2593 = vadd.f32 %v1845, %v2475
        %v2594 = vadd.f32 %v1850, %v2480
        %v2595 = vadd.f32 %v1855, %v2485
        %v2596 = vadd.f32 %v1860, %v2490
        %v2597 = vadd.f32 %v1865, %v2495
        %v2598 = vadd.f32 %v1870, %v2500
        %v2599 = vadd.f32 %v1875, %v2505
        %v2600 = vadd.f32 %v1880, %v2510
        %v2601 = vadd.f32 %v1885, %v2515
        %v2602 = vadd.f32 %v1890, %v2520
        %v2603 = vadd.f32 %v1895, %v2525
        %v2604 = vadd.f32 %v1900, %v2530
        %v2605 = vadd.f32 %v1905, %v2535
        %v2606 = vadd.f32 %v1910, %v2540
        %v2607 = vadd.f32 %v1915, %v2545
        %v2608 = vadd.f32 %v1920, %v2550
        %v2609 = vadd.f32 %v1925, %v2555
        %v2610 = vadd.f32 %v1930, %v2560
        %v2611 = vadd.f32 %v1935, %v2565
        %v2612 = vadd.f32 %v1940, %v2570
        %2613 = vset.pattern.permute.xlu0 2
        %2614 = vperm.xlu0 %2613, %v740
        %v2615 = vpop.permute.xlu0 %2614
        %2616 = vset.pattern.permute.xlu0 2
        %2617 = vperm.xlu0 %2616, %v741
        %v2618 = vpop.permute.xlu0 %2617
        %2619 = vset.pattern.permute.xlu0 2
        %2620 = vperm.xlu0 %2619, %v742
        %v2621 = vpop.permute.xlu0 %2620
        %2622 = vset.pattern.permute.xlu0 2
        %2623 = vperm.xlu0 %2622, %v743
        %v2624 = vpop.permute.xlu0 %2623
        %2625 = vset.pattern.permute.xlu0 2
        %2626 = vperm.xlu0 %2625, %v744
        %v2627 = vpop.permute.xlu0 %2626
        %2628 = vset.pattern.permute.xlu0 2
        %2629 = vperm.xlu0 %2628, %v745
        %v2630 = vpop.permute.xlu0 %2629
        %2631 = vset.pattern.permute.xlu0 2
        %2632 = vperm.xlu0 %2631, %v746
        %v2633 = vpop.permute.xlu0 %2632
        %2634 = vset.pattern.permute.xlu0 2
        %2635 = vperm.xlu0 %2634, %v747
        %v2636 = vpop.permute.xlu0 %2635
        %2637 = vset.pattern.permute.xlu0 2
        %2638 = vperm.xlu0 %2637, %v748
        %v2639 = vpop.permute.xlu0 %2638
        %2640 = vset.pattern.permute.xlu0 2
        %2641 = vperm.xlu0 %2640, %v749
        %v2642 = vpop.permute.xlu0 %2641
        %2643 = vset.pattern.permute.xlu0 2
        %2644 = vperm.xlu0 %2643, %v750
        %v2645 = vpop.permute.xlu0 %2644
        %2646 = vset.pattern.permute.xlu0 2
        %2647 = vperm.xlu0 %2646, %v751
        %v2648 = vpop.permute.xlu0 %2647
        %2649 = vset.pattern.permute.xlu0 2
        %2650 = vperm.xlu0 %2649, %v752
        %v2651 = vpop.permute.xlu0 %2650
        %2652 = vset.pattern.permute.xlu0 2
        %2653 = vperm.xlu0 %2652, %v753
        %v2654 = vpop.permute.xlu0 %2653
        %2655 = vset.pattern.permute.xlu0 2
        %2656 = vperm.xlu0 %2655, %v754
        %v2657 = vpop.permute.xlu0 %2656
        %2658 = vset.pattern.permute.xlu0 2
        %2659 = vperm.xlu0 %2658, %v755
        %v2660 = vpop.permute.xlu0 %2659
        %2661 = vset.pattern.permute.xlu0 2
        %2662 = vperm.xlu0 %2661, %v756
        %v2663 = vpop.permute.xlu0 %2662
        %2664 = vset.pattern.permute.xlu0 2
        %2665 = vperm.xlu0 %2664, %v757
        %v2666 = vpop.permute.xlu0 %2665
        %2667 = vset.pattern.permute.xlu0 2
        %2668 = vperm.xlu0 %2667, %v758
        %v2669 = vpop.permute.xlu0 %2668
        %2670 = vset.pattern.permute.xlu0 2
        %2671 = vperm.xlu0 %2670, %v759
        %v2672 = vpop.permute.xlu0 %2671
        %2673 = vset.pattern.permute.xlu0 2
        %2674 = vperm.xlu0 %2673, %v760
        %v2675 = vpop.permute.xlu0 %2674
        %2676 = vset.pattern.permute.xlu0 2
        %2677 = vperm.xlu0 %2676, %v761
        %v2678 = vpop.permute.xlu0 %2677
        %2679 = vset.pattern.permute.xlu0 2
        %2680 = vperm.xlu0 %2679, %v762
        %v2681 = vpop.permute.xlu0 %2680
        %2682 = vset.pattern.permute.xlu0 2
        %2683 = vperm.xlu0 %2682, %v763
        %v2684 = vpop.permute.xlu0 %2683
        %2685 = vset.pattern.permute.xlu0 2
        %2686 = vperm.xlu0 %2685, %v764
        %v2687 = vpop.permute.xlu0 %2686
        %2688 = vset.pattern.permute.xlu0 2
        %2689 = vperm.xlu0 %2688, %v765
        %v2690 = vpop.permute.xlu0 %2689
        %2691 = vset.pattern.permute.xlu0 2
        %2692 = vperm.xlu0 %2691, %v766
        %v2693 = vpop.permute.xlu0 %2692
        %2694 = vset.pattern.permute.xlu0 2
        %2695 = vperm.xlu0 %2694, %v767
        %v2696 = vpop.permute.xlu0 %2695
        %2697 = vset.pattern.permute.xlu0 2
        %2698 = vperm.xlu0 %2697, %v768
        %v2699 = vpop.permute.xlu0 %2698
        %2700 = vset.pattern.permute.xlu0 2
        %2701 = vperm.xlu0 %2700, %v769
        %v2702 = vpop.permute.xlu0 %2701
        %2703 = vset.pattern.permute.xlu0 2
        %2704 = vperm.xlu0 %2703, %v770
        %v2705 = vpop.permute.xlu0 %2704
        %2706 = vset.pattern.permute.xlu0 2
        %2707 = vperm.xlu0 %2706, %v771
        %v2708 = vpop.permute.xlu0 %2707
        %2709 = vset.pattern.permute.xlu0 2
        %2710 = vperm.xlu0 %2709, %v772
        %v2711 = vpop.permute.xlu0 %2710
        %2712 = vset.pattern.permute.xlu0 2
        %2713 = vperm.xlu0 %2712, %v773
        %v2714 = vpop.permute.xlu0 %2713
        %2715 = vset.pattern.permute.xlu0 2
        %2716 = vperm.xlu0 %2715, %v774
        %v2717 = vpop.permute.xlu0 %2716
        %2718 = vset.pattern.permute.xlu0 2
        %2719 = vperm.xlu0 %2718, %v775
        %v2720 = vpop.permute.xlu0 %2719
        %2721 = vset.pattern.permute.xlu0 2
        %2722 = vperm.xlu0 %2721, %v776
        %v2723 = vpop.permute.xlu0 %2722
        %2724 = vset.pattern.permute.xlu0 2
        %2725 = vperm.xlu0 %2724, %v777
        %v2726 = vpop.permute.xlu0 %2725
        %2727 = vset.pattern.permute.xlu0 2
        %2728 = vperm.xlu0 %2727, %v778
        %v2729 = vpop.permute.xlu0 %2728
        %2730 = vset.pattern.permute.xlu0 2
        %2731 = vperm.xlu0 %2730, %v779
        %v2732 = vpop.permute.xlu0 %2731
        %vm2733 = vcmp.eq.s32.totalorder %v2615, %v781
        %vm2734 = vcmp.eq.s32.totalorder %v2618, %v781
        %vm2735 = vcmp.eq.s32.totalorder %v2621, %v781
        %vm2736 = vcmp.eq.s32.totalorder %v2624, %v781
        %vm2737 = vcmp.eq.s32.totalorder %v2627, %v781
        %vm2738 = vcmp.eq.s32.totalorder %v2630, %v781
        %vm2739 = vcmp.eq.s32.totalorder %v2633, %v781
        %vm2740 = vcmp.eq.s32.totalorder %v2636, %v781
        %vm2741 = vcmp.eq.s32.totalorder %v2639, %v781
        %vm2742 = vcmp.eq.s32.totalorder %v2642, %v781
        %vm2743 = vcmp.eq.s32.totalorder %v2645, %v781
        %vm2744 = vcmp.eq.s32.totalorder %v2648, %v781
        %vm2745 = vcmp.eq.s32.totalorder %v2651, %v781
        %vm2746 = vcmp.eq.s32.totalorder %v2654, %v781
        %vm2747 = vcmp.eq.s32.totalorder %v2657, %v781
        %vm2748 = vcmp.eq.s32.totalorder %v2660, %v781
        %vm2749 = vcmp.eq.s32.totalorder %v2663, %v781
        %vm2750 = vcmp.eq.s32.totalorder %v2666, %v781
        %vm2751 = vcmp.eq.s32.totalorder %v2669, %v781
        %vm2752 = vcmp.eq.s32.totalorder %v2672, %v781
        %vm2753 = vcmp.eq.s32.totalorder %v2675, %v781
        %vm2754 = vcmp.eq.s32.totalorder %v2678, %v781
        %vm2755 = vcmp.eq.s32.totalorder %v2681, %v781
        %vm2756 = vcmp.eq.s32.totalorder %v2684, %v781
        %vm2757 = vcmp.eq.s32.totalorder %v2687, %v781
        %vm2758 = vcmp.eq.s32.totalorder %v2690, %v781
        %vm2759 = vcmp.eq.s32.totalorder %v2693, %v781
        %vm2760 = vcmp.eq.s32.totalorder %v2696, %v781
        %vm2761 = vcmp.eq.s32.totalorder %v2699, %v781
        %vm2762 = vcmp.eq.s32.totalorder %v2702, %v781
        %vm2763 = vcmp.eq.s32.totalorder %v2705, %v781
        %vm2764 = vcmp.eq.s32.totalorder %v2708, %v781
        %vm2765 = vcmp.eq.s32.totalorder %v2711, %v781
        %vm2766 = vcmp.eq.s32.totalorder %v2714, %v781
        %vm2767 = vcmp.eq.s32.totalorder %v2717, %v781
        %vm2768 = vcmp.eq.s32.totalorder %v2720, %v781
        %vm2769 = vcmp.eq.s32.totalorder %v2723, %v781
        %vm2770 = vcmp.eq.s32.totalorder %v2726, %v781
        %vm2771 = vcmp.eq.s32.totalorder %v2729, %v781
        %vm2772 = vcmp.eq.s32.totalorder %v2732, %v781
        %v2773 = vsel %vm2733, 1, 0
        %v2774 = vsel %vm2734, 1, 0
        %v2775 = vsel %vm2735, 1, 0
        %v2776 = vsel %vm2736, 1, 0
        %v2777 = vsel %vm2737, 1, 0
        %v2778 = vsel %vm2738, 1, 0
        %v2779 = vsel %vm2739, 1, 0
        %v2780 = vsel %vm2740, 1, 0
        %v2781 = vsel %vm2741, 1, 0
        %v2782 = vsel %vm2742, 1, 0
        %v2783 = vsel %vm2743, 1, 0
        %v2784 = vsel %vm2744, 1, 0
        %v2785 = vsel %vm2745, 1, 0
        %v2786 = vsel %vm2746, 1, 0
        %v2787 = vsel %vm2747, 1, 0
        %v2788 = vsel %vm2748, 1, 0
        %v2789 = vsel %vm2749, 1, 0
        %v2790 = vsel %vm2750, 1, 0
        %v2791 = vsel %vm2751, 1, 0
        %v2792 = vsel %vm2752, 1, 0
        %v2793 = vsel %vm2753, 1, 0
        %v2794 = vsel %vm2754, 1, 0
        %v2795 = vsel %vm2755, 1, 0
        %v2796 = vsel %vm2756, 1, 0
        %v2797 = vsel %vm2757, 1, 0
        %v2798 = vsel %vm2758, 1, 0
        %v2799 = vsel %vm2759, 1, 0
        %v2800 = vsel %vm2760, 1, 0
        %v2801 = vsel %vm2761, 1, 0
        %v2802 = vsel %vm2762, 1, 0
        %v2803 = vsel %vm2763, 1, 0
        %v2804 = vsel %vm2764, 1, 0
        %v2805 = vsel %vm2765, 1, 0
        %v2806 = vsel %vm2766, 1, 0
        %v2807 = vsel %vm2767, 1, 0
        %v2808 = vsel %vm2768, 1, 0
        %v2809 = vsel %vm2769, 1, 0
        %v2810 = vsel %vm2770, 1, 0
        %v2811 = vsel %vm2771, 1, 0
        %v2812 = vsel %vm2772, 1, 0
        %v2813 = vcvt.s32.f32 %v2773
        %v2814 = vcvt.s32.f32 %v2774
        %v2815 = vcvt.s32.f32 %v2775
        %v2816 = vcvt.s32.f32 %v2776
        %v2817 = vcvt.s32.f32 %v2777
        %v2818 = vcvt.s32.f32 %v2778
        %v2819 = vcvt.s32.f32 %v2779
        %v2820 = vcvt.s32.f32 %v2780
        %v2821 = vcvt.s32.f32 %v2781
        %v2822 = vcvt.s32.f32 %v2782
        %v2823 = vcvt.s32.f32 %v2783
        %v2824 = vcvt.s32.f32 %v2784
        %v2825 = vcvt.s32.f32 %v2785
        %v2826 = vcvt.s32.f32 %v2786
        %v2827 = vcvt.s32.f32 %v2787
        %v2828 = vcvt.s32.f32 %v2788
        %v2829 = vcvt.s32.f32 %v2789
        %v2830 = vcvt.s32.f32 %v2790
        %v2831 = vcvt.s32.f32 %v2791
        %v2832 = vcvt.s32.f32 %v2792
        %v2833 = vcvt.s32.f32 %v2793
        %v2834 = vcvt.s32.f32 %v2794
        %v2835 = vcvt.s32.f32 %v2795
        %v2836 = vcvt.s32.f32 %v2796
        %v2837 = vcvt.s32.f32 %v2797
        %v2838 = vcvt.s32.f32 %v2798
        %v2839 = vcvt.s32.f32 %v2799
        %v2840 = vcvt.s32.f32 %v2800
        %v2841 = vcvt.s32.f32 %v2801
        %v2842 = vcvt.s32.f32 %v2802
        %v2843 = vcvt.s32.f32 %v2803
        %v2844 = vcvt.s32.f32 %v2804
        %v2845 = vcvt.s32.f32 %v2805
        %v2846 = vcvt.s32.f32 %v2806
        %v2847 = vcvt.s32.f32 %v2807
        %v2848 = vcvt.s32.f32 %v2808
        %v2849 = vcvt.s32.f32 %v2809
        %v2850 = vcvt.s32.f32 %v2810
        %v2851 = vcvt.s32.f32 %v2811
        %v2852 = vcvt.s32.f32 %v2812
        %s2853 = scalar_lea.vmem %s5, 8
        %v2854 = vld [vmem:[%s2853] sm:$0xf]
        %v2856 = vsel %vm1023, %v2813, 0
        %v2859 = vsel %vm1023, %v2814, 0
        %v2862 = vsel %vm1023, %v2815, 0
        %v2865 = vsel %vm1023, %v2816, 0
        %v2868 = vsel %vm1023, %v2817, 0
        %v2871 = vsel %vm1023, %v2818, 0
        %v2874 = vsel %vm1023, %v2819, 0
        %v2877 = vsel %vm1023, %v2820, 0
        %v2880 = vsel %vm1023, %v2821, 0
        %v2883 = vsel %vm1023, %v2822, 0
        %v2886 = vsel %vm1023, %v2823, 0
        %v2889 = vsel %vm1023, %v2824, 0
        %v2892 = vsel %vm1023, %v2825, 0
        %v2895 = vsel %vm1023, %v2826, 0
        %v2898 = vsel %vm1023, %v2827, 0
        %v2901 = vsel %vm1023, %v2828, 0
        %v2904 = vsel %vm1023, %v2829, 0
        %v2907 = vsel %vm1023, %v2830, 0
        %v2910 = vsel %vm1023, %v2831, 0
        %v2913 = vsel %vm1023, %v2832, 0
        %v2916 = vsel %vm1023, %v2833, 0
        %v2919 = vsel %vm1023, %v2834, 0
        %v2922 = vsel %vm1023, %v2835, 0
        %v2925 = vsel %vm1023, %v2836, 0
        %v2928 = vsel %vm1023, %v2837, 0
        %v2931 = vsel %vm1023, %v2838, 0
        %v2934 = vsel %vm1023, %v2839, 0
        %v2937 = vsel %vm1023, %v2840, 0
        %v2940 = vsel %vm1023, %v2841, 0
        %v2943 = vsel %vm1023, %v2842, 0
        %v2946 = vsel %vm1023, %v2843, 0
        %v2949 = vsel %vm1023, %v2844, 0
        %v2952 = vsel %vm1023, %v2845, 0
        %v2955 = vsel %vm1023, %v2846, 0
        %v2958 = vsel %vm1023, %v2847, 0
        %v2961 = vsel %vm1023, %v2848, 0
        %v2964 = vsel %vm1023, %v2849, 0
        %v2967 = vsel %vm1023, %v2850, 0
        %v2970 = vsel %vm1023, %v2851, 0
        %v2973 = vsel %vm1023, %v2852, 0
        %v2976 = vsel %vm1144, %v2854, 0
        %2978 = vmatprep.subr.mxu0 0.0
        %2979 = vmatpush1.msra.mxu0 0.0
        %2980 = vmatprep.subr.mxu0 0.0
        %2981 = vmatpush1.msra.mxu0 0.0
        %2982 = vmatprep.subr.mxu0 0.0
        %2983 = vmatpush1.msra.mxu0 0.0
        %2984 = vmatprep.subr.mxu0 0.0
        %2985 = vmatpush1.msra.mxu0 0.0
        %2986 = vmatprep.subr.mxu0 0.0
        %2987 = vmatpush1.msra.mxu0 0.0
        %2988 = vmatprep.subr.mxu0 0.0
        %2989 = vmatpush1.msra.mxu0 0.0
        %2990 = vmatprep.subr.mxu0 0.0
        %2991 = vmatpush1.msra.mxu0 0.0
        %2992 = vmatprep.subr.mxu0 0.0
        %2993 = vmatpush1.msra.mxu0 0.0
        %2994 = vmatprep.subr.mxu0 0.0
        %2995 = vmatpush1.msra.mxu0 0.0
        %2996 = vmatprep.subr.mxu0 0.0
        %2997 = vmatpush1.msra.mxu0 0.0
        %2998 = vmatprep.subr.mxu0 0.0
        %2999 = vmatpush1.msra.mxu0 0.0
        %3000 = vmatprep.subr.mxu0 0.0
        %3001 = vmatpush1.msra.mxu0 0.0
        %3002 = vmatprep.subr.mxu0 0.0
        %3003 = vmatpush1.msra.mxu0 0.0
        %3004 = vmatprep.subr.mxu0 0.0
        %3005 = vmatpush1.msra.mxu0 0.0
        %3006 = vmatprep.subr.mxu0 0.0
        %3007 = vmatpush1.msra.mxu0 0.0
        %3008 = vmatprep.subr.mxu0 0.0
        %3009 = vmatpush1.msra.mxu0 %v2976
        %3010 = vmatprep.subr.mxu0 0.0
        %3011 = vmatpush2.msra.mxu0 0.0
        %3012 = vmatprep.subr.mxu0 0.0
        %3013 = vmatpush2.msra.mxu0 0.0
        %3014 = vmatprep.subr.mxu0 0.0
        %3015 = vmatpush2.msra.mxu0 0.0
        %3016 = vmatprep.subr.mxu0 0.0
        %3017 = vmatpush2.msra.mxu0 0.0
        %3018 = vmatprep.subr.mxu0 0.0
        %3019 = vmatpush2.msra.mxu0 0.0
        %3020 = vmatprep.subr.mxu0 0.0
        %3021 = vmatpush2.msra.mxu0 0.0
        %3022 = vmatprep.subr.mxu0 0.0
        %3023 = vmatpush2.msra.mxu0 0.0
        %3024 = vmatprep.subr.mxu0 0.0
        %3025 = vmatpush2.msra.mxu0 0.0
        %3026 = vmatprep.subr.mxu0 0.0
        %3027 = vmatpush2.msra.mxu0 0.0
        %3028 = vmatprep.subr.mxu0 0.0
        %3029 = vmatpush2.msra.mxu0 0.0
        %3030 = vmatprep.subr.mxu0 0.0
        %3031 = vmatpush2.msra.mxu0 0.0
        %3032 = vmatprep.subr.mxu0 0.0
        %3033 = vmatpush2.msra.mxu0 0.0
        %3034 = vmatprep.subr.mxu0 0.0
        %3035 = vmatpush2.msra.mxu0 0.0
        %3036 = vmatprep.subr.mxu0 0.0
        %3037 = vmatpush2.msra.mxu0 0.0
        %3038 = vmatprep.subr.mxu0 0.0
        %3039 = vmatpush2.msra.mxu0 0.0
        %3040 = vmatprep.subr.mxu0 0.0
        %3041 = vmatpush2.msra.mxu0 0.0
        %3042 = vmatprep.mubr.f32.mxu0 0.0
        %3043 = vmatmul.mubr.f32.gmra.mxu0 %v2856
        %v3044 = vpop.f32.mrf.mxu0
        %v3045 = vadd.f32 0.0, %v3044
        %v3046 = vpop.f32.mrf.mxu0
        %3047 = vmatprep.mubr.f32.mxu0 0.0
        %3048 = vmatmul.mubr.f32.gmra.mxu0 %v2859
        %v3049 = vpop.f32.mrf.mxu0
        %v3050 = vadd.f32 0.0, %v3049
        %v3051 = vpop.f32.mrf.mxu0
        %3052 = vmatprep.mubr.f32.mxu0 0.0
        %3053 = vmatmul.mubr.f32.gmra.mxu0 %v2862
        %v3054 = vpop.f32.mrf.mxu0
        %v3055 = vadd.f32 0.0, %v3054
        %v3056 = vpop.f32.mrf.mxu0
        %3057 = vmatprep.mubr.f32.mxu0 0.0
        %3058 = vmatmul.mubr.f32.gmra.mxu0 %v2865
        %v3059 = vpop.f32.mrf.mxu0
        %v3060 = vadd.f32 0.0, %v3059
        %v3061 = vpop.f32.mrf.mxu0
        %3062 = vmatprep.mubr.f32.mxu0 0.0
        %3063 = vmatmul.mubr.f32.gmra.mxu0 %v2868
        %v3064 = vpop.f32.mrf.mxu0
        %v3065 = vadd.f32 0.0, %v3064
        %v3066 = vpop.f32.mrf.mxu0
        %3067 = vmatprep.mubr.f32.mxu0 0.0
        %3068 = vmatmul.mubr.f32.gmra.mxu0 %v2871
        %v3069 = vpop.f32.mrf.mxu0
        %v3070 = vadd.f32 0.0, %v3069
        %v3071 = vpop.f32.mrf.mxu0
        %3072 = vmatprep.mubr.f32.mxu0 0.0
        %3073 = vmatmul.mubr.f32.gmra.mxu0 %v2874
        %v3074 = vpop.f32.mrf.mxu0
        %v3075 = vadd.f32 0.0, %v3074
        %v3076 = vpop.f32.mrf.mxu0
        %3077 = vmatprep.mubr.f32.mxu0 0.0
        %3078 = vmatmul.mubr.f32.gmra.mxu0 %v2877
        %v3079 = vpop.f32.mrf.mxu0
        %v3080 = vadd.f32 0.0, %v3079
        %v3081 = vpop.f32.mrf.mxu0
        %3082 = vmatprep.mubr.f32.mxu0 0.0
        %3083 = vmatmul.mubr.f32.gmra.mxu0 %v2880
        %v3084 = vpop.f32.mrf.mxu0
        %v3085 = vadd.f32 0.0, %v3084
        %v3086 = vpop.f32.mrf.mxu0
        %3087 = vmatprep.mubr.f32.mxu0 0.0
        %3088 = vmatmul.mubr.f32.gmra.mxu0 %v2883
        %v3089 = vpop.f32.mrf.mxu0
        %v3090 = vadd.f32 0.0, %v3089
        %v3091 = vpop.f32.mrf.mxu0
        %3092 = vmatprep.mubr.f32.mxu0 0.0
        %3093 = vmatmul.mubr.f32.gmra.mxu0 %v2886
        %v3094 = vpop.f32.mrf.mxu0
        %v3095 = vadd.f32 0.0, %v3094
        %v3096 = vpop.f32.mrf.mxu0
        %3097 = vmatprep.mubr.f32.mxu0 0.0
        %3098 = vmatmul.mubr.f32.gmra.mxu0 %v2889
        %v3099 = vpop.f32.mrf.mxu0
        %v3100 = vadd.f32 0.0, %v3099
        %v3101 = vpop.f32.mrf.mxu0
        %3102 = vmatprep.mubr.f32.mxu0 0.0
        %3103 = vmatmul.mubr.f32.gmra.mxu0 %v2892
        %v3104 = vpop.f32.mrf.mxu0
        %v3105 = vadd.f32 0.0, %v3104
        %v3106 = vpop.f32.mrf.mxu0
        %3107 = vmatprep.mubr.f32.mxu0 0.0
        %3108 = vmatmul.mubr.f32.gmra.mxu0 %v2895
        %v3109 = vpop.f32.mrf.mxu0
        %v3110 = vadd.f32 0.0, %v3109
        %v3111 = vpop.f32.mrf.mxu0
        %3112 = vmatprep.mubr.f32.mxu0 0.0
        %3113 = vmatmul.mubr.f32.gmra.mxu0 %v2898
        %v3114 = vpop.f32.mrf.mxu0
        %v3115 = vadd.f32 0.0, %v3114
        %v3116 = vpop.f32.mrf.mxu0
        %3117 = vmatprep.mubr.f32.mxu0 0.0
        %3118 = vmatmul.mubr.f32.gmra.mxu0 %v2901
        %v3119 = vpop.f32.mrf.mxu0
        %v3120 = vadd.f32 0.0, %v3119
        %v3121 = vpop.f32.mrf.mxu0
        %3122 = vmatprep.mubr.f32.mxu0 0.0
        %3123 = vmatmul.mubr.f32.gmra.mxu0 %v2904
        %v3124 = vpop.f32.mrf.mxu0
        %v3125 = vadd.f32 0.0, %v3124
        %v3126 = vpop.f32.mrf.mxu0
        %3127 = vmatprep.mubr.f32.mxu0 0.0
        %3128 = vmatmul.mubr.f32.gmra.mxu0 %v2907
        %v3129 = vpop.f32.mrf.mxu0
        %v3130 = vadd.f32 0.0, %v3129
        %v3131 = vpop.f32.mrf.mxu0
        %3132 = vmatprep.mubr.f32.mxu0 0.0
        %3133 = vmatmul.mubr.f32.gmra.mxu0 %v2910
        %v3134 = vpop.f32.mrf.mxu0
        %v3135 = vadd.f32 0.0, %v3134
        %v3136 = vpop.f32.mrf.mxu0
        %3137 = vmatprep.mubr.f32.mxu0 0.0
        %3138 = vmatmul.mubr.f32.gmra.mxu0 %v2913
        %v3139 = vpop.f32.mrf.mxu0
        %v3140 = vadd.f32 0.0, %v3139
        %v3141 = vpop.f32.mrf.mxu0
        %3142 = vmatprep.mubr.f32.mxu0 0.0
        %3143 = vmatmul.mubr.f32.gmra.mxu0 %v2916
        %v3144 = vpop.f32.mrf.mxu0
        %v3145 = vadd.f32 0.0, %v3144
        %v3146 = vpop.f32.mrf.mxu0
        %3147 = vmatprep.mubr.f32.mxu0 0.0
        %3148 = vmatmul.mubr.f32.gmra.mxu0 %v2919
        %v3149 = vpop.f32.mrf.mxu0
        %v3150 = vadd.f32 0.0, %v3149
        %v3151 = vpop.f32.mrf.mxu0
        %3152 = vmatprep.mubr.f32.mxu0 0.0
        %3153 = vmatmul.mubr.f32.gmra.mxu0 %v2922
        %v3154 = vpop.f32.mrf.mxu0
        %v3155 = vadd.f32 0.0, %v3154
        %v3156 = vpop.f32.mrf.mxu0
        %3157 = vmatprep.mubr.f32.mxu0 0.0
        %3158 = vmatmul.mubr.f32.gmra.mxu0 %v2925
        %v3159 = vpop.f32.mrf.mxu0
        %v3160 = vadd.f32 0.0, %v3159
        %v3161 = vpop.f32.mrf.mxu0
        %3162 = vmatprep.mubr.f32.mxu0 0.0
        %3163 = vmatmul.mubr.f32.gmra.mxu0 %v2928
        %v3164 = vpop.f32.mrf.mxu0
        %v3165 = vadd.f32 0.0, %v3164
        %v3166 = vpop.f32.mrf.mxu0
        %3167 = vmatprep.mubr.f32.mxu0 0.0
        %3168 = vmatmul.mubr.f32.gmra.mxu0 %v2931
        %v3169 = vpop.f32.mrf.mxu0
        %v3170 = vadd.f32 0.0, %v3169
        %v3171 = vpop.f32.mrf.mxu0
        %3172 = vmatprep.mubr.f32.mxu0 0.0
        %3173 = vmatmul.mubr.f32.gmra.mxu0 %v2934
        %v3174 = vpop.f32.mrf.mxu0
        %v3175 = vadd.f32 0.0, %v3174
        %v3176 = vpop.f32.mrf.mxu0
        %3177 = vmatprep.mubr.f32.mxu0 0.0
        %3178 = vmatmul.mubr.f32.gmra.mxu0 %v2937
        %v3179 = vpop.f32.mrf.mxu0
        %v3180 = vadd.f32 0.0, %v3179
        %v3181 = vpop.f32.mrf.mxu0
        %3182 = vmatprep.mubr.f32.mxu0 0.0
        %3183 = vmatmul.mubr.f32.gmra.mxu0 %v2940
        %v3184 = vpop.f32.mrf.mxu0
        %v3185 = vadd.f32 0.0, %v3184
        %v3186 = vpop.f32.mrf.mxu0
        %3187 = vmatprep.mubr.f32.mxu0 0.0
        %3188 = vmatmul.mubr.f32.gmra.mxu0 %v2943
        %v3189 = vpop.f32.mrf.mxu0
        %v3190 = vadd.f32 0.0, %v3189
        %v3191 = vpop.f32.mrf.mxu0
        %3192 = vmatprep.mubr.f32.mxu0 0.0
        %3193 = vmatmul.mubr.f32.gmra.mxu0 %v2946
        %v3194 = vpop.f32.mrf.mxu0
        %v3195 = vadd.f32 0.0, %v3194
        %v3196 = vpop.f32.mrf.mxu0
        %3197 = vmatprep.mubr.f32.mxu0 0.0
        %3198 = vmatmul.mubr.f32.gmra.mxu0 %v2949
        %v3199 = vpop.f32.mrf.mxu0
        %v3200 = vadd.f32 0.0, %v3199
        %v3201 = vpop.f32.mrf.mxu0
        %3202 = vmatprep.mubr.f32.mxu0 0.0
        %3203 = vmatmul.mubr.f32.gmra.mxu0 %v2952
        %v3204 = vpop.f32.mrf.mxu0
        %v3205 = vadd.f32 0.0, %v3204
        %v3206 = vpop.f32.mrf.mxu0
        %3207 = vmatprep.mubr.f32.mxu0 0.0
        %3208 = vmatmul.mubr.f32.gmra.mxu0 %v2955
        %v3209 = vpop.f32.mrf.mxu0
        %v3210 = vadd.f32 0.0, %v3209
        %v3211 = vpop.f32.mrf.mxu0
        %3212 = vmatprep.mubr.f32.mxu0 0.0
        %3213 = vmatmul.mubr.f32.gmra.mxu0 %v2958
        %v3214 = vpop.f32.mrf.mxu0
        %v3215 = vadd.f32 0.0, %v3214
        %v3216 = vpop.f32.mrf.mxu0
        %3217 = vmatprep.mubr.f32.mxu0 0.0
        %3218 = vmatmul.mubr.f32.gmra.mxu0 %v2961
        %v3219 = vpop.f32.mrf.mxu0
        %v3220 = vadd.f32 0.0, %v3219
        %v3221 = vpop.f32.mrf.mxu0
        %3222 = vmatprep.mubr.f32.mxu0 0.0
        %3223 = vmatmul.mubr.f32.gmra.mxu0 %v2964
        %v3224 = vpop.f32.mrf.mxu0
        %v3225 = vadd.f32 0.0, %v3224
        %v3226 = vpop.f32.mrf.mxu0
        %3227 = vmatprep.mubr.f32.mxu0 0.0
        %3228 = vmatmul.mubr.f32.gmra.mxu0 %v2967
        %v3229 = vpop.f32.mrf.mxu0
        %v3230 = vadd.f32 0.0, %v3229
        %v3231 = vpop.f32.mrf.mxu0
        %3232 = vmatprep.mubr.f32.mxu0 0.0
        %3233 = vmatmul.mubr.f32.gmra.mxu0 %v2970
        %v3234 = vpop.f32.mrf.mxu0
        %v3235 = vadd.f32 0.0, %v3234
        %v3236 = vpop.f32.mrf.mxu0
        %3237 = vmatprep.mubr.f32.mxu0 0.0
        %3238 = vmatmul.mubr.f32.gmra.mxu0 %v2973
        %v3239 = vpop.f32.mrf.mxu0
        %v3240 = vadd.f32 0.0, %v3239
        %v3241 = vpop.f32.mrf.mxu0
        %3242 = vdwg.mxu0
        %v3243 = vadd.f32 %v2573, %v3045
        %v3244 = vadd.f32 %v2574, %v3050
        %v3245 = vadd.f32 %v2575, %v3055
        %v3246 = vadd.f32 %v2576, %v3060
        %v3247 = vadd.f32 %v2577, %v3065
        %v3248 = vadd.f32 %v2578, %v3070
        %v3249 = vadd.f32 %v2579, %v3075
        %v3250 = vadd.f32 %v2580, %v3080
        %v3251 = vadd.f32 %v2581, %v3085
        %v3252 = vadd.f32 %v2582, %v3090
        %v3253 = vadd.f32 %v2583, %v3095
        %v3254 = vadd.f32 %v2584, %v3100
        %v3255 = vadd.f32 %v2585, %v3105
        %v3256 = vadd.f32 %v2586, %v3110
        %v3257 = vadd.f32 %v2587, %v3115
        %v3258 = vadd.f32 %v2588, %v3120
        %v3259 = vadd.f32 %v2589, %v3125
        %v3260 = vadd.f32 %v2590, %v3130
        %v3261 = vadd.f32 %v2591, %v3135
        %v3262 = vadd.f32 %v2592, %v3140
        %v3263 = vadd.f32 %v2593, %v3145
        %v3264 = vadd.f32 %v2594, %v3150
        %v3265 = vadd.f32 %v2595, %v3155
        %v3266 = vadd.f32 %v2596, %v3160
        %v3267 = vadd.f32 %v2597, %v3165
        %v3268 = vadd.f32 %v2598, %v3170
        %v3269 = vadd.f32 %v2599, %v3175
        %v3270 = vadd.f32 %v2600, %v3180
        %v3271 = vadd.f32 %v2601, %v3185
        %v3272 = vadd.f32 %v2602, %v3190
        %v3273 = vadd.f32 %v2603, %v3195
        %v3274 = vadd.f32 %v2604, %v3200
        %v3275 = vadd.f32 %v2605, %v3205
        %v3276 = vadd.f32 %v2606, %v3210
        %v3277 = vadd.f32 %v2607, %v3215
        %v3278 = vadd.f32 %v2608, %v3220
        %v3279 = vadd.f32 %v2609, %v3225
        %v3280 = vadd.f32 %v2610, %v3230
        %v3281 = vadd.f32 %v2611, %v3235
        %v3282 = vadd.f32 %v2612, %v3240
        %3283 = vset.pattern.permute.xlu0 3
        %3284 = vperm.xlu0 %3283, %v740
        %v3285 = vpop.permute.xlu0 %3284
        %3286 = vset.pattern.permute.xlu0 3
        %3287 = vperm.xlu0 %3286, %v741
        %v3288 = vpop.permute.xlu0 %3287
        %3289 = vset.pattern.permute.xlu0 3
        %3290 = vperm.xlu0 %3289, %v742
        %v3291 = vpop.permute.xlu0 %3290
        %3292 = vset.pattern.permute.xlu0 3
        %3293 = vperm.xlu0 %3292, %v743
        %v3294 = vpop.permute.xlu0 %3293
        %3295 = vset.pattern.permute.xlu0 3
        %3296 = vperm.xlu0 %3295, %v744
        %v3297 = vpop.permute.xlu0 %3296
        %3298 = vset.pattern.permute.xlu0 3
        %3299 = vperm.xlu0 %3298, %v745
        %v3300 = vpop.permute.xlu0 %3299
        %3301 = vset.pattern.permute.xlu0 3
        %3302 = vperm.xlu0 %3301, %v746
        %v3303 = vpop.permute.xlu0 %3302
        %3304 = vset.pattern.permute.xlu0 3
        %3305 = vperm.xlu0 %3304, %v747
        %v3306 = vpop.permute.xlu0 %3305
        %3307 = vset.pattern.permute.xlu0 3
        %3308 = vperm.xlu0 %3307, %v748
        %v3309 = vpop.permute.xlu0 %3308
        %3310 = vset.pattern.permute.xlu0 3
        %3311 = vperm.xlu0 %3310, %v749
        %v3312 = vpop.permute.xlu0 %3311
        %3313 = vset.pattern.permute.xlu0 3
        %3314 = vperm.xlu0 %3313, %v750
        %v3315 = vpop.permute.xlu0 %3314
        %3316 = vset.pattern.permute.xlu0 3
        %3317 = vperm.xlu0 %3316, %v751
        %v3318 = vpop.permute.xlu0 %3317
        %3319 = vset.pattern.permute.xlu0 3
        %3320 = vperm.xlu0 %3319, %v752
        %v3321 = vpop.permute.xlu0 %3320
        %3322 = vset.pattern.permute.xlu0 3
        %3323 = vperm.xlu0 %3322, %v753
        %v3324 = vpop.permute.xlu0 %3323
        %3325 = vset.pattern.permute.xlu0 3
        %3326 = vperm.xlu0 %3325, %v754
        %v3327 = vpop.permute.xlu0 %3326
        %3328 = vset.pattern.permute.xlu0 3
        %3329 = vperm.xlu0 %3328, %v755
        %v3330 = vpop.permute.xlu0 %3329
        %3331 = vset.pattern.permute.xlu0 3
        %3332 = vperm.xlu0 %3331, %v756
        %v3333 = vpop.permute.xlu0 %3332
        %3334 = vset.pattern.permute.xlu0 3
        %3335 = vperm.xlu0 %3334, %v757
        %v3336 = vpop.permute.xlu0 %3335
        %3337 = vset.pattern.permute.xlu0 3
        %3338 = vperm.xlu0 %3337, %v758
        %v3339 = vpop.permute.xlu0 %3338
        %3340 = vset.pattern.permute.xlu0 3
        %3341 = vperm.xlu0 %3340, %v759
        %v3342 = vpop.permute.xlu0 %3341
        %3343 = vset.pattern.permute.xlu0 3
        %3344 = vperm.xlu0 %3343, %v760
        %v3345 = vpop.permute.xlu0 %3344
        %3346 = vset.pattern.permute.xlu0 3
        %3347 = vperm.xlu0 %3346, %v761
        %v3348 = vpop.permute.xlu0 %3347
        %3349 = vset.pattern.permute.xlu0 3
        %3350 = vperm.xlu0 %3349, %v762
        %v3351 = vpop.permute.xlu0 %3350
        %3352 = vset.pattern.permute.xlu0 3
        %3353 = vperm.xlu0 %3352, %v763
        %v3354 = vpop.permute.xlu0 %3353
        %3355 = vset.pattern.permute.xlu0 3
        %3356 = vperm.xlu0 %3355, %v764
        %v3357 = vpop.permute.xlu0 %3356
        %3358 = vset.pattern.permute.xlu0 3
        %3359 = vperm.xlu0 %3358, %v765
        %v3360 = vpop.permute.xlu0 %3359
        %3361 = vset.pattern.permute.xlu0 3
        %3362 = vperm.xlu0 %3361, %v766
        %v3363 = vpop.permute.xlu0 %3362
        %3364 = vset.pattern.permute.xlu0 3
        %3365 = vperm.xlu0 %3364, %v767
        %v3366 = vpop.permute.xlu0 %3365
        %3367 = vset.pattern.permute.xlu0 3
        %3368 = vperm.xlu0 %3367, %v768
        %v3369 = vpop.permute.xlu0 %3368
        %3370 = vset.pattern.permute.xlu0 3
        %3371 = vperm.xlu0 %3370, %v769
        %v3372 = vpop.permute.xlu0 %3371
        %3373 = vset.pattern.permute.xlu0 3
        %3374 = vperm.xlu0 %3373, %v770
        %v3375 = vpop.permute.xlu0 %3374
        %3376 = vset.pattern.permute.xlu0 3
        %3377 = vperm.xlu0 %3376, %v771
        %v3378 = vpop.permute.xlu0 %3377
        %3379 = vset.pattern.permute.xlu0 3
        %3380 = vperm.xlu0 %3379, %v772
        %v3381 = vpop.permute.xlu0 %3380
        %3382 = vset.pattern.permute.xlu0 3
        %3383 = vperm.xlu0 %3382, %v773
        %v3384 = vpop.permute.xlu0 %3383
        %3385 = vset.pattern.permute.xlu0 3
        %3386 = vperm.xlu0 %3385, %v774
        %v3387 = vpop.permute.xlu0 %3386
        %3388 = vset.pattern.permute.xlu0 3
        %3389 = vperm.xlu0 %3388, %v775
        %v3390 = vpop.permute.xlu0 %3389
        %3391 = vset.pattern.permute.xlu0 3
        %3392 = vperm.xlu0 %3391, %v776
        %v3393 = vpop.permute.xlu0 %3392
        %3394 = vset.pattern.permute.xlu0 3
        %3395 = vperm.xlu0 %3394, %v777
        %v3396 = vpop.permute.xlu0 %3395
        %3397 = vset.pattern.permute.xlu0 3
        %3398 = vperm.xlu0 %3397, %v778
        %v3399 = vpop.permute.xlu0 %3398
        %3400 = vset.pattern.permute.xlu0 3
        %3401 = vperm.xlu0 %3400, %v779
        %v3402 = vpop.permute.xlu0 %3401
        %vm3403 = vcmp.eq.s32.totalorder %v3285, %v781
        %vm3404 = vcmp.eq.s32.totalorder %v3288, %v781
        %vm3405 = vcmp.eq.s32.totalorder %v3291, %v781
        %vm3406 = vcmp.eq.s32.totalorder %v3294, %v781
        %vm3407 = vcmp.eq.s32.totalorder %v3297, %v781
        %vm3408 = vcmp.eq.s32.totalorder %v3300, %v781
        %vm3409 = vcmp.eq.s32.totalorder %v3303, %v781
        %vm3410 = vcmp.eq.s32.totalorder %v3306, %v781
        %vm3411 = vcmp.eq.s32.totalorder %v3309, %v781
        %vm3412 = vcmp.eq.s32.totalorder %v3312, %v781
        %vm3413 = vcmp.eq.s32.totalorder %v3315, %v781
        %vm3414 = vcmp.eq.s32.totalorder %v3318, %v781
        %vm3415 = vcmp.eq.s32.totalorder %v3321, %v781
        %vm3416 = vcmp.eq.s32.totalorder %v3324, %v781
        %vm3417 = vcmp.eq.s32.totalorder %v3327, %v781
        %vm3418 = vcmp.eq.s32.totalorder %v3330, %v781
        %vm3419 = vcmp.eq.s32.totalorder %v3333, %v781
        %vm3420 = vcmp.eq.s32.totalorder %v3336, %v781
        %vm3421 = vcmp.eq.s32.totalorder %v3339, %v781
        %vm3422 = vcmp.eq.s32.totalorder %v3342, %v781
        %vm3423 = vcmp.eq.s32.totalorder %v3345, %v781
        %vm3424 = vcmp.eq.s32.totalorder %v3348, %v781
        %vm3425 = vcmp.eq.s32.totalorder %v3351, %v781
        %vm3426 = vcmp.eq.s32.totalorder %v3354, %v781
        %vm3427 = vcmp.eq.s32.totalorder %v3357, %v781
        %vm3428 = vcmp.eq.s32.totalorder %v3360, %v781
        %vm3429 = vcmp.eq.s32.totalorder %v3363, %v781
        %vm3430 = vcmp.eq.s32.totalorder %v3366, %v781
        %vm3431 = vcmp.eq.s32.totalorder %v3369, %v781
        %vm3432 = vcmp.eq.s32.totalorder %v3372, %v781
        %vm3433 = vcmp.eq.s32.totalorder %v3375, %v781
        %vm3434 = vcmp.eq.s32.totalorder %v3378, %v781
        %vm3435 = vcmp.eq.s32.totalorder %v3381, %v781
        %vm3436 = vcmp.eq.s32.totalorder %v3384, %v781
        %vm3437 = vcmp.eq.s32.totalorder %v3387, %v781
        %vm3438 = vcmp.eq.s32.totalorder %v3390, %v781
        %vm3439 = vcmp.eq.s32.totalorder %v3393, %v781
        %vm3440 = vcmp.eq.s32.totalorder %v3396, %v781
        %vm3441 = vcmp.eq.s32.totalorder %v3399, %v781
        %vm3442 = vcmp.eq.s32.totalorder %v3402, %v781
        %v3443 = vsel %vm3403, 1, 0
        %v3444 = vsel %vm3404, 1, 0
        %v3445 = vsel %vm3405, 1, 0
        %v3446 = vsel %vm3406, 1, 0
        %v3447 = vsel %vm3407, 1, 0
        %v3448 = vsel %vm3408, 1, 0
        %v3449 = vsel %vm3409, 1, 0
        %v3450 = vsel %vm3410, 1, 0
        %v3451 = vsel %vm3411, 1, 0
        %v3452 = vsel %vm3412, 1, 0
        %v3453 = vsel %vm3413, 1, 0
        %v3454 = vsel %vm3414, 1, 0
        %v3455 = vsel %vm3415, 1, 0
        %v3456 = vsel %vm3416, 1, 0
        %v3457 = vsel %vm3417, 1, 0
        %v3458 = vsel %vm3418, 1, 0
        %v3459 = vsel %vm3419, 1, 0
        %v3460 = vsel %vm3420, 1, 0
        %v3461 = vsel %vm3421, 1, 0
        %v3462 = vsel %vm3422, 1, 0
        %v3463 = vsel %vm3423, 1, 0
        %v3464 = vsel %vm3424, 1, 0
        %v3465 = vsel %vm3425, 1, 0
        %v3466 = vsel %vm3426, 1, 0
        %v3467 = vsel %vm3427, 1, 0
        %v3468 = vsel %vm3428, 1, 0
        %v3469 = vsel %vm3429, 1, 0
        %v3470 = vsel %vm3430, 1, 0
        %v3471 = vsel %vm3431, 1, 0
        %v3472 = vsel %vm3432, 1, 0
        %v3473 = vsel %vm3433, 1, 0
        %v3474 = vsel %vm3434, 1, 0
        %v3475 = vsel %vm3435, 1, 0
        %v3476 = vsel %vm3436, 1, 0
        %v3477 = vsel %vm3437, 1, 0
        %v3478 = vsel %vm3438, 1, 0
        %v3479 = vsel %vm3439, 1, 0
        %v3480 = vsel %vm3440, 1, 0
        %v3481 = vsel %vm3441, 1, 0
        %v3482 = vsel %vm3442, 1, 0
        %v3483 = vcvt.s32.f32 %v3443
        %v3484 = vcvt.s32.f32 %v3444
        %v3485 = vcvt.s32.f32 %v3445
        %v3486 = vcvt.s32.f32 %v3446
        %v3487 = vcvt.s32.f32 %v3447
        %v3488 = vcvt.s32.f32 %v3448
        %v3489 = vcvt.s32.f32 %v3449
        %v3490 = vcvt.s32.f32 %v3450
        %v3491 = vcvt.s32.f32 %v3451
        %v3492 = vcvt.s32.f32 %v3452
        %v3493 = vcvt.s32.f32 %v3453
        %v3494 = vcvt.s32.f32 %v3454
        %v3495 = vcvt.s32.f32 %v3455
        %v3496 = vcvt.s32.f32 %v3456
        %v3497 = vcvt.s32.f32 %v3457
        %v3498 = vcvt.s32.f32 %v3458
        %v3499 = vcvt.s32.f32 %v3459
        %v3500 = vcvt.s32.f32 %v3460
        %v3501 = vcvt.s32.f32 %v3461
        %v3502 = vcvt.s32.f32 %v3462
        %v3503 = vcvt.s32.f32 %v3463
        %v3504 = vcvt.s32.f32 %v3464
        %v3505 = vcvt.s32.f32 %v3465
        %v3506 = vcvt.s32.f32 %v3466
        %v3507 = vcvt.s32.f32 %v3467
        %v3508 = vcvt.s32.f32 %v3468
        %v3509 = vcvt.s32.f32 %v3469
        %v3510 = vcvt.s32.f32 %v3470
        %v3511 = vcvt.s32.f32 %v3471
        %v3512 = vcvt.s32.f32 %v3472
        %v3513 = vcvt.s32.f32 %v3473
        %v3514 = vcvt.s32.f32 %v3474
        %v3515 = vcvt.s32.f32 %v3475
        %v3516 = vcvt.s32.f32 %v3476
        %v3517 = vcvt.s32.f32 %v3477
        %v3518 = vcvt.s32.f32 %v3478
        %v3519 = vcvt.s32.f32 %v3479
        %v3520 = vcvt.s32.f32 %v3480
        %v3521 = vcvt.s32.f32 %v3481
        %v3522 = vcvt.s32.f32 %v3482
        %s3523 = scalar_lea.vmem %s5, 12
        %v3524 = vld [vmem:[%s3523] sm:$0xf]
        %v3526 = vsel %vm1023, %v3483, 0
        %v3529 = vsel %vm1023, %v3484, 0
        %v3532 = vsel %vm1023, %v3485, 0
        %v3535 = vsel %vm1023, %v3486, 0
        %v3538 = vsel %vm1023, %v3487, 0
        %v3541 = vsel %vm1023, %v3488, 0
        %v3544 = vsel %vm1023, %v3489, 0
        %v3547 = vsel %vm1023, %v3490, 0
        %v3550 = vsel %vm1023, %v3491, 0
        %v3553 = vsel %vm1023, %v3492, 0
        %v3556 = vsel %vm1023, %v3493, 0
        %v3559 = vsel %vm1023, %v3494, 0
        %v3562 = vsel %vm1023, %v3495, 0
        %v3565 = vsel %vm1023, %v3496, 0
        %v3568 = vsel %vm1023, %v3497, 0
        %v3571 = vsel %vm1023, %v3498, 0
        %v3574 = vsel %vm1023, %v3499, 0
        %v3577 = vsel %vm1023, %v3500, 0
        %v3580 = vsel %vm1023, %v3501, 0
        %v3583 = vsel %vm1023, %v3502, 0
        %v3586 = vsel %vm1023, %v3503, 0
        %v3589 = vsel %vm1023, %v3504, 0
        %v3592 = vsel %vm1023, %v3505, 0
        %v3595 = vsel %vm1023, %v3506, 0
        %v3598 = vsel %vm1023, %v3507, 0
        %v3601 = vsel %vm1023, %v3508, 0
        %v3604 = vsel %vm1023, %v3509, 0
        %v3607 = vsel %vm1023, %v3510, 0
        %v3610 = vsel %vm1023, %v3511, 0
        %v3613 = vsel %vm1023, %v3512, 0
        %v3616 = vsel %vm1023, %v3513, 0
        %v3619 = vsel %vm1023, %v3514, 0
        %v3622 = vsel %vm1023, %v3515, 0
        %v3625 = vsel %vm1023, %v3516, 0
        %v3628 = vsel %vm1023, %v3517, 0
        %v3631 = vsel %vm1023, %v3518, 0
        %v3634 = vsel %vm1023, %v3519, 0
        %v3637 = vsel %vm1023, %v3520, 0
        %v3640 = vsel %vm1023, %v3521, 0
        %v3643 = vsel %vm1023, %v3522, 0
        %v3646 = vsel %vm1144, %v3524, 0
        %3648 = vmatprep.subr.mxu0 0.0
        %3649 = vmatpush1.msra.mxu0 0.0
        %3650 = vmatprep.subr.mxu0 0.0
        %3651 = vmatpush1.msra.mxu0 0.0
        %3652 = vmatprep.subr.mxu0 0.0
        %3653 = vmatpush1.msra.mxu0 0.0
        %3654 = vmatprep.subr.mxu0 0.0
        %3655 = vmatpush1.msra.mxu0 0.0
        %3656 = vmatprep.subr.mxu0 0.0
        %3657 = vmatpush1.msra.mxu0 0.0
        %3658 = vmatprep.subr.mxu0 0.0
        %3659 = vmatpush1.msra.mxu0 0.0
        %3660 = vmatprep.subr.mxu0 0.0
        %3661 = vmatpush1.msra.mxu0 0.0
        %3662 = vmatprep.subr.mxu0 0.0
        %3663 = vmatpush1.msra.mxu0 0.0
        %3664 = vmatprep.subr.mxu0 0.0
        %3665 = vmatpush1.msra.mxu0 0.0
        %3666 = vmatprep.subr.mxu0 0.0
        %3667 = vmatpush1.msra.mxu0 0.0
        %3668 = vmatprep.subr.mxu0 0.0
        %3669 = vmatpush1.msra.mxu0 0.0
        %3670 = vmatprep.subr.mxu0 0.0
        %3671 = vmatpush1.msra.mxu0 0.0
        %3672 = vmatprep.subr.mxu0 0.0
        %3673 = vmatpush1.msra.mxu0 0.0
        %3674 = vmatprep.subr.mxu0 0.0
        %3675 = vmatpush1.msra.mxu0 0.0
        %3676 = vmatprep.subr.mxu0 0.0
        %3677 = vmatpush1.msra.mxu0 0.0
        %3678 = vmatprep.subr.mxu0 0.0
        %3679 = vmatpush1.msra.mxu0 %v3646
        %3680 = vmatprep.subr.mxu0 0.0
        %3681 = vmatpush2.msra.mxu0 0.0
        %3682 = vmatprep.subr.mxu0 0.0
        %3683 = vmatpush2.msra.mxu0 0.0
        %3684 = vmatprep.subr.mxu0 0.0
        %3685 = vmatpush2.msra.mxu0 0.0
        %3686 = vmatprep.subr.mxu0 0.0
        %3687 = vmatpush2.msra.mxu0 0.0
        %3688 = vmatprep.subr.mxu0 0.0
        %3689 = vmatpush2.msra.mxu0 0.0
        %3690 = vmatprep.subr.mxu0 0.0
        %3691 = vmatpush2.msra.mxu0 0.0
        %3692 = vmatprep.subr.mxu0 0.0
        %3693 = vmatpush2.msra.mxu0 0.0
        %3694 = vmatprep.subr.mxu0 0.0
        %3695 = vmatpush2.msra.mxu0 0.0
        %3696 = vmatprep.subr.mxu0 0.0
        %3697 = vmatpush2.msra.mxu0 0.0
        %3698 = vmatprep.subr.mxu0 0.0
        %3699 = vmatpush2.msra.mxu0 0.0
        %3700 = vmatprep.subr.mxu0 0.0
        %3701 = vmatpush2.msra.mxu0 0.0
        %3702 = vmatprep.subr.mxu0 0.0
        %3703 = vmatpush2.msra.mxu0 0.0
        %3704 = vmatprep.subr.mxu0 0.0
        %3705 = vmatpush2.msra.mxu0 0.0
        %3706 = vmatprep.subr.mxu0 0.0
        %3707 = vmatpush2.msra.mxu0 0.0
        %3708 = vmatprep.subr.mxu0 0.0
        %3709 = vmatpush2.msra.mxu0 0.0
        %3710 = vmatprep.subr.mxu0 0.0
        %3711 = vmatpush2.msra.mxu0 0.0
        %3712 = vmatprep.mubr.f32.mxu0 0.0
        %3713 = vmatmul.mubr.f32.gmra.mxu0 %v3526
        %v3714 = vpop.f32.mrf.mxu0
        %v3715 = vadd.f32 0.0, %v3714
        %v3716 = vpop.f32.mrf.mxu0
        %3717 = vmatprep.mubr.f32.mxu0 0.0
        %3718 = vmatmul.mubr.f32.gmra.mxu0 %v3529
        %v3719 = vpop.f32.mrf.mxu0
        %v3720 = vadd.f32 0.0, %v3719
        %v3721 = vpop.f32.mrf.mxu0
        %3722 = vmatprep.mubr.f32.mxu0 0.0
        %3723 = vmatmul.mubr.f32.gmra.mxu0 %v3532
        %v3724 = vpop.f32.mrf.mxu0
        %v3725 = vadd.f32 0.0, %v3724
        %v3726 = vpop.f32.mrf.mxu0
        %3727 = vmatprep.mubr.f32.mxu0 0.0
        %3728 = vmatmul.mubr.f32.gmra.mxu0 %v3535
        %v3729 = vpop.f32.mrf.mxu0
        %v3730 = vadd.f32 0.0, %v3729
        %v3731 = vpop.f32.mrf.mxu0
        %3732 = vmatprep.mubr.f32.mxu0 0.0
        %3733 = vmatmul.mubr.f32.gmra.mxu0 %v3538
        %v3734 = vpop.f32.mrf.mxu0
        %v3735 = vadd.f32 0.0, %v3734
        %v3736 = vpop.f32.mrf.mxu0
        %3737 = vmatprep.mubr.f32.mxu0 0.0
        %3738 = vmatmul.mubr.f32.gmra.mxu0 %v3541
        %v3739 = vpop.f32.mrf.mxu0
        %v3740 = vadd.f32 0.0, %v3739
        %v3741 = vpop.f32.mrf.mxu0
        %3742 = vmatprep.mubr.f32.mxu0 0.0
        %3743 = vmatmul.mubr.f32.gmra.mxu0 %v3544
        %v3744 = vpop.f32.mrf.mxu0
        %v3745 = vadd.f32 0.0, %v3744
        %v3746 = vpop.f32.mrf.mxu0
        %3747 = vmatprep.mubr.f32.mxu0 0.0
        %3748 = vmatmul.mubr.f32.gmra.mxu0 %v3547
        %v3749 = vpop.f32.mrf.mxu0
        %v3750 = vadd.f32 0.0, %v3749
        %v3751 = vpop.f32.mrf.mxu0
        %3752 = vmatprep.mubr.f32.mxu0 0.0
        %3753 = vmatmul.mubr.f32.gmra.mxu0 %v3550
        %v3754 = vpop.f32.mrf.mxu0
        %v3755 = vadd.f32 0.0, %v3754
        %v3756 = vpop.f32.mrf.mxu0
        %3757 = vmatprep.mubr.f32.mxu0 0.0
        %3758 = vmatmul.mubr.f32.gmra.mxu0 %v3553
        %v3759 = vpop.f32.mrf.mxu0
        %v3760 = vadd.f32 0.0, %v3759
        %v3761 = vpop.f32.mrf.mxu0
        %3762 = vmatprep.mubr.f32.mxu0 0.0
        %3763 = vmatmul.mubr.f32.gmra.mxu0 %v3556
        %v3764 = vpop.f32.mrf.mxu0
        %v3765 = vadd.f32 0.0, %v3764
        %v3766 = vpop.f32.mrf.mxu0
        %3767 = vmatprep.mubr.f32.mxu0 0.0
        %3768 = vmatmul.mubr.f32.gmra.mxu0 %v3559
        %v3769 = vpop.f32.mrf.mxu0
        %v3770 = vadd.f32 0.0, %v3769
        %v3771 = vpop.f32.mrf.mxu0
        %3772 = vmatprep.mubr.f32.mxu0 0.0
        %3773 = vmatmul.mubr.f32.gmra.mxu0 %v3562
        %v3774 = vpop.f32.mrf.mxu0
        %v3775 = vadd.f32 0.0, %v3774
        %v3776 = vpop.f32.mrf.mxu0
        %3777 = vmatprep.mubr.f32.mxu0 0.0
        %3778 = vmatmul.mubr.f32.gmra.mxu0 %v3565
        %v3779 = vpop.f32.mrf.mxu0
        %v3780 = vadd.f32 0.0, %v3779
        %v3781 = vpop.f32.mrf.mxu0
        %3782 = vmatprep.mubr.f32.mxu0 0.0
        %3783 = vmatmul.mubr.f32.gmra.mxu0 %v3568
        %v3784 = vpop.f32.mrf.mxu0
        %v3785 = vadd.f32 0.0, %v3784
        %v3786 = vpop.f32.mrf.mxu0
        %3787 = vmatprep.mubr.f32.mxu0 0.0
        %3788 = vmatmul.mubr.f32.gmra.mxu0 %v3571
        %v3789 = vpop.f32.mrf.mxu0
        %v3790 = vadd.f32 0.0, %v3789
        %v3791 = vpop.f32.mrf.mxu0
        %3792 = vmatprep.mubr.f32.mxu0 0.0
        %3793 = vmatmul.mubr.f32.gmra.mxu0 %v3574
        %v3794 = vpop.f32.mrf.mxu0
        %v3795 = vadd.f32 0.0, %v3794
        %v3796 = vpop.f32.mrf.mxu0
        %3797 = vmatprep.mubr.f32.mxu0 0.0
        %3798 = vmatmul.mubr.f32.gmra.mxu0 %v3577
        %v3799 = vpop.f32.mrf.mxu0
        %v3800 = vadd.f32 0.0, %v3799
        %v3801 = vpop.f32.mrf.mxu0
        %3802 = vmatprep.mubr.f32.mxu0 0.0
        %3803 = vmatmul.mubr.f32.gmra.mxu0 %v3580
        %v3804 = vpop.f32.mrf.mxu0
        %v3805 = vadd.f32 0.0, %v3804
        %v3806 = vpop.f32.mrf.mxu0
        %3807 = vmatprep.mubr.f32.mxu0 0.0
        %3808 = vmatmul.mubr.f32.gmra.mxu0 %v3583
        %v3809 = vpop.f32.mrf.mxu0
        %v3810 = vadd.f32 0.0, %v3809
        %v3811 = vpop.f32.mrf.mxu0
        %3812 = vmatprep.mubr.f32.mxu0 0.0
        %3813 = vmatmul.mubr.f32.gmra.mxu0 %v3586
        %v3814 = vpop.f32.mrf.mxu0
        %v3815 = vadd.f32 0.0, %v3814
        %v3816 = vpop.f32.mrf.mxu0
        %3817 = vmatprep.mubr.f32.mxu0 0.0
        %3818 = vmatmul.mubr.f32.gmra.mxu0 %v3589
        %v3819 = vpop.f32.mrf.mxu0
        %v3820 = vadd.f32 0.0, %v3819
        %v3821 = vpop.f32.mrf.mxu0
        %3822 = vmatprep.mubr.f32.mxu0 0.0
        %3823 = vmatmul.mubr.f32.gmra.mxu0 %v3592
        %v3824 = vpop.f32.mrf.mxu0
        %v3825 = vadd.f32 0.0, %v3824
        %v3826 = vpop.f32.mrf.mxu0
        %3827 = vmatprep.mubr.f32.mxu0 0.0
        %3828 = vmatmul.mubr.f32.gmra.mxu0 %v3595
        %v3829 = vpop.f32.mrf.mxu0
        %v3830 = vadd.f32 0.0, %v3829
        %v3831 = vpop.f32.mrf.mxu0
        %3832 = vmatprep.mubr.f32.mxu0 0.0
        %3833 = vmatmul.mubr.f32.gmra.mxu0 %v3598
        %v3834 = vpop.f32.mrf.mxu0
        %v3835 = vadd.f32 0.0, %v3834
        %v3836 = vpop.f32.mrf.mxu0
        %3837 = vmatprep.mubr.f32.mxu0 0.0
        %3838 = vmatmul.mubr.f32.gmra.mxu0 %v3601
        %v3839 = vpop.f32.mrf.mxu0
        %v3840 = vadd.f32 0.0, %v3839
        %v3841 = vpop.f32.mrf.mxu0
        %3842 = vmatprep.mubr.f32.mxu0 0.0
        %3843 = vmatmul.mubr.f32.gmra.mxu0 %v3604
        %v3844 = vpop.f32.mrf.mxu0
        %v3845 = vadd.f32 0.0, %v3844
        %v3846 = vpop.f32.mrf.mxu0
        %3847 = vmatprep.mubr.f32.mxu0 0.0
        %3848 = vmatmul.mubr.f32.gmra.mxu0 %v3607
        %v3849 = vpop.f32.mrf.mxu0
        %v3850 = vadd.f32 0.0, %v3849
        %v3851 = vpop.f32.mrf.mxu0
        %3852 = vmatprep.mubr.f32.mxu0 0.0
        %3853 = vmatmul.mubr.f32.gmra.mxu0 %v3610
        %v3854 = vpop.f32.mrf.mxu0
        %v3855 = vadd.f32 0.0, %v3854
        %v3856 = vpop.f32.mrf.mxu0
        %3857 = vmatprep.mubr.f32.mxu0 0.0
        %3858 = vmatmul.mubr.f32.gmra.mxu0 %v3613
        %v3859 = vpop.f32.mrf.mxu0
        %v3860 = vadd.f32 0.0, %v3859
        %v3861 = vpop.f32.mrf.mxu0
        %3862 = vmatprep.mubr.f32.mxu0 0.0
        %3863 = vmatmul.mubr.f32.gmra.mxu0 %v3616
        %v3864 = vpop.f32.mrf.mxu0
        %v3865 = vadd.f32 0.0, %v3864
        %v3866 = vpop.f32.mrf.mxu0
        %3867 = vmatprep.mubr.f32.mxu0 0.0
        %3868 = vmatmul.mubr.f32.gmra.mxu0 %v3619
        %v3869 = vpop.f32.mrf.mxu0
        %v3870 = vadd.f32 0.0, %v3869
        %v3871 = vpop.f32.mrf.mxu0
        %3872 = vmatprep.mubr.f32.mxu0 0.0
        %3873 = vmatmul.mubr.f32.gmra.mxu0 %v3622
        %v3874 = vpop.f32.mrf.mxu0
        %v3875 = vadd.f32 0.0, %v3874
        %v3876 = vpop.f32.mrf.mxu0
        %3877 = vmatprep.mubr.f32.mxu0 0.0
        %3878 = vmatmul.mubr.f32.gmra.mxu0 %v3625
        %v3879 = vpop.f32.mrf.mxu0
        %v3880 = vadd.f32 0.0, %v3879
        %v3881 = vpop.f32.mrf.mxu0
        %3882 = vmatprep.mubr.f32.mxu0 0.0
        %3883 = vmatmul.mubr.f32.gmra.mxu0 %v3628
        %v3884 = vpop.f32.mrf.mxu0
        %v3885 = vadd.f32 0.0, %v3884
        %v3886 = vpop.f32.mrf.mxu0
        %3887 = vmatprep.mubr.f32.mxu0 0.0
        %3888 = vmatmul.mubr.f32.gmra.mxu0 %v3631
        %v3889 = vpop.f32.mrf.mxu0
        %v3890 = vadd.f32 0.0, %v3889
        %v3891 = vpop.f32.mrf.mxu0
        %3892 = vmatprep.mubr.f32.mxu0 0.0
        %3893 = vmatmul.mubr.f32.gmra.mxu0 %v3634
        %v3894 = vpop.f32.mrf.mxu0
        %v3895 = vadd.f32 0.0, %v3894
        %v3896 = vpop.f32.mrf.mxu0
        %3897 = vmatprep.mubr.f32.mxu0 0.0
        %3898 = vmatmul.mubr.f32.gmra.mxu0 %v3637
        %v3899 = vpop.f32.mrf.mxu0
        %v3900 = vadd.f32 0.0, %v3899
        %v3901 = vpop.f32.mrf.mxu0
        %3902 = vmatprep.mubr.f32.mxu0 0.0
        %3903 = vmatmul.mubr.f32.gmra.mxu0 %v3640
        %v3904 = vpop.f32.mrf.mxu0
        %v3905 = vadd.f32 0.0, %v3904
        %v3906 = vpop.f32.mrf.mxu0
        %3907 = vmatprep.mubr.f32.mxu0 0.0
        %3908 = vmatmul.mubr.f32.gmra.mxu0 %v3643
        %v3909 = vpop.f32.mrf.mxu0
        %v3910 = vadd.f32 0.0, %v3909
        %v3911 = vpop.f32.mrf.mxu0
        %3912 = vdwg.mxu0
        %v3913 = vadd.f32 %v3243, %v3715
        %v3914 = vadd.f32 %v3244, %v3720
        %v3915 = vadd.f32 %v3245, %v3725
        %v3916 = vadd.f32 %v3246, %v3730
        %v3917 = vadd.f32 %v3247, %v3735
        %v3918 = vadd.f32 %v3248, %v3740
        %v3919 = vadd.f32 %v3249, %v3745
        %v3920 = vadd.f32 %v3250, %v3750
        %v3921 = vadd.f32 %v3251, %v3755
        %v3922 = vadd.f32 %v3252, %v3760
        %v3923 = vadd.f32 %v3253, %v3765
        %v3924 = vadd.f32 %v3254, %v3770
        %v3925 = vadd.f32 %v3255, %v3775
        %v3926 = vadd.f32 %v3256, %v3780
        %v3927 = vadd.f32 %v3257, %v3785
        %v3928 = vadd.f32 %v3258, %v3790
        %v3929 = vadd.f32 %v3259, %v3795
        %v3930 = vadd.f32 %v3260, %v3800
        %v3931 = vadd.f32 %v3261, %v3805
        %v3932 = vadd.f32 %v3262, %v3810
        %v3933 = vadd.f32 %v3263, %v3815
        %v3934 = vadd.f32 %v3264, %v3820
        %v3935 = vadd.f32 %v3265, %v3825
        %v3936 = vadd.f32 %v3266, %v3830
        %v3937 = vadd.f32 %v3267, %v3835
        %v3938 = vadd.f32 %v3268, %v3840
        %v3939 = vadd.f32 %v3269, %v3845
        %v3940 = vadd.f32 %v3270, %v3850
        %v3941 = vadd.f32 %v3271, %v3855
        %v3942 = vadd.f32 %v3272, %v3860
        %v3943 = vadd.f32 %v3273, %v3865
        %v3944 = vadd.f32 %v3274, %v3870
        %v3945 = vadd.f32 %v3275, %v3875
        %v3946 = vadd.f32 %v3276, %v3880
        %v3947 = vadd.f32 %v3277, %v3885
        %v3948 = vadd.f32 %v3278, %v3890
        %v3949 = vadd.f32 %v3279, %v3895
        %v3950 = vadd.f32 %v3280, %v3900
        %v3951 = vadd.f32 %v3281, %v3905
        %v3952 = vadd.f32 %v3282, %v3910
        %v3953 = vxor.u32 %v3913, 2147483648
        %v3954 = vxor.u32 %v3914, 2147483648
        %v3955 = vxor.u32 %v3915, 2147483648
        %v3956 = vxor.u32 %v3916, 2147483648
        %v3957 = vxor.u32 %v3917, 2147483648
        %v3958 = vxor.u32 %v3918, 2147483648
        %v3959 = vxor.u32 %v3919, 2147483648
        %v3960 = vxor.u32 %v3920, 2147483648
        %v3961 = vxor.u32 %v3921, 2147483648
        %v3962 = vxor.u32 %v3922, 2147483648
        %v3963 = vxor.u32 %v3923, 2147483648
        %v3964 = vxor.u32 %v3924, 2147483648
        %v3965 = vxor.u32 %v3925, 2147483648
        %v3966 = vxor.u32 %v3926, 2147483648
        %v3967 = vxor.u32 %v3927, 2147483648
        %v3968 = vxor.u32 %v3928, 2147483648
        %v3969 = vxor.u32 %v3929, 2147483648
        %v3970 = vxor.u32 %v3930, 2147483648
        %v3971 = vxor.u32 %v3931, 2147483648
        %v3972 = vxor.u32 %v3932, 2147483648
        %v3973 = vxor.u32 %v3933, 2147483648
        %v3974 = vxor.u32 %v3934, 2147483648
        %v3975 = vxor.u32 %v3935, 2147483648
        %v3976 = vxor.u32 %v3936, 2147483648
        %v3977 = vxor.u32 %v3937, 2147483648
        %v3978 = vxor.u32 %v3938, 2147483648
        %v3979 = vxor.u32 %v3939, 2147483648
        %v3980 = vxor.u32 %v3940, 2147483648
        %v3981 = vxor.u32 %v3941, 2147483648
        %v3982 = vxor.u32 %v3942, 2147483648
        %v3983 = vxor.u32 %v3943, 2147483648
        %v3984 = vxor.u32 %v3944, 2147483648
        %v3985 = vxor.u32 %v3945, 2147483648
        %v3986 = vxor.u32 %v3946, 2147483648
        %v3987 = vxor.u32 %v3947, 2147483648
        %v3988 = vxor.u32 %v3948, 2147483648
        %v3989 = vxor.u32 %v3949, 2147483648
        %v3990 = vxor.u32 %v3950, 2147483648
        %v3991 = vxor.u32 %v3951, 2147483648
        %v3992 = vxor.u32 %v3952, 2147483648
        %v3993 = vmul.f32 %v3953, 1.442695
        %v3994 = vpow.pop %v3993
        %v3995 = vmul.f32 %v3954, 1.442695
        %v3996 = vpow.pop %v3995
        %v3997 = vmul.f32 %v3955, 1.442695
        %v3998 = vpow.pop %v3997
        %v3999 = vmul.f32 %v3956, 1.442695
        %v4000 = vpow.pop %v3999
        %v4001 = vmul.f32 %v3957, 1.442695
        %v4002 = vpow.pop %v4001
        %v4003 = vmul.f32 %v3958, 1.442695
        %v4004 = vpow.pop %v4003
        %v4005 = vmul.f32 %v3959, 1.442695
        %v4006 = vpow.pop %v4005
        %v4007 = vmul.f32 %v3960, 1.442695
        %v4008 = vpow.pop %v4007
        %v4009 = vmul.f32 %v3961, 1.442695
        %v4010 = vpow.pop %v4009
        %v4011 = vmul.f32 %v3962, 1.442695
        %v4012 = vpow.pop %v4011
        %v4013 = vmul.f32 %v3963, 1.442695
        %v4014 = vpow.pop %v4013
        %v4015 = vmul.f32 %v3964, 1.442695
        %v4016 = vpow.pop %v4015
        %v4017 = vmul.f32 %v3965, 1.442695
        %v4018 = vpow.pop %v4017
        %v4019 = vmul.f32 %v3966, 1.442695
        %v4020 = vpow.pop %v4019
        %v4021 = vmul.f32 %v3967, 1.442695
        %v4022 = vpow.pop %v4021
        %v4023 = vmul.f32 %v3968, 1.442695
        %v4024 = vpow.pop %v4023
        %v4025 = vmul.f32 %v3969, 1.442695
        %v4026 = vpow.pop %v4025
        %v4027 = vmul.f32 %v3970, 1.442695
        %v4028 = vpow.pop %v4027
        %v4029 = vmul.f32 %v3971, 1.442695
        %v4030 = vpow.pop %v4029
        %v4031 = vmul.f32 %v3972, 1.442695
        %v4032 = vpow.pop %v4031
        %v4033 = vmul.f32 %v3973, 1.442695
        %v4034 = vpow.pop %v4033
        %v4035 = vmul.f32 %v3974, 1.442695
        %v4036 = vpow.pop %v4035
        %v4037 = vmul.f32 %v3975, 1.442695
        %v4038 = vpow.pop %v4037
        %v4039 = vmul.f32 %v3976, 1.442695
        %v4040 = vpow.pop %v4039
        %v4041 = vmul.f32 %v3977, 1.442695
        %v4042 = vpow.pop %v4041
        %v4043 = vmul.f32 %v3978, 1.442695
        %v4044 = vpow.pop %v4043
        %v4045 = vmul.f32 %v3979, 1.442695
        %v4046 = vpow.pop %v4045
        %v4047 = vmul.f32 %v3980, 1.442695
        %v4048 = vpow.pop %v4047
        %v4049 = vmul.f32 %v3981, 1.442695
        %v4050 = vpow.pop %v4049
        %v4051 = vmul.f32 %v3982, 1.442695
        %v4052 = vpow.pop %v4051
        %v4053 = vmul.f32 %v3983, 1.442695
        %v4054 = vpow.pop %v4053
        %v4055 = vmul.f32 %v3984, 1.442695
        %v4056 = vpow.pop %v4055
        %v4057 = vmul.f32 %v3985, 1.442695
        %v4058 = vpow.pop %v4057
        %v4059 = vmul.f32 %v3986, 1.442695
        %v4060 = vpow.pop %v4059
        %v4061 = vmul.f32 %v3987, 1.442695
        %v4062 = vpow.pop %v4061
        %v4063 = vmul.f32 %v3988, 1.442695
        %v4064 = vpow.pop %v4063
        %v4065 = vmul.f32 %v3989, 1.442695
        %v4066 = vpow.pop %v4065
        %v4067 = vmul.f32 %v3990, 1.442695
        %v4068 = vpow.pop %v4067
        %v4069 = vmul.f32 %v3991, 1.442695
        %v4070 = vpow.pop %v4069
        %v4071 = vmul.f32 %v3992, 1.442695
        %v4072 = vpow.pop %v4071
        %v4073 = vadd.f32 %v3994, 1.0
        %v4074 = vadd.f32 %v3996, 1.0
        %v4075 = vadd.f32 %v3998, 1.0
        %v4076 = vadd.f32 %v4000, 1.0
        %v4077 = vadd.f32 %v4002, 1.0
        %v4078 = vadd.f32 %v4004, 1.0
        %v4079 = vadd.f32 %v4006, 1.0
        %v4080 = vadd.f32 %v4008, 1.0
        %v4081 = vadd.f32 %v4010, 1.0
        %v4082 = vadd.f32 %v4012, 1.0
        %v4083 = vadd.f32 %v4014, 1.0
        %v4084 = vadd.f32 %v4016, 1.0
        %v4085 = vadd.f32 %v4018, 1.0
        %v4086 = vadd.f32 %v4020, 1.0
        %v4087 = vadd.f32 %v4022, 1.0
        %v4088 = vadd.f32 %v4024, 1.0
        %v4089 = vadd.f32 %v4026, 1.0
        %v4090 = vadd.f32 %v4028, 1.0
        %v4091 = vadd.f32 %v4030, 1.0
        %v4092 = vadd.f32 %v4032, 1.0
        %v4093 = vadd.f32 %v4034, 1.0
        %v4094 = vadd.f32 %v4036, 1.0
        %v4095 = vadd.f32 %v4038, 1.0
        %v4096 = vadd.f32 %v4040, 1.0
        %v4097 = vadd.f32 %v4042, 1.0
        %v4098 = vadd.f32 %v4044, 1.0
        %v4099 = vadd.f32 %v4046, 1.0
        %v4100 = vadd.f32 %v4048, 1.0
        %v4101 = vadd.f32 %v4050, 1.0
        %v4102 = vadd.f32 %v4052, 1.0
        %v4103 = vadd.f32 %v4054, 1.0
        %v4104 = vadd.f32 %v4056, 1.0
        %v4105 = vadd.f32 %v4058, 1.0
        %v4106 = vadd.f32 %v4060, 1.0
        %v4107 = vadd.f32 %v4062, 1.0
        %v4108 = vadd.f32 %v4064, 1.0
        %v4109 = vadd.f32 %v4066, 1.0
        %v4110 = vadd.f32 %v4068, 1.0
        %v4111 = vadd.f32 %v4070, 1.0
        %v4112 = vadd.f32 %v4072, 1.0
        %v4113 = vrcp.pop %v4073
        %v4114 = vmul.f32 1.0, %v4113
        %v4115 = vrcp.pop %v4074
        %v4116 = vmul.f32 1.0, %v4115
        %v4117 = vrcp.pop %v4075
        %v4118 = vmul.f32 1.0, %v4117
        %v4119 = vrcp.pop %v4076
        %v4120 = vmul.f32 1.0, %v4119
        %v4121 = vrcp.pop %v4077
        %v4122 = vmul.f32 1.0, %v4121
        %v4123 = vrcp.pop %v4078
        %v4124 = vmul.f32 1.0, %v4123
        %v4125 = vrcp.pop %v4079
        %v4126 = vmul.f32 1.0, %v4125
        %v4127 = vrcp.pop %v4080
        %v4128 = vmul.f32 1.0, %v4127
        %v4129 = vrcp.pop %v4081
        %v4130 = vmul.f32 1.0, %v4129
        %v4131 = vrcp.pop %v4082
        %v4132 = vmul.f32 1.0, %v4131
        %v4133 = vrcp.pop %v4083
        %v4134 = vmul.f32 1.0, %v4133
        %v4135 = vrcp.pop %v4084
        %v4136 = vmul.f32 1.0, %v4135
        %v4137 = vrcp.pop %v4085
        %v4138 = vmul.f32 1.0, %v4137
        %v4139 = vrcp.pop %v4086
        %v4140 = vmul.f32 1.0, %v4139
        %v4141 = vrcp.pop %v4087
        %v4142 = vmul.f32 1.0, %v4141
        %v4143 = vrcp.pop %v4088
        %v4144 = vmul.f32 1.0, %v4143
        %v4145 = vrcp.pop %v4089
        %v4146 = vmul.f32 1.0, %v4145
        %v4147 = vrcp.pop %v4090
        %v4148 = vmul.f32 1.0, %v4147
        %v4149 = vrcp.pop %v4091
        %v4150 = vmul.f32 1.0, %v4149
        %v4151 = vrcp.pop %v4092
        %v4152 = vmul.f32 1.0, %v4151
        %v4153 = vrcp.pop %v4093
        %v4154 = vmul.f32 1.0, %v4153
        %v4155 = vrcp.pop %v4094
        %v4156 = vmul.f32 1.0, %v4155
        %v4157 = vrcp.pop %v4095
        %v4158 = vmul.f32 1.0, %v4157
        %v4159 = vrcp.pop %v4096
        %v4160 = vmul.f32 1.0, %v4159
        %v4161 = vrcp.pop %v4097
        %v4162 = vmul.f32 1.0, %v4161
        %v4163 = vrcp.pop %v4098
        %v4164 = vmul.f32 1.0, %v4163
        %v4165 = vrcp.pop %v4099
        %v4166 = vmul.f32 1.0, %v4165
        %v4167 = vrcp.pop %v4100
        %v4168 = vmul.f32 1.0, %v4167
        %v4169 = vrcp.pop %v4101
        %v4170 = vmul.f32 1.0, %v4169
        %v4171 = vrcp.pop %v4102
        %v4172 = vmul.f32 1.0, %v4171
        %v4173 = vrcp.pop %v4103
        %v4174 = vmul.f32 1.0, %v4173
        %v4175 = vrcp.pop %v4104
        %v4176 = vmul.f32 1.0, %v4175
        %v4177 = vrcp.pop %v4105
        %v4178 = vmul.f32 1.0, %v4177
        %v4179 = vrcp.pop %v4106
        %v4180 = vmul.f32 1.0, %v4179
        %v4181 = vrcp.pop %v4107
        %v4182 = vmul.f32 1.0, %v4181
        %v4183 = vrcp.pop %v4108
        %v4184 = vmul.f32 1.0, %v4183
        %v4185 = vrcp.pop %v4109
        %v4186 = vmul.f32 1.0, %v4185
        %v4187 = vrcp.pop %v4110
        %v4188 = vmul.f32 1.0, %v4187
        %v4189 = vrcp.pop %v4111
        %v4190 = vmul.f32 1.0, %v4189
        %v4191 = vrcp.pop %v4112
        %v4192 = vmul.f32 1.0, %v4191
        %v4193 = vmul.f32 %v3913, %v4114
        %v4194 = vmul.f32 %v3914, %v4116
        %v4195 = vmul.f32 %v3915, %v4118
        %v4196 = vmul.f32 %v3916, %v4120
        %v4197 = vmul.f32 %v3917, %v4122
        %v4198 = vmul.f32 %v3918, %v4124
        %v4199 = vmul.f32 %v3919, %v4126
        %v4200 = vmul.f32 %v3920, %v4128
        %v4201 = vmul.f32 %v3921, %v4130
        %v4202 = vmul.f32 %v3922, %v4132
        %v4203 = vmul.f32 %v3923, %v4134
        %v4204 = vmul.f32 %v3924, %v4136
        %v4205 = vmul.f32 %v3925, %v4138
        %v4206 = vmul.f32 %v3926, %v4140
        %v4207 = vmul.f32 %v3927, %v4142
        %v4208 = vmul.f32 %v3928, %v4144
        %v4209 = vmul.f32 %v3929, %v4146
        %v4210 = vmul.f32 %v3930, %v4148
        %v4211 = vmul.f32 %v3931, %v4150
        %v4212 = vmul.f32 %v3932, %v4152
        %v4213 = vmul.f32 %v3933, %v4154
        %v4214 = vmul.f32 %v3934, %v4156
        %v4215 = vmul.f32 %v3935, %v4158
        %v4216 = vmul.f32 %v3936, %v4160
        %v4217 = vmul.f32 %v3937, %v4162
        %v4218 = vmul.f32 %v3938, %v4164
        %v4219 = vmul.f32 %v3939, %v4166
        %v4220 = vmul.f32 %v3940, %v4168
        %v4221 = vmul.f32 %v3941, %v4170
        %v4222 = vmul.f32 %v3942, %v4172
        %v4223 = vmul.f32 %v3943, %v4174
        %v4224 = vmul.f32 %v3944, %v4176
        %v4225 = vmul.f32 %v3945, %v4178
        %v4226 = vmul.f32 %v3946, %v4180
        %v4227 = vmul.f32 %v3947, %v4182
        %v4228 = vmul.f32 %v3948, %v4184
        %v4229 = vmul.f32 %v3949, %v4186
        %v4230 = vmul.f32 %v3950, %v4188
        %v4231 = vmul.f32 %v3951, %v4190
        %v4232 = vmul.f32 %v3952, %v4192
        %v4233 = vld [vmem:[#allocation8] sm:$0xff]
        %v4234 = vld [vmem:[#allocation8 + $0x8] sm:$0xff]
        %v4235 = vld [vmem:[#allocation8 + $0x10] sm:$0xff]
        %v4236 = vld [vmem:[#allocation8 + $0x18] sm:$0xff]
        %v4237 = vld [vmem:[#allocation8 + $0x20] sm:$0xff]
        %v4238 = vld [vmem:[#allocation8 + $0x28] sm:$0xff]
        %v4239 = vld [vmem:[#allocation8 + $0x30] sm:$0xff]
        %v4240 = vld [vmem:[#allocation8 + $0x38] sm:$0xff]
        %v4241 = vld [vmem:[#allocation8 + $0x40] sm:$0xff]
        %v4242 = vld [vmem:[#allocation8 + $0x48] sm:$0xff]
        %v4243 = vld [vmem:[#allocation8 + $0x50] sm:$0xff]
        %v4244 = vld [vmem:[#allocation8 + $0x58] sm:$0xff]
        %v4245 = vld [vmem:[#allocation8 + $0x60] sm:$0xff]
        %v4246 = vld [vmem:[#allocation8 + $0x68] sm:$0xff]
        %v4247 = vld [vmem:[#allocation8 + $0x70] sm:$0xff]
        %v4248 = vld [vmem:[#allocation8 + $0x78] sm:$0xff]
        %v4249 = vld [vmem:[%s7] sm:$0x1]
        %v4251 = vlaneseq
        %v4252 = vshrl.u32 %v4251, 7
        %v4253 = vsub.s32 0, %v4252
        %v4254 = vrot.slane %v4249, %v4253
        %4256 = vmatprep.subr.mxu0 0.0
        %4257 = vmatpush1.msra.mxu0 %v4248
        %4258 = vmatprep.subr.mxu0 0.0
        %4259 = vmatpush1.msra.mxu0 %v4247
        %4260 = vmatprep.subr.mxu0 0.0
        %4261 = vmatpush1.msra.mxu0 %v4246
        %4262 = vmatprep.subr.mxu0 0.0
        %4263 = vmatpush1.msra.mxu0 %v4245
        %4264 = vmatprep.subr.mxu0 0.0
        %4265 = vmatpush1.msra.mxu0 %v4244
        %4266 = vmatprep.subr.mxu0 0.0
        %4267 = vmatpush1.msra.mxu0 %v4243
        %4268 = vmatprep.subr.mxu0 0.0
        %4269 = vmatpush1.msra.mxu0 %v4242
        %4270 = vmatprep.subr.mxu0 0.0
        %4271 = vmatpush1.msra.mxu0 %v4241
        %4272 = vmatprep.subr.mxu0 0.0
        %4273 = vmatpush1.msra.mxu0 %v4240
        %4274 = vmatprep.subr.mxu0 0.0
        %4275 = vmatpush1.msra.mxu0 %v4239
        %4276 = vmatprep.subr.mxu0 0.0
        %4277 = vmatpush1.msra.mxu0 %v4238
        %4278 = vmatprep.subr.mxu0 0.0
        %4279 = vmatpush1.msra.mxu0 %v4237
        %4280 = vmatprep.subr.mxu0 0.0
        %4281 = vmatpush1.msra.mxu0 %v4236
        %4282 = vmatprep.subr.mxu0 0.0
        %4283 = vmatpush1.msra.mxu0 %v4235
        %4284 = vmatprep.subr.mxu0 0.0
        %4285 = vmatpush1.msra.mxu0 %v4234
        %4286 = vmatprep.subr.mxu0 0.0
        %4287 = vmatpush1.msra.mxu0 %v4233
        %4288 = vmatprep.subr.mxu0 0.0
        %4289 = vmatpush2.msra.mxu0 0.0
        %4290 = vmatprep.subr.mxu0 0.0
        %4291 = vmatpush2.msra.mxu0 0.0
        %4292 = vmatprep.subr.mxu0 0.0
        %4293 = vmatpush2.msra.mxu0 0.0
        %4294 = vmatprep.subr.mxu0 0.0
        %4295 = vmatpush2.msra.mxu0 0.0
        %4296 = vmatprep.subr.mxu0 0.0
        %4297 = vmatpush2.msra.mxu0 0.0
        %4298 = vmatprep.subr.mxu0 0.0
        %4299 = vmatpush2.msra.mxu0 0.0
        %4300 = vmatprep.subr.mxu0 0.0
        %4301 = vmatpush2.msra.mxu0 0.0
        %4302 = vmatprep.subr.mxu0 0.0
        %4303 = vmatpush2.msra.mxu0 0.0
        %4304 = vmatprep.subr.mxu0 0.0
        %4305 = vmatpush2.msra.mxu0 0.0
        %4306 = vmatprep.subr.mxu0 0.0
        %4307 = vmatpush2.msra.mxu0 0.0
        %4308 = vmatprep.subr.mxu0 0.0
        %4309 = vmatpush2.msra.mxu0 0.0
        %4310 = vmatprep.subr.mxu0 0.0
        %4311 = vmatpush2.msra.mxu0 0.0
        %4312 = vmatprep.subr.mxu0 0.0
        %4313 = vmatpush2.msra.mxu0 0.0
        %4314 = vmatprep.subr.mxu0 0.0
        %4315 = vmatpush2.msra.mxu0 0.0
        %4316 = vmatprep.subr.mxu0 0.0
        %4317 = vmatpush2.msra.mxu0 0.0
        %4318 = vmatprep.subr.mxu0 0.0
        %4319 = vmatpush2.msra.mxu0 0.0
        %4320 = vmatprep.mubr.f32.mxu0 0.0
        %4321 = vmatmul.mubr.f32.gmra.mxu0 %v4193
        %v4322 = vpop.f32.mrf.mxu0
        %v4323 = vadd.f32 %v4254, %v4322
        %v4324 = vpop.f32.mrf.mxu0
        %4325 = vmatprep.mubr.f32.mxu0 0.0
        %4326 = vmatmul.mubr.f32.gmra.mxu0 %v4194
        %v4327 = vpop.f32.mrf.mxu0
        %v4328 = vadd.f32 %v4254, %v4327
        %v4329 = vpop.f32.mrf.mxu0
        %4330 = vmatprep.mubr.f32.mxu0 0.0
        %4331 = vmatmul.mubr.f32.gmra.mxu0 %v4195
        %v4332 = vpop.f32.mrf.mxu0
        %v4333 = vadd.f32 %v4254, %v4332
        %v4334 = vpop.f32.mrf.mxu0
        %4335 = vmatprep.mubr.f32.mxu0 0.0
        %4336 = vmatmul.mubr.f32.gmra.mxu0 %v4196
        %v4337 = vpop.f32.mrf.mxu0
        %v4338 = vadd.f32 %v4254, %v4337
        %v4339 = vpop.f32.mrf.mxu0
        %4340 = vmatprep.mubr.f32.mxu0 0.0
        %4341 = vmatmul.mubr.f32.gmra.mxu0 %v4197
        %v4342 = vpop.f32.mrf.mxu0
        %v4343 = vadd.f32 %v4254, %v4342
        %v4344 = vpop.f32.mrf.mxu0
        %4345 = vmatprep.mubr.f32.mxu0 0.0
        %4346 = vmatmul.mubr.f32.gmra.mxu0 %v4198
        %v4347 = vpop.f32.mrf.mxu0
        %v4348 = vadd.f32 %v4254, %v4347
        %v4349 = vpop.f32.mrf.mxu0
        %4350 = vmatprep.mubr.f32.mxu0 0.0
        %4351 = vmatmul.mubr.f32.gmra.mxu0 %v4199
        %v4352 = vpop.f32.mrf.mxu0
        %v4353 = vadd.f32 %v4254, %v4352
        %v4354 = vpop.f32.mrf.mxu0
        %4355 = vmatprep.mubr.f32.mxu0 0.0
        %4356 = vmatmul.mubr.f32.gmra.mxu0 %v4200
        %v4357 = vpop.f32.mrf.mxu0
        %v4358 = vadd.f32 %v4254, %v4357
        %v4359 = vpop.f32.mrf.mxu0
        %4360 = vmatprep.mubr.f32.mxu0 0.0
        %4361 = vmatmul.mubr.f32.gmra.mxu0 %v4201
        %v4362 = vpop.f32.mrf.mxu0
        %v4363 = vadd.f32 %v4254, %v4362
        %v4364 = vpop.f32.mrf.mxu0
        %4365 = vmatprep.mubr.f32.mxu0 0.0
        %4366 = vmatmul.mubr.f32.gmra.mxu0 %v4202
        %v4367 = vpop.f32.mrf.mxu0
        %v4368 = vadd.f32 %v4254, %v4367
        %v4369 = vpop.f32.mrf.mxu0
        %4370 = vmatprep.mubr.f32.mxu0 0.0
        %4371 = vmatmul.mubr.f32.gmra.mxu0 %v4203
        %v4372 = vpop.f32.mrf.mxu0
        %v4373 = vadd.f32 %v4254, %v4372
        %v4374 = vpop.f32.mrf.mxu0
        %4375 = vmatprep.mubr.f32.mxu0 0.0
        %4376 = vmatmul.mubr.f32.gmra.mxu0 %v4204
        %v4377 = vpop.f32.mrf.mxu0
        %v4378 = vadd.f32 %v4254, %v4377
        %v4379 = vpop.f32.mrf.mxu0
        %4380 = vmatprep.mubr.f32.mxu0 0.0
        %4381 = vmatmul.mubr.f32.gmra.mxu0 %v4205
        %v4382 = vpop.f32.mrf.mxu0
        %v4383 = vadd.f32 %v4254, %v4382
        %v4384 = vpop.f32.mrf.mxu0
        %4385 = vmatprep.mubr.f32.mxu0 0.0
        %4386 = vmatmul.mubr.f32.gmra.mxu0 %v4206
        %v4387 = vpop.f32.mrf.mxu0
        %v4388 = vadd.f32 %v4254, %v4387
        %v4389 = vpop.f32.mrf.mxu0
        %4390 = vmatprep.mubr.f32.mxu0 0.0
        %4391 = vmatmul.mubr.f32.gmra.mxu0 %v4207
        %v4392 = vpop.f32.mrf.mxu0
        %v4393 = vadd.f32 %v4254, %v4392
        %v4394 = vpop.f32.mrf.mxu0
        %4395 = vmatprep.mubr.f32.mxu0 0.0
        %4396 = vmatmul.mubr.f32.gmra.mxu0 %v4208
        %v4397 = vpop.f32.mrf.mxu0
        %v4398 = vadd.f32 %v4254, %v4397
        %v4399 = vpop.f32.mrf.mxu0
        %4400 = vmatprep.mubr.f32.mxu0 0.0
        %4401 = vmatmul.mubr.f32.gmra.mxu0 %v4209
        %v4402 = vpop.f32.mrf.mxu0
        %v4403 = vadd.f32 %v4254, %v4402
        %v4404 = vpop.f32.mrf.mxu0
        %4405 = vmatprep.mubr.f32.mxu0 0.0
        %4406 = vmatmul.mubr.f32.gmra.mxu0 %v4210
        %v4407 = vpop.f32.mrf.mxu0
        %v4408 = vadd.f32 %v4254, %v4407
        %v4409 = vpop.f32.mrf.mxu0
        %4410 = vmatprep.mubr.f32.mxu0 0.0
        %4411 = vmatmul.mubr.f32.gmra.mxu0 %v4211
        %v4412 = vpop.f32.mrf.mxu0
        %v4413 = vadd.f32 %v4254, %v4412
        %v4414 = vpop.f32.mrf.mxu0
        %4415 = vmatprep.mubr.f32.mxu0 0.0
        %4416 = vmatmul.mubr.f32.gmra.mxu0 %v4212
        %v4417 = vpop.f32.mrf.mxu0
        %v4418 = vadd.f32 %v4254, %v4417
        %v4419 = vpop.f32.mrf.mxu0
        %4420 = vmatprep.mubr.f32.mxu0 0.0
        %4421 = vmatmul.mubr.f32.gmra.mxu0 %v4213
        %v4422 = vpop.f32.mrf.mxu0
        %v4423 = vadd.f32 %v4254, %v4422
        %v4424 = vpop.f32.mrf.mxu0
        %4425 = vmatprep.mubr.f32.mxu0 0.0
        %4426 = vmatmul.mubr.f32.gmra.mxu0 %v4214
        %v4427 = vpop.f32.mrf.mxu0
        %v4428 = vadd.f32 %v4254, %v4427
        %v4429 = vpop.f32.mrf.mxu0
        %4430 = vmatprep.mubr.f32.mxu0 0.0
        %4431 = vmatmul.mubr.f32.gmra.mxu0 %v4215
        %v4432 = vpop.f32.mrf.mxu0
        %v4433 = vadd.f32 %v4254, %v4432
        %v4434 = vpop.f32.mrf.mxu0
        %4435 = vmatprep.mubr.f32.mxu0 0.0
        %4436 = vmatmul.mubr.f32.gmra.mxu0 %v4216
        %v4437 = vpop.f32.mrf.mxu0
        %v4438 = vadd.f32 %v4254, %v4437
        %v4439 = vpop.f32.mrf.mxu0
        %4440 = vmatprep.mubr.f32.mxu0 0.0
        %4441 = vmatmul.mubr.f32.gmra.mxu0 %v4217
        %v4442 = vpop.f32.mrf.mxu0
        %v4443 = vadd.f32 %v4254, %v4442
        %v4444 = vpop.f32.mrf.mxu0
        %4445 = vmatprep.mubr.f32.mxu0 0.0
        %4446 = vmatmul.mubr.f32.gmra.mxu0 %v4218
        %v4447 = vpop.f32.mrf.mxu0
        %v4448 = vadd.f32 %v4254, %v4447
        %v4449 = vpop.f32.mrf.mxu0
        %4450 = vmatprep.mubr.f32.mxu0 0.0
        %4451 = vmatmul.mubr.f32.gmra.mxu0 %v4219
        %v4452 = vpop.f32.mrf.mxu0
        %v4453 = vadd.f32 %v4254, %v4452
        %v4454 = vpop.f32.mrf.mxu0
        %4455 = vmatprep.mubr.f32.mxu0 0.0
        %4456 = vmatmul.mubr.f32.gmra.mxu0 %v4220
        %v4457 = vpop.f32.mrf.mxu0
        %v4458 = vadd.f32 %v4254, %v4457
        %v4459 = vpop.f32.mrf.mxu0
        %4460 = vmatprep.mubr.f32.mxu0 0.0
        %4461 = vmatmul.mubr.f32.gmra.mxu0 %v4221
        %v4462 = vpop.f32.mrf.mxu0
        %v4463 = vadd.f32 %v4254, %v4462
        %v4464 = vpop.f32.mrf.mxu0
        %4465 = vmatprep.mubr.f32.mxu0 0.0
        %4466 = vmatmul.mubr.f32.gmra.mxu0 %v4222
        %v4467 = vpop.f32.mrf.mxu0
        %v4468 = vadd.f32 %v4254, %v4467
        %v4469 = vpop.f32.mrf.mxu0
        %4470 = vmatprep.mubr.f32.mxu0 0.0
        %4471 = vmatmul.mubr.f32.gmra.mxu0 %v4223
        %v4472 = vpop.f32.mrf.mxu0
        %v4473 = vadd.f32 %v4254, %v4472
        %v4474 = vpop.f32.mrf.mxu0
        %4475 = vmatprep.mubr.f32.mxu0 0.0
        %4476 = vmatmul.mubr.f32.gmra.mxu0 %v4224
        %v4477 = vpop.f32.mrf.mxu0
        %v4478 = vadd.f32 %v4254, %v4477
        %v4479 = vpop.f32.mrf.mxu0
        %4480 = vmatprep.mubr.f32.mxu0 0.0
        %4481 = vmatmul.mubr.f32.gmra.mxu0 %v4225
        %v4482 = vpop.f32.mrf.mxu0
        %v4483 = vadd.f32 %v4254, %v4482
        %v4484 = vpop.f32.mrf.mxu0
        %4485 = vmatprep.mubr.f32.mxu0 0.0
        %4486 = vmatmul.mubr.f32.gmra.mxu0 %v4226
        %v4487 = vpop.f32.mrf.mxu0
        %v4488 = vadd.f32 %v4254, %v4487
        %v4489 = vpop.f32.mrf.mxu0
        %4490 = vmatprep.mubr.f32.mxu0 0.0
        %4491 = vmatmul.mubr.f32.gmra.mxu0 %v4227
        %v4492 = vpop.f32.mrf.mxu0
        %v4493 = vadd.f32 %v4254, %v4492
        %v4494 = vpop.f32.mrf.mxu0
        %4495 = vmatprep.mubr.f32.mxu0 0.0
        %4496 = vmatmul.mubr.f32.gmra.mxu0 %v4228
        %v4497 = vpop.f32.mrf.mxu0
        %v4498 = vadd.f32 %v4254, %v4497
        %v4499 = vpop.f32.mrf.mxu0
        %4500 = vmatprep.mubr.f32.mxu0 0.0
        %4501 = vmatmul.mubr.f32.gmra.mxu0 %v4229
        %v4502 = vpop.f32.mrf.mxu0
        %v4503 = vadd.f32 %v4254, %v4502
        %v4504 = vpop.f32.mrf.mxu0
        %4505 = vmatprep.mubr.f32.mxu0 0.0
        %4506 = vmatmul.mubr.f32.gmra.mxu0 %v4230
        %v4507 = vpop.f32.mrf.mxu0
        %v4508 = vadd.f32 %v4254, %v4507
        %v4509 = vpop.f32.mrf.mxu0
        %4510 = vmatprep.mubr.f32.mxu0 0.0
        %4511 = vmatmul.mubr.f32.gmra.mxu0 %v4231
        %v4512 = vpop.f32.mrf.mxu0
        %v4513 = vadd.f32 %v4254, %v4512
        %v4514 = vpop.f32.mrf.mxu0
        %4515 = vmatprep.mubr.f32.mxu0 0.0
        %4516 = vmatmul.mubr.f32.gmra.mxu0 %v4232
        %v4517 = vpop.f32.mrf.mxu0
        %v4518 = vadd.f32 %v4254, %v4517
        %v4519 = vpop.f32.mrf.mxu0
        %4520 = vdwg.mxu0
        %v4521 = vxor.u32 %v4323, 2147483648
        %v4522 = vxor.u32 %v4328, 2147483648
        %v4523 = vxor.u32 %v4333, 2147483648
        %v4524 = vxor.u32 %v4338, 2147483648
        %v4525 = vxor.u32 %v4343, 2147483648
        %v4526 = vxor.u32 %v4348, 2147483648
        %v4527 = vxor.u32 %v4353, 2147483648
        %v4528 = vxor.u32 %v4358, 2147483648
        %v4529 = vxor.u32 %v4363, 2147483648
        %v4530 = vxor.u32 %v4368, 2147483648
        %v4531 = vxor.u32 %v4373, 2147483648
        %v4532 = vxor.u32 %v4378, 2147483648
        %v4533 = vxor.u32 %v4383, 2147483648
        %v4534 = vxor.u32 %v4388, 2147483648
        %v4535 = vxor.u32 %v4393, 2147483648
        %v4536 = vxor.u32 %v4398, 2147483648
        %v4537 = vxor.u32 %v4403, 2147483648
        %v4538 = vxor.u32 %v4408, 2147483648
        %v4539 = vxor.u32 %v4413, 2147483648
        %v4540 = vxor.u32 %v4418, 2147483648
        %v4541 = vxor.u32 %v4423, 2147483648
        %v4542 = vxor.u32 %v4428, 2147483648
        %v4543 = vxor.u32 %v4433, 2147483648
        %v4544 = vxor.u32 %v4438, 2147483648
        %v4545 = vxor.u32 %v4443, 2147483648
        %v4546 = vxor.u32 %v4448, 2147483648
        %v4547 = vxor.u32 %v4453, 2147483648
        %v4548 = vxor.u32 %v4458, 2147483648
        %v4549 = vxor.u32 %v4463, 2147483648
        %v4550 = vxor.u32 %v4468, 2147483648
        %v4551 = vxor.u32 %v4473, 2147483648
        %v4552 = vxor.u32 %v4478, 2147483648
        %v4553 = vxor.u32 %v4483, 2147483648
        %v4554 = vxor.u32 %v4488, 2147483648
        %v4555 = vxor.u32 %v4493, 2147483648
        %v4556 = vxor.u32 %v4498, 2147483648
        %v4557 = vxor.u32 %v4503, 2147483648
        %v4558 = vxor.u32 %v4508, 2147483648
        %v4559 = vxor.u32 %v4513, 2147483648
        %v4560 = vxor.u32 %v4518, 2147483648
        %v4561 = vmul.f32 %v4521, 1.442695
        %v4562 = vpow.pop %v4561
        %v4563 = vmul.f32 %v4522, 1.442695
        %v4564 = vpow.pop %v4563
        %v4565 = vmul.f32 %v4523, 1.442695
        %v4566 = vpow.pop %v4565
        %v4567 = vmul.f32 %v4524, 1.442695
        %v4568 = vpow.pop %v4567
        %v4569 = vmul.f32 %v4525, 1.442695
        %v4570 = vpow.pop %v4569
        %v4571 = vmul.f32 %v4526, 1.442695
        %v4572 = vpow.pop %v4571
        %v4573 = vmul.f32 %v4527, 1.442695
        %v4574 = vpow.pop %v4573
        %v4575 = vmul.f32 %v4528, 1.442695
        %v4576 = vpow.pop %v4575
        %v4577 = vmul.f32 %v4529, 1.442695
        %v4578 = vpow.pop %v4577
        %v4579 = vmul.f32 %v4530, 1.442695
        %v4580 = vpow.pop %v4579
        %v4581 = vmul.f32 %v4531, 1.442695
        %v4582 = vpow.pop %v4581
        %v4583 = vmul.f32 %v4532, 1.442695
        %v4584 = vpow.pop %v4583
        %v4585 = vmul.f32 %v4533, 1.442695
        %v4586 = vpow.pop %v4585
        %v4587 = vmul.f32 %v4534, 1.442695
        %v4588 = vpow.pop %v4587
        %v4589 = vmul.f32 %v4535, 1.442695
        %v4590 = vpow.pop %v4589
        %v4591 = vmul.f32 %v4536, 1.442695
        %v4592 = vpow.pop %v4591
        %v4593 = vmul.f32 %v4537, 1.442695
        %v4594 = vpow.pop %v4593
        %v4595 = vmul.f32 %v4538, 1.442695
        %v4596 = vpow.pop %v4595
        %v4597 = vmul.f32 %v4539, 1.442695
        %v4598 = vpow.pop %v4597
        %v4599 = vmul.f32 %v4540, 1.442695
        %v4600 = vpow.pop %v4599
        %v4601 = vmul.f32 %v4541, 1.442695
        %v4602 = vpow.pop %v4601
        %v4603 = vmul.f32 %v4542, 1.442695
        %v4604 = vpow.pop %v4603
        %v4605 = vmul.f32 %v4543, 1.442695
        %v4606 = vpow.pop %v4605
        %v4607 = vmul.f32 %v4544, 1.442695
        %v4608 = vpow.pop %v4607
        %v4609 = vmul.f32 %v4545, 1.442695
        %v4610 = vpow.pop %v4609
        %v4611 = vmul.f32 %v4546, 1.442695
        %v4612 = vpow.pop %v4611
        %v4613 = vmul.f32 %v4547, 1.442695
        %v4614 = vpow.pop %v4613
        %v4615 = vmul.f32 %v4548, 1.442695
        %v4616 = vpow.pop %v4615
        %v4617 = vmul.f32 %v4549, 1.442695
        %v4618 = vpow.pop %v4617
        %v4619 = vmul.f32 %v4550, 1.442695
        %v4620 = vpow.pop %v4619
        %v4621 = vmul.f32 %v4551, 1.442695
        %v4622 = vpow.pop %v4621
        %v4623 = vmul.f32 %v4552, 1.442695
        %v4624 = vpow.pop %v4623
        %v4625 = vmul.f32 %v4553, 1.442695
        %v4626 = vpow.pop %v4625
        %v4627 = vmul.f32 %v4554, 1.442695
        %v4628 = vpow.pop %v4627
        %v4629 = vmul.f32 %v4555, 1.442695
        %v4630 = vpow.pop %v4629
        %v4631 = vmul.f32 %v4556, 1.442695
        %v4632 = vpow.pop %v4631
        %v4633 = vmul.f32 %v4557, 1.442695
        %v4634 = vpow.pop %v4633
        %v4635 = vmul.f32 %v4558, 1.442695
        %v4636 = vpow.pop %v4635
        %v4637 = vmul.f32 %v4559, 1.442695
        %v4638 = vpow.pop %v4637
        %v4639 = vmul.f32 %v4560, 1.442695
        %v4640 = vpow.pop %v4639
        %v4641 = vadd.f32 %v4562, 1.0
        %v4642 = vadd.f32 %v4564, 1.0
        %v4643 = vadd.f32 %v4566, 1.0
        %v4644 = vadd.f32 %v4568, 1.0
        %v4645 = vadd.f32 %v4570, 1.0
        %v4646 = vadd.f32 %v4572, 1.0
        %v4647 = vadd.f32 %v4574, 1.0
        %v4648 = vadd.f32 %v4576, 1.0
        %v4649 = vadd.f32 %v4578, 1.0
        %v4650 = vadd.f32 %v4580, 1.0
        %v4651 = vadd.f32 %v4582, 1.0
        %v4652 = vadd.f32 %v4584, 1.0
        %v4653 = vadd.f32 %v4586, 1.0
        %v4654 = vadd.f32 %v4588, 1.0
        %v4655 = vadd.f32 %v4590, 1.0
        %v4656 = vadd.f32 %v4592, 1.0
        %v4657 = vadd.f32 %v4594, 1.0
        %v4658 = vadd.f32 %v4596, 1.0
        %v4659 = vadd.f32 %v4598, 1.0
        %v4660 = vadd.f32 %v4600, 1.0
        %v4661 = vadd.f32 %v4602, 1.0
        %v4662 = vadd.f32 %v4604, 1.0
        %v4663 = vadd.f32 %v4606, 1.0
        %v4664 = vadd.f32 %v4608, 1.0
        %v4665 = vadd.f32 %v4610, 1.0
        %v4666 = vadd.f32 %v4612, 1.0
        %v4667 = vadd.f32 %v4614, 1.0
        %v4668 = vadd.f32 %v4616, 1.0
        %v4669 = vadd.f32 %v4618, 1.0
        %v4670 = vadd.f32 %v4620, 1.0
        %v4671 = vadd.f32 %v4622, 1.0
        %v4672 = vadd.f32 %v4624, 1.0
        %v4673 = vadd.f32 %v4626, 1.0
        %v4674 = vadd.f32 %v4628, 1.0
        %v4675 = vadd.f32 %v4630, 1.0
        %v4676 = vadd.f32 %v4632, 1.0
        %v4677 = vadd.f32 %v4634, 1.0
        %v4678 = vadd.f32 %v4636, 1.0
        %v4679 = vadd.f32 %v4638, 1.0
        %v4680 = vadd.f32 %v4640, 1.0
        %v4681 = vrcp.pop %v4641
        %v4682 = vmul.f32 1.0, %v4681
        %v4683 = vrcp.pop %v4642
        %v4684 = vmul.f32 1.0, %v4683
        %v4685 = vrcp.pop %v4643
        %v4686 = vmul.f32 1.0, %v4685
        %v4687 = vrcp.pop %v4644
        %v4688 = vmul.f32 1.0, %v4687
        %v4689 = vrcp.pop %v4645
        %v4690 = vmul.f32 1.0, %v4689
        %v4691 = vrcp.pop %v4646
        %v4692 = vmul.f32 1.0, %v4691
        %v4693 = vrcp.pop %v4647
        %v4694 = vmul.f32 1.0, %v4693
        %v4695 = vrcp.pop %v4648
        %v4696 = vmul.f32 1.0, %v4695
        %v4697 = vrcp.pop %v4649
        %v4698 = vmul.f32 1.0, %v4697
        %v4699 = vrcp.pop %v4650
        %v4700 = vmul.f32 1.0, %v4699
        %v4701 = vrcp.pop %v4651
        %v4702 = vmul.f32 1.0, %v4701
        %v4703 = vrcp.pop %v4652
        %v4704 = vmul.f32 1.0, %v4703
        %v4705 = vrcp.pop %v4653
        %v4706 = vmul.f32 1.0, %v4705
        %v4707 = vrcp.pop %v4654
        %v4708 = vmul.f32 1.0, %v4707
        %v4709 = vrcp.pop %v4655
        %v4710 = vmul.f32 1.0, %v4709
        %v4711 = vrcp.pop %v4656
        %v4712 = vmul.f32 1.0, %v4711
        %v4713 = vrcp.pop %v4657
        %v4714 = vmul.f32 1.0, %v4713
        %v4715 = vrcp.pop %v4658
        %v4716 = vmul.f32 1.0, %v4715
        %v4717 = vrcp.pop %v4659
        %v4718 = vmul.f32 1.0, %v4717
        %v4719 = vrcp.pop %v4660
        %v4720 = vmul.f32 1.0, %v4719
        %v4721 = vrcp.pop %v4661
        %v4722 = vmul.f32 1.0, %v4721
        %v4723 = vrcp.pop %v4662
        %v4724 = vmul.f32 1.0, %v4723
        %v4725 = vrcp.pop %v4663
        %v4726 = vmul.f32 1.0, %v4725
        %v4727 = vrcp.pop %v4664
        %v4728 = vmul.f32 1.0, %v4727
        %v4729 = vrcp.pop %v4665
        %v4730 = vmul.f32 1.0, %v4729
        %v4731 = vrcp.pop %v4666
        %v4732 = vmul.f32 1.0, %v4731
        %v4733 = vrcp.pop %v4667
        %v4734 = vmul.f32 1.0, %v4733
        %v4735 = vrcp.pop %v4668
        %v4736 = vmul.f32 1.0, %v4735
        %v4737 = vrcp.pop %v4669
        %v4738 = vmul.f32 1.0, %v4737
        %v4739 = vrcp.pop %v4670
        %v4740 = vmul.f32 1.0, %v4739
        %v4741 = vrcp.pop %v4671
        %v4742 = vmul.f32 1.0, %v4741
        %v4743 = vrcp.pop %v4672
        %v4744 = vmul.f32 1.0, %v4743
        %v4745 = vrcp.pop %v4673
        %v4746 = vmul.f32 1.0, %v4745
        %v4747 = vrcp.pop %v4674
        %v4748 = vmul.f32 1.0, %v4747
        %v4749 = vrcp.pop %v4675
        %v4750 = vmul.f32 1.0, %v4749
        %v4751 = vrcp.pop %v4676
        %v4752 = vmul.f32 1.0, %v4751
        %v4753 = vrcp.pop %v4677
        %v4754 = vmul.f32 1.0, %v4753
        %v4755 = vrcp.pop %v4678
        %v4756 = vmul.f32 1.0, %v4755
        %v4757 = vrcp.pop %v4679
        %v4758 = vmul.f32 1.0, %v4757
        %v4759 = vrcp.pop %v4680
        %v4760 = vmul.f32 1.0, %v4759
        %v4761 = vmul.f32 %v4323, %v4682
        %v4762 = vmul.f32 %v4328, %v4684
        %v4763 = vmul.f32 %v4333, %v4686
        %v4764 = vmul.f32 %v4338, %v4688
        %v4765 = vmul.f32 %v4343, %v4690
        %v4766 = vmul.f32 %v4348, %v4692
        %v4767 = vmul.f32 %v4353, %v4694
        %v4768 = vmul.f32 %v4358, %v4696
        %v4769 = vmul.f32 %v4363, %v4698
        %v4770 = vmul.f32 %v4368, %v4700
        %v4771 = vmul.f32 %v4373, %v4702
        %v4772 = vmul.f32 %v4378, %v4704
        %v4773 = vmul.f32 %v4383, %v4706
        %v4774 = vmul.f32 %v4388, %v4708
        %v4775 = vmul.f32 %v4393, %v4710
        %v4776 = vmul.f32 %v4398, %v4712
        %v4777 = vmul.f32 %v4403, %v4714
        %v4778 = vmul.f32 %v4408, %v4716
        %v4779 = vmul.f32 %v4413, %v4718
        %v4780 = vmul.f32 %v4418, %v4720
        %v4781 = vmul.f32 %v4423, %v4722
        %v4782 = vmul.f32 %v4428, %v4724
        %v4783 = vmul.f32 %v4433, %v4726
        %v4784 = vmul.f32 %v4438, %v4728
        %v4785 = vmul.f32 %v4443, %v4730
        %v4786 = vmul.f32 %v4448, %v4732
        %v4787 = vmul.f32 %v4453, %v4734
        %v4788 = vmul.f32 %v4458, %v4736
        %v4789 = vmul.f32 %v4463, %v4738
        %v4790 = vmul.f32 %v4468, %v4740
        %v4791 = vmul.f32 %v4473, %v4742
        %v4792 = vmul.f32 %v4478, %v4744
        %v4793 = vmul.f32 %v4483, %v4746
        %v4794 = vmul.f32 %v4488, %v4748
        %v4795 = vmul.f32 %v4493, %v4750
        %v4796 = vmul.f32 %v4498, %v4752
        %v4797 = vmul.f32 %v4503, %v4754
        %v4798 = vmul.f32 %v4508, %v4756
        %v4799 = vmul.f32 %v4513, %v4758
        %v4800 = vmul.f32 %v4518, %v4760
        %v4801 = vld [vmem:[#allocation10] sm:$0xff]
        %v4802 = vld [vmem:[#allocation10 + $0x8] sm:$0xff]
        %v4803 = vld [vmem:[#allocation10 + $0x10] sm:$0xff]
        %v4804 = vld [vmem:[#allocation10 + $0x18] sm:$0xff]
        %v4805 = vld [vmem:[#allocation10 + $0x20] sm:$0xff]
        %v4806 = vld [vmem:[#allocation10 + $0x28] sm:$0xff]
        %v4807 = vld [vmem:[#allocation10 + $0x30] sm:$0xff]
        %v4808 = vld [vmem:[#allocation10 + $0x38] sm:$0xff]
        %v4809 = vld [vmem:[#allocation10 + $0x40] sm:$0xff]
        %v4810 = vld [vmem:[#allocation10 + $0x48] sm:$0xff]
        %v4811 = vld [vmem:[#allocation10 + $0x50] sm:$0xff]
        %v4812 = vld [vmem:[#allocation10 + $0x58] sm:$0xff]
        %v4813 = vld [vmem:[#allocation10 + $0x60] sm:$0xff]
        %v4814 = vld [vmem:[#allocation10 + $0x68] sm:$0xff]
        %v4815 = vld [vmem:[#allocation10 + $0x70] sm:$0xff]
        %v4816 = vld [vmem:[#allocation10 + $0x78] sm:$0xff]
        %v4817 = vld [vmem:[%s9] sm:$0x1]
        %v4819 = vlaneseq
        %v4820 = vshrl.u32 %v4819, 7
        %v4821 = vsub.s32 0, %v4820
        %v4822 = vrot.slane %v4817, %v4821
        %4824 = vmatprep.subr.mxu0 0.0
        %4825 = vmatpush1.msra.mxu0 %v4816
        %4826 = vmatprep.subr.mxu0 0.0
        %4827 = vmatpush1.msra.mxu0 %v4815
        %4828 = vmatprep.subr.mxu0 0.0
        %4829 = vmatpush1.msra.mxu0 %v4814
        %4830 = vmatprep.subr.mxu0 0.0
        %4831 = vmatpush1.msra.mxu0 %v4813
        %4832 = vmatprep.subr.mxu0 0.0
        %4833 = vmatpush1.msra.mxu0 %v4812
        %4834 = vmatprep.subr.mxu0 0.0
        %4835 = vmatpush1.msra.mxu0 %v4811
        %4836 = vmatprep.subr.mxu0 0.0
        %4837 = vmatpush1.msra.mxu0 %v4810
        %4838 = vmatprep.subr.mxu0 0.0
        %4839 = vmatpush1.msra.mxu0 %v4809
        %4840 = vmatprep.subr.mxu0 0.0
        %4841 = vmatpush1.msra.mxu0 %v4808
        %4842 = vmatprep.subr.mxu0 0.0
        %4843 = vmatpush1.msra.mxu0 %v4807
        %4844 = vmatprep.subr.mxu0 0.0
        %4845 = vmatpush1.msra.mxu0 %v4806
        %4846 = vmatprep.subr.mxu0 0.0
        %4847 = vmatpush1.msra.mxu0 %v4805
        %4848 = vmatprep.subr.mxu0 0.0
        %4849 = vmatpush1.msra.mxu0 %v4804
        %4850 = vmatprep.subr.mxu0 0.0
        %4851 = vmatpush1.msra.mxu0 %v4803
        %4852 = vmatprep.subr.mxu0 0.0
        %4853 = vmatpush1.msra.mxu0 %v4802
        %4854 = vmatprep.subr.mxu0 0.0
        %4855 = vmatpush1.msra.mxu0 %v4801
        %4856 = vmatprep.subr.mxu0 0.0
        %4857 = vmatpush2.msra.mxu0 0.0
        %4858 = vmatprep.subr.mxu0 0.0
        %4859 = vmatpush2.msra.mxu0 0.0
        %4860 = vmatprep.subr.mxu0 0.0
        %4861 = vmatpush2.msra.mxu0 0.0
        %4862 = vmatprep.subr.mxu0 0.0
        %4863 = vmatpush2.msra.mxu0 0.0
        %4864 = vmatprep.subr.mxu0 0.0
        %4865 = vmatpush2.msra.mxu0 0.0
        %4866 = vmatprep.subr.mxu0 0.0
        %4867 = vmatpush2.msra.mxu0 0.0
        %4868 = vmatprep.subr.mxu0 0.0
        %4869 = vmatpush2.msra.mxu0 0.0
        %4870 = vmatprep.subr.mxu0 0.0
        %4871 = vmatpush2.msra.mxu0 0.0
        %4872 = vmatprep.subr.mxu0 0.0
        %4873 = vmatpush2.msra.mxu0 0.0
        %4874 = vmatprep.subr.mxu0 0.0
        %4875 = vmatpush2.msra.mxu0 0.0
        %4876 = vmatprep.subr.mxu0 0.0
        %4877 = vmatpush2.msra.mxu0 0.0
        %4878 = vmatprep.subr.mxu0 0.0
        %4879 = vmatpush2.msra.mxu0 0.0
        %4880 = vmatprep.subr.mxu0 0.0
        %4881 = vmatpush2.msra.mxu0 0.0
        %4882 = vmatprep.subr.mxu0 0.0
        %4883 = vmatpush2.msra.mxu0 0.0
        %4884 = vmatprep.subr.mxu0 0.0
        %4885 = vmatpush2.msra.mxu0 0.0
        %4886 = vmatprep.subr.mxu0 0.0
        %4887 = vmatpush2.msra.mxu0 0.0
        %4888 = vmatprep.mubr.f32.mxu0 0.0
        %4889 = vmatmul.mubr.f32.gmra.mxu0 %v4761
        %v4890 = vpop.f32.mrf.mxu0
        %v4891 = vadd.f32 %v4822, %v4890
        %v4892 = vpop.f32.mrf.mxu0
        %4893 = vmatprep.mubr.f32.mxu0 0.0
        %4894 = vmatmul.mubr.f32.gmra.mxu0 %v4762
        %v4895 = vpop.f32.mrf.mxu0
        %v4896 = vadd.f32 %v4822, %v4895
        %v4897 = vpop.f32.mrf.mxu0
        %4898 = vmatprep.mubr.f32.mxu0 0.0
        %4899 = vmatmul.mubr.f32.gmra.mxu0 %v4763
        %v4900 = vpop.f32.mrf.mxu0
        %v4901 = vadd.f32 %v4822, %v4900
        %v4902 = vpop.f32.mrf.mxu0
        %4903 = vmatprep.mubr.f32.mxu0 0.0
        %4904 = vmatmul.mubr.f32.gmra.mxu0 %v4764
        %v4905 = vpop.f32.mrf.mxu0
        %v4906 = vadd.f32 %v4822, %v4905
        %v4907 = vpop.f32.mrf.mxu0
        %4908 = vmatprep.mubr.f32.mxu0 0.0
        %4909 = vmatmul.mubr.f32.gmra.mxu0 %v4765
        %v4910 = vpop.f32.mrf.mxu0
        %v4911 = vadd.f32 %v4822, %v4910
        %v4912 = vpop.f32.mrf.mxu0
        %4913 = vmatprep.mubr.f32.mxu0 0.0
        %4914 = vmatmul.mubr.f32.gmra.mxu0 %v4766
        %v4915 = vpop.f32.mrf.mxu0
        %v4916 = vadd.f32 %v4822, %v4915
        %v4917 = vpop.f32.mrf.mxu0
        %4918 = vmatprep.mubr.f32.mxu0 0.0
        %4919 = vmatmul.mubr.f32.gmra.mxu0 %v4767
        %v4920 = vpop.f32.mrf.mxu0
        %v4921 = vadd.f32 %v4822, %v4920
        %v4922 = vpop.f32.mrf.mxu0
        %4923 = vmatprep.mubr.f32.mxu0 0.0
        %4924 = vmatmul.mubr.f32.gmra.mxu0 %v4768
        %v4925 = vpop.f32.mrf.mxu0
        %v4926 = vadd.f32 %v4822, %v4925
        %v4927 = vpop.f32.mrf.mxu0
        %4928 = vmatprep.mubr.f32.mxu0 0.0
        %4929 = vmatmul.mubr.f32.gmra.mxu0 %v4769
        %v4930 = vpop.f32.mrf.mxu0
        %v4931 = vadd.f32 %v4822, %v4930
        %v4932 = vpop.f32.mrf.mxu0
        %4933 = vmatprep.mubr.f32.mxu0 0.0
        %4934 = vmatmul.mubr.f32.gmra.mxu0 %v4770
        %v4935 = vpop.f32.mrf.mxu0
        %v4936 = vadd.f32 %v4822, %v4935
        %v4937 = vpop.f32.mrf.mxu0
        %4938 = vmatprep.mubr.f32.mxu0 0.0
        %4939 = vmatmul.mubr.f32.gmra.mxu0 %v4771
        %v4940 = vpop.f32.mrf.mxu0
        %v4941 = vadd.f32 %v4822, %v4940
        %v4942 = vpop.f32.mrf.mxu0
        %4943 = vmatprep.mubr.f32.mxu0 0.0
        %4944 = vmatmul.mubr.f32.gmra.mxu0 %v4772
        %v4945 = vpop.f32.mrf.mxu0
        %v4946 = vadd.f32 %v4822, %v4945
        %v4947 = vpop.f32.mrf.mxu0
        %4948 = vmatprep.mubr.f32.mxu0 0.0
        %4949 = vmatmul.mubr.f32.gmra.mxu0 %v4773
        %v4950 = vpop.f32.mrf.mxu0
        %v4951 = vadd.f32 %v4822, %v4950
        %v4952 = vpop.f32.mrf.mxu0
        %4953 = vmatprep.mubr.f32.mxu0 0.0
        %4954 = vmatmul.mubr.f32.gmra.mxu0 %v4774
        %v4955 = vpop.f32.mrf.mxu0
        %v4956 = vadd.f32 %v4822, %v4955
        %v4957 = vpop.f32.mrf.mxu0
        %4958 = vmatprep.mubr.f32.mxu0 0.0
        %4959 = vmatmul.mubr.f32.gmra.mxu0 %v4775
        %v4960 = vpop.f32.mrf.mxu0
        %v4961 = vadd.f32 %v4822, %v4960
        %v4962 = vpop.f32.mrf.mxu0
        %4963 = vmatprep.mubr.f32.mxu0 0.0
        %4964 = vmatmul.mubr.f32.gmra.mxu0 %v4776
        %v4965 = vpop.f32.mrf.mxu0
        %v4966 = vadd.f32 %v4822, %v4965
        %v4967 = vpop.f32.mrf.mxu0
        %4968 = vmatprep.mubr.f32.mxu0 0.0
        %4969 = vmatmul.mubr.f32.gmra.mxu0 %v4777
        %v4970 = vpop.f32.mrf.mxu0
        %v4971 = vadd.f32 %v4822, %v4970
        %v4972 = vpop.f32.mrf.mxu0
        %4973 = vmatprep.mubr.f32.mxu0 0.0
        %4974 = vmatmul.mubr.f32.gmra.mxu0 %v4778
        %v4975 = vpop.f32.mrf.mxu0
        %v4976 = vadd.f32 %v4822, %v4975
        %v4977 = vpop.f32.mrf.mxu0
        %4978 = vmatprep.mubr.f32.mxu0 0.0
        %4979 = vmatmul.mubr.f32.gmra.mxu0 %v4779
        %v4980 = vpop.f32.mrf.mxu0
        %v4981 = vadd.f32 %v4822, %v4980
        %v4982 = vpop.f32.mrf.mxu0
        %4983 = vmatprep.mubr.f32.mxu0 0.0
        %4984 = vmatmul.mubr.f32.gmra.mxu0 %v4780
        %v4985 = vpop.f32.mrf.mxu0
        %v4986 = vadd.f32 %v4822, %v4985
        %v4987 = vpop.f32.mrf.mxu0
        %4988 = vmatprep.mubr.f32.mxu0 0.0
        %4989 = vmatmul.mubr.f32.gmra.mxu0 %v4781
        %v4990 = vpop.f32.mrf.mxu0
        %v4991 = vadd.f32 %v4822, %v4990
        %v4992 = vpop.f32.mrf.mxu0
        %4993 = vmatprep.mubr.f32.mxu0 0.0
        %4994 = vmatmul.mubr.f32.gmra.mxu0 %v4782
        %v4995 = vpop.f32.mrf.mxu0
        %v4996 = vadd.f32 %v4822, %v4995
        %v4997 = vpop.f32.mrf.mxu0
        %4998 = vmatprep.mubr.f32.mxu0 0.0
        %4999 = vmatmul.mubr.f32.gmra.mxu0 %v4783
        %v5000 = vpop.f32.mrf.mxu0
        %v5001 = vadd.f32 %v4822, %v5000
        %v5002 = vpop.f32.mrf.mxu0
        %5003 = vmatprep.mubr.f32.mxu0 0.0
        %5004 = vmatmul.mubr.f32.gmra.mxu0 %v4784
        %v5005 = vpop.f32.mrf.mxu0
        %v5006 = vadd.f32 %v4822, %v5005
        %v5007 = vpop.f32.mrf.mxu0
        %5008 = vmatprep.mubr.f32.mxu0 0.0
        %5009 = vmatmul.mubr.f32.gmra.mxu0 %v4785
        %v5010 = vpop.f32.mrf.mxu0
        %v5011 = vadd.f32 %v4822, %v5010
        %v5012 = vpop.f32.mrf.mxu0
        %5013 = vmatprep.mubr.f32.mxu0 0.0
        %5014 = vmatmul.mubr.f32.gmra.mxu0 %v4786
        %v5015 = vpop.f32.mrf.mxu0
        %v5016 = vadd.f32 %v4822, %v5015
        %v5017 = vpop.f32.mrf.mxu0
        %5018 = vmatprep.mubr.f32.mxu0 0.0
        %5019 = vmatmul.mubr.f32.gmra.mxu0 %v4787
        %v5020 = vpop.f32.mrf.mxu0
        %v5021 = vadd.f32 %v4822, %v5020
        %v5022 = vpop.f32.mrf.mxu0
        %5023 = vmatprep.mubr.f32.mxu0 0.0
        %5024 = vmatmul.mubr.f32.gmra.mxu0 %v4788
        %v5025 = vpop.f32.mrf.mxu0
        %v5026 = vadd.f32 %v4822, %v5025
        %v5027 = vpop.f32.mrf.mxu0
        %5028 = vmatprep.mubr.f32.mxu0 0.0
        %5029 = vmatmul.mubr.f32.gmra.mxu0 %v4789
        %v5030 = vpop.f32.mrf.mxu0
        %v5031 = vadd.f32 %v4822, %v5030
        %v5032 = vpop.f32.mrf.mxu0
        %5033 = vmatprep.mubr.f32.mxu0 0.0
        %5034 = vmatmul.mubr.f32.gmra.mxu0 %v4790
        %v5035 = vpop.f32.mrf.mxu0
        %v5036 = vadd.f32 %v4822, %v5035
        %v5037 = vpop.f32.mrf.mxu0
        %5038 = vmatprep.mubr.f32.mxu0 0.0
        %5039 = vmatmul.mubr.f32.gmra.mxu0 %v4791
        %v5040 = vpop.f32.mrf.mxu0
        %v5041 = vadd.f32 %v4822, %v5040
        %v5042 = vpop.f32.mrf.mxu0
        %5043 = vmatprep.mubr.f32.mxu0 0.0
        %5044 = vmatmul.mubr.f32.gmra.mxu0 %v4792
        %v5045 = vpop.f32.mrf.mxu0
        %v5046 = vadd.f32 %v4822, %v5045
        %v5047 = vpop.f32.mrf.mxu0
        %5048 = vmatprep.mubr.f32.mxu0 0.0
        %5049 = vmatmul.mubr.f32.gmra.mxu0 %v4793
        %v5050 = vpop.f32.mrf.mxu0
        %v5051 = vadd.f32 %v4822, %v5050
        %v5052 = vpop.f32.mrf.mxu0
        %5053 = vmatprep.mubr.f32.mxu0 0.0
        %5054 = vmatmul.mubr.f32.gmra.mxu0 %v4794
        %v5055 = vpop.f32.mrf.mxu0
        %v5056 = vadd.f32 %v4822, %v5055
        %v5057 = vpop.f32.mrf.mxu0
        %5058 = vmatprep.mubr.f32.mxu0 0.0
        %5059 = vmatmul.mubr.f32.gmra.mxu0 %v4795
        %v5060 = vpop.f32.mrf.mxu0
        %v5061 = vadd.f32 %v4822, %v5060
        %v5062 = vpop.f32.mrf.mxu0
        %5063 = vmatprep.mubr.f32.mxu0 0.0
        %5064 = vmatmul.mubr.f32.gmra.mxu0 %v4796
        %v5065 = vpop.f32.mrf.mxu0
        %v5066 = vadd.f32 %v4822, %v5065
        %v5067 = vpop.f32.mrf.mxu0
        %5068 = vmatprep.mubr.f32.mxu0 0.0
        %5069 = vmatmul.mubr.f32.gmra.mxu0 %v4797
        %v5070 = vpop.f32.mrf.mxu0
        %v5071 = vadd.f32 %v4822, %v5070
        %v5072 = vpop.f32.mrf.mxu0
        %5073 = vmatprep.mubr.f32.mxu0 0.0
        %5074 = vmatmul.mubr.f32.gmra.mxu0 %v4798
        %v5075 = vpop.f32.mrf.mxu0
        %v5076 = vadd.f32 %v4822, %v5075
        %v5077 = vpop.f32.mrf.mxu0
        %5078 = vmatprep.mubr.f32.mxu0 0.0
        %5079 = vmatmul.mubr.f32.gmra.mxu0 %v4799
        %v5080 = vpop.f32.mrf.mxu0
        %v5081 = vadd.f32 %v4822, %v5080
        %v5082 = vpop.f32.mrf.mxu0
        %5083 = vmatprep.mubr.f32.mxu0 0.0
        %5084 = vmatmul.mubr.f32.gmra.mxu0 %v4800
        %v5085 = vpop.f32.mrf.mxu0
        %v5086 = vadd.f32 %v4822, %v5085
        %v5087 = vpop.f32.mrf.mxu0
        %5088 = vdwg.mxu0
        %5089 = vst [vmem:[%s528] sm:$0xff] %v4891
        %5090 = vst [vmem:[%s528 + $0x8] sm:$0xff] %v4896
        %5091 = vst [vmem:[%s528 + $0x10] sm:$0xff] %v4901
        %5092 = vst [vmem:[%s528 + $0x18] sm:$0xff] %v4906
        %5093 = vst [vmem:[%s528 + $0x20] sm:$0xff] %v4911
        %5094 = vst [vmem:[%s528 + $0x28] sm:$0xff] %v4916
        %5095 = vst [vmem:[%s528 + $0x30] sm:$0xff] %v4921
        %5096 = vst [vmem:[%s528 + $0x38] sm:$0xff] %v4926
        %5097 = vst [vmem:[%s528 + $0x40] sm:$0xff] %v4931
        %5098 = vst [vmem:[%s528 + $0x48] sm:$0xff] %v4936
        %5099 = vst [vmem:[%s528 + $0x50] sm:$0xff] %v4941
        %5100 = vst [vmem:[%s528 + $0x58] sm:$0xff] %v4946
        %5101 = vst [vmem:[%s528 + $0x60] sm:$0xff] %v4951
        %5102 = vst [vmem:[%s528 + $0x68] sm:$0xff] %v4956
        %5103 = vst [vmem:[%s528 + $0x70] sm:$0xff] %v4961
        %5104 = vst [vmem:[%s528 + $0x78] sm:$0xff] %v4966
        %5105 = vst [vmem:[%s528 + $0x80] sm:$0xff] %v4971
        %5106 = vst [vmem:[%s528 + $0x88] sm:$0xff] %v4976
        %5107 = vst [vmem:[%s528 + $0x90] sm:$0xff] %v4981
        %5108 = vst [vmem:[%s528 + $0x98] sm:$0xff] %v4986
        %5109 = vst [vmem:[%s528 + $0xa0] sm:$0xff] %v4991
        %5110 = vst [vmem:[%s528 + $0xa8] sm:$0xff] %v4996
        %5111 = vst [vmem:[%s528 + $0xb0] sm:$0xff] %v5001
        %5112 = vst [vmem:[%s528 + $0xb8] sm:$0xff] %v5006
        %5113 = vst [vmem:[%s528 + $0xc0] sm:$0xff] %v5011
        %5114 = vst [vmem:[%s528 + $0xc8] sm:$0xff] %v5016
        %5115 = vst [vmem:[%s528 + $0xd0] sm:$0xff] %v5021
        %5116 = vst [vmem:[%s528 + $0xd8] sm:$0xff] %v5026
        %5117 = vst [vmem:[%s528 + $0xe0] sm:$0xff] %v5031
        %5118 = vst [vmem:[%s528 + $0xe8] sm:$0xff] %v5036
        %5119 = vst [vmem:[%s528 + $0xf0] sm:$0xff] %v5041
        %5120 = vst [vmem:[%s528 + $0xf8] sm:$0xff] %v5046
        %5121 = vst [vmem:[%s528 + $0x100] sm:$0xff] %v5051
        %5122 = vst [vmem:[%s528 + $0x108] sm:$0xff] %v5056
        %5123 = vst [vmem:[%s528 + $0x110] sm:$0xff] %v5061
        %5124 = vst [vmem:[%s528 + $0x118] sm:$0xff] %v5066
        %5125 = vst [vmem:[%s528 + $0x120] sm:$0xff] %v5071
        %5126 = vst [vmem:[%s528 + $0x128] sm:$0xff] %v5076
        %5127 = vst [vmem:[%s528 + $0x130] sm:$0xff] %v5081
        %5128 = vst [vmem:[%s528 + $0x138] sm:$0xff] %v5086
        %s5129 = sand.u32 %s269, 1
        %s5130 = scalar_lea.sflag [#allocation4], %s5129
        %s5131 = sand.u32 %s269, 1
        %s5132 = smul.addr %s5131, 320
        %s5133 = scalar_lea.vmem [#allocation11], %s5132
        // Predicated region
        $region81: #{tpu_custom_call.1} parent=59 // pred_check
          %p5134 = pneg %p279
        $region82: #{tpu_custom_call.1} parent=59 // pred_check_branch
          %5136 = sbr.rel (%p5134) target = $region84
        $region83: #{tpu_custom_call.1} parent=59 // pred_region
          %s5137 = smul.u32 40, %s31
          %s5138 = ssub.s32 79, %s5137
          %p5139 = scmp.lt.s32.totalorder %s5138, 40
          %s5140 = scalar_select %p5139, %s5138, 40
          %s5141 = smul.u32 128, %s5140
          %s5143 = ssub.s32 5120, %s5141
          %5144 = vsyncadd %s5130, %s5143
          %p5145 = scmp.ne.s32.totalorder 0, %s5141
          %s5146 = smul.addr %s5137, 128
          %s5147 = scalar_lea.hbm %s10, %s5146
          %s5148 = smul.u32 8, %s5140
          %s5149 = sshll.u32 %s5133, 4
          %s5150 = int_to_ptr.vmem [resolvable:$true] %s5149
          %s5151 = sshll.u32 %s5148, 4
          %5155 = dma.vmem_to_hbm [thread:$0]  (%p5145), %s5150, %s5151, %s5147, %s5130, 128, 128, 8
        $region84: #{tpu_custom_call.1} parent=59 // pred_fallthru
          _
      $region60: #{tpu_custom_call.1} parent=5 // pred_fallthru
        _
      %p5156 = scmp.le.s32.totalorder 2, %s26
      // Predicated region
      $region85: #{tpu_custom_call.1} parent=5 // pred_check
        %p5157 = pneg %p5156
      $region86: #{tpu_custom_call.1} parent=5 // pred_check_branch
        %5159 = sbr.rel (%p5157) target = $region88
      $region87: #{tpu_custom_call.1} parent=5 // pred_region
        %s5160 = ssub.s32 %s26, 2
        // Predicated region
        $region89: #{tpu_custom_call.1} parent=87 // pred_check
          %p5161 = pneg %p285
        $region90: #{tpu_custom_call.1} parent=87 // pred_check_branch
          %5163 = sbr.rel (%p5161) target = $region92
        $region91: #{tpu_custom_call.1} parent=87 // pred_region
          %s5164 = sand.u32 %s270, 1
          %s5165 = scalar_lea.sflag [#allocation4], %s5164
          %s5166 = sand.u32 %s270, 1
          %s5167 = smul.addr %s5166, 320
          %s5168 = scalar_lea.vmem [#allocation11], %s5167
          %5169 = dma.done %s5165, 5120
        $region92: #{tpu_custom_call.1} parent=87 // pred_fallthru
          _
      $region88: #{tpu_custom_call.1} parent=5 // pred_fallthru
        _
    $region6: #{tpu_custom_call.1} parent=1 // loop_footer
      %s30 = sadd.s32 1, %s26
    $region7: #{tpu_custom_call.1} parent=1 // loop_footer_branch
      %25 = sbr.rel target = $region3
    $region8: #{tpu_custom_call.1} parent=1 // loop_exit
      _
    %5170 = vsyncpa [#allocation3], 1
    %s5171 = scalar_lea.sflag [#allocation3], 1
    %5172 = vsyncpa %s5171, 1
    %5173 = vsyncpa [#allocation6], 1
    %s5174 = scalar_lea.sflag [#allocation6], 1
    %5175 = vsyncpa %s5174, 1
    %5176 = vsyncpa [#allocation9], 1
    %5177 = vsyncpa [#allocation4], 1
    %s5178 = scalar_lea.sflag [#allocation4], 1
    %5179 = vsyncpa %s5178, 1

</llo_original>
